<compile_context>
chip_gen: v7x
topology: tpu7x:2x2x1
jax: 0.10.0
libtpu: 0.0.40
codegen_flags: <defaults>
</compile_context>

<pallas_src>
import functools

import jax
import jax.numpy as jnp
from jax.experimental import pallas as pl
from jax.experimental.pallas import tpu as pltpu


def _round_up(x, m):
    return (x + m - 1) // m * m


def _phys_bytes(shape, dtype):
    """Physical VMEM footprint of a block: last dim pads to 128 lanes, the
    second-to-last to the dtype's sublane multiple (8 for 32-bit, 16 for bf16)."""
    itemsize = jnp.dtype(dtype).itemsize
    sub = 8 * max(1, 4 // itemsize)
    if len(shape) == 1:
        return _round_up(shape[0] * itemsize, 512)
    lead = 1
    for d in shape[:-2]:
        lead *= d
    return lead * _round_up(shape[-2], sub) * _round_up(shape[-1], 128) * itemsize


def _tpu_info():
    try:
        return pltpu.get_tpu_info()
    except Exception:
        return None


def _vmem_budget_and_limit():
    """~3/4 of physical VMEM as the compiler limit (96 MiB on 128-MiB v5e/v6e,
    48 MiB on 64-MiB v7x) and ~3/4 of that as the tile-search budget."""
    cap = 64 * 1024 * 1024                       # conservative fallback (v7x)
    info = _tpu_info()
    try:
        c = getattr(info, "vmem_capacity_bytes", None) if info is not None else None
        if c:
            cap = int(c)
    except Exception:
        pass
    limit = min(cap * 3 // 4, 96 * 1024 * 1024)
    return limit * 3 // 4, limit


def _num_tensorcores():
    info = _tpu_info()
    if info is not None:
        for name in ("num_cores", "core_count", "tensorcore_count", "num_tensorcores"):
            v = getattr(info, name, None)
            if isinstance(v, int) and v > 0:
                return v
    return 1


def _pick_row_tile(n, ho, hp, wp, cin, wo, cout, kh, kw, dtype,
                   budget_bytes, num_cores):
    """Largest divisor of Ho whose physically-padded working set fits the VMEM
    budget; prefers RT*Wo multiples of 256 (v6e/v7x MXU M width)."""
    cout_mxu = _round_up(cout, 128)
    fixed = 2 * _phys_bytes((1, hp, wp, cin), dtype)           # input image (dbl-buffered)
    fixed += 2 * _phys_bytes((kh * kw, cin, cout_mxu), dtype)  # folded weights
    fixed += 2 * _phys_bytes((1, cout_mxu), jnp.float32)       # BN shift

    def cost(t):
        per = 2 * _phys_bytes((1, t * wo, cout), dtype)        # output block (dbl-buffered)
        per += _phys_bytes((t * wo, cout_mxu), jnp.float32)    # f32 accumulator
        per += 2 * _phys_bytes((t * wo, cin), dtype)           # live tap values (margin)
        return fixed + per

    cands = [t for t in range(1, ho + 1)
             if ho % t == 0 and ((t * wo) % 8 == 0 or t == ho)]
    fitting = [t for t in cands if cost(t) <= budget_bytes] or [min(cands)]
    pref = [t for t in fitting if (t * wo) % 256 == 0]
    tile = max(pref) if pref else max(fitting)

    # Only split a too-coarse grid when the chip actually has >1 TensorCore
    # (v7x / megacore); on 1-TC v5e/v6e keep the full-size tile.
    if num_cores > 1 and n * (ho // tile) < num_cores:
        for t in sorted(fitting, reverse=True):
            if n * (ho // t) >= num_cores:
                tile = t
                break
    return tile
    # TODO(synk): for very large H*W the whole padded image should not stay
    # VMEM-resident; switch in_specs[0] to memory_space=pl.ANY and manually
    # double-buffer a win_h-row halo window per grid step (v7x 64-MiB VMEM).


def _conv_bn_kernel(x_ref, w_ref, sb_ref, o_ref, acc_ref, *,
                    stride, kh, kw, cin, wo):
    """One grid step: one batch element x one tile of output rows.

    x_ref  : (1, Hp, Wp, Cin)       whole padded image (block index depends only
                                    on the batch axis -> resident across row tiles)
    w_ref  : (Kh*Kw, Cin, CoutMXU)  per-tap weights, BN scale folded, input dtype
    sb_ref : (1, CoutMXU)           BN shift (beta - mean*scale), f32
    o_ref  : (1, RT*Wo, Cout)       output rows, true (unpadded) channels
    acc_ref: (RT*Wo, CoutMXU)       f32 VMEM accumulator
    """
    rt_wo, cout = o_ref.shape[1], o_ref.shape[2]
    rt = rt_wo // wo
    r = pl.program_id(1)
    row0 = pl.multiple_of(r * (rt * stride), rt * stride)

    # Kh*Kw MXU dots accumulated into the f32 VMEM accumulator.  Each tap is
    # sliced directly off the input ref: no materialized window value, no
    # im2col scratch, no lane-misaligned (masked + rotated) stores.
    for dy in range(kh):
        for dx in range(kw):
            if stride == 1:
                tap = x_ref[0, pl.ds(row0 + dy, rt), pl.ds(dx, wo), :]
            else:
                win = x_ref[0, pl.ds(row0 + dy, stride * (rt - 1) + 1),
                            pl.ds(dx, stride * (wo - 1) + 1), :]
                tap = win[::stride, ::stride, :]
            part = jnp.dot(tap.reshape(rt_wo, cin), w_ref[dy * kw + dx],
                           preferred_element_type=jnp.float32)
            if dy == 0 and dx == 0:
                acc_ref[...] = part
            else:
                acc_ref[...] += part

    out = acc_ref[...] + sb_ref[...]                     # folded-BN shift (f32)
    # Drop the MXU lane padding here so HBM only ever sees the real channels.
    o_ref[0] = out[:, :cout].astype(o_ref.dtype)


def conv_bn(x_nchw, w_oihw, gamma, beta, mean, var, *,
            eps=1e-5, stride=1, pad=1):
    """Conv2d (no bias) followed by BatchNorm2d (running-stats / eval form)."""
    n, cin, h, w = x_nchw.shape
    cout, cin_w, kh, kw = w_oihw.shape
    assert cin == cin_w

    ho = (h + 2 * pad - kh) // stride + 1
    wo = (w + 2 * pad - kw) // stride + 1
    hp, wp = h + 2 * pad, w + 2 * pad
    cout_mxu = _round_up(cout, 128)             # MXU N width only; not stored to HBM
    dtype = x_nchw.dtype
    itemsize = jnp.dtype(dtype).itemsize

    # ---- fold BN: per-channel scale into the weights, shift as a vector ----
    scale = (gamma / jnp.sqrt(var + eps)).astype(jnp.float32)          # (Cout,)
    shift = (beta.astype(jnp.float32) - mean.astype(jnp.float32) * scale)

    # ---- one-time layout work (channels on the lane axis) ------------------
    x_nhwc = jnp.transpose(x_nchw, (0, 2, 3, 1))
    x_pad = jnp.pad(x_nhwc, ((0, 0), (pad, pad), (pad, pad), (0, 0)))

    # Per-tap weights (Kh*Kw, Cin, CoutMXU), BN scale folded, kept in the
    # input/compute dtype (bf16 inputs -> bf16 weights); accumulation is f32.
    w_hwio = jnp.transpose(w_oihw, (2, 3, 1, 0)).astype(jnp.float32) * scale
    w3d = w_hwio.reshape(kh * kw, cin, cout)
    w3d = jnp.pad(w3d, ((0, 0), (0, 0), (0, cout_mxu - cout))).astype(dtype)
    shift_p = jnp.pad(shift, (0, cout_mxu - cout)).reshape(1, cout_mxu)

    budget, vmem_limit = _vmem_budget_and_limit()
    row_tile = _pick_row_tile(n, ho, hp, wp, cin, wo, cout, kh, kw, dtype,
                              budget, _num_tensorcores())
    grid = (n, ho // row_tile)

    flops = 2 * n * ho * wo * cout * kh * kw * cin
    bytes_accessed = int(n * hp * wp * cin * itemsize
                         + w3d.size * itemsize + shift_p.size * 4
                         + n * ho * wo * cout * itemsize)

    out_flat = pl.pallas_call(
        functools.partial(_conv_bn_kernel, stride=stride, kh=kh, kw=kw,
                          cin=cin, wo=wo),
        out_shape=jax.ShapeDtypeStruct((n, ho * wo, cout), dtype),
        grid_spec=pltpu.PrefetchScalarGridSpec(
            num_scalar_prefetch=0,
            grid=grid,
            in_specs=[
                pl.BlockSpec((1, hp, wp, cin), lambda b, r: (b, 0, 0, 0)),
                pl.BlockSpec((kh * kw, cin, cout_mxu), lambda b, r: (0, 0, 0)),
                pl.BlockSpec((1, cout_mxu), lambda b, r: (0, 0)),
            ],
            out_specs=pl.BlockSpec((1, row_tile * wo, cout),
                                   lambda b, r: (b, r, 0)),
            scratch_shapes=[pltpu.VMEM((row_tile * wo, cout_mxu), jnp.float32)],
        ),
        compiler_params=pltpu.CompilerParams(
            dimension_semantics=("parallel", "parallel"),
            vmem_limit_bytes=int(vmem_limit)),
        cost_estimate=pl.CostEstimate(
            flops=flops, transcendentals=0, bytes_accessed=bytes_accessed),
    )(x_pad, w3d, shift_p)

    # (N, Ho*Wo, Cout) -> NCHW to match the PyTorch module (no channel padding
    # was ever written to HBM, so there is nothing to slice off).
    out_nhwc = out_flat.reshape(n, ho, wo, cout)
    return jnp.transpose(out_nhwc, (0, 3, 1, 2))


if __name__ == "__main__":
    key = jax.random.PRNGKey(0)
    kx, kw_, kg, kb, km, kv = jax.random.split(key, 6)

    # Small shapes consistent with the module: batch=2, Cin=4, 16x16, Cout=8.
    N, CIN, H, W = 2, 4, 16, 16
    COUT, K = 8, 3
    EPS = 1e-5

    x = jax.random.normal(kx, (N, CIN, H, W), dtype=jnp.float32)
    fan_in = CIN * K * K
    bound = (1.0 / fan_in) ** 0.5
    wgt = jax.random.uniform(kw_, (COUT, CIN, K, K), dtype=jnp.float32,
                             minval=-bound, maxval=bound)
    # BatchNorm2d parameters / running statistics (eval-mode BN).
    gamma = jax.random.uniform(kg, (COUT,), dtype=jnp.float32,
                               minval=0.5, maxval=1.5)
    beta = 0.1 * jax.random.normal(kb, (COUT,), dtype=jnp.float32)
    run_mean = 0.1 * jax.random.normal(km, (COUT,), dtype=jnp.float32)
    run_var = jax.random.uniform(kv, (COUT,), dtype=jnp.float32,
                                 minval=0.5, maxval=1.5)

    y = conv_bn(x, wgt, gamma, beta, run_mean, run_var,
                eps=EPS, stride=1, pad=1)
    y = jax.block_until_ready(y)

    # Reference: XLA conv + the same (running-stats) BatchNorm affine.
    ref = jax.lax.conv_general_dilated(
        x, wgt, window_strides=(1, 1), padding=((1, 1), (1, 1)),
        dimension_numbers=("NCHW", "OIHW", "NCHW"))
    s = gamma / jnp.sqrt(run_var + EPS)
    ref = ref * s[None, :, None, None] + (beta - run_mean * s)[None, :, None, None]

    assert y.shape == (N, COUT, H, W)
    assert jnp.allclose(y, ref, atol=1e-4, rtol=1e-4), \
        float(jnp.max(jnp.abs(y - ref)))

    print("KERNEL_OK")
</pallas_src>

<mosaic_0001>
module attributes {stable_mosaic.version = 11 : i64} {
  func.func @_conv_bn_kernel(%arg0: i32, %arg1: i32, %arg2: memref<1x18x18x4xf32, #tpu.memory_space<vmem>>, %arg3: memref<9x4x128xf32, #tpu.memory_space<vmem>>, %arg4: memref<1x128xf32, #tpu.memory_space<vmem>>, %arg5: memref<1x256x8xf32, #tpu.memory_space<vmem>>, %arg6: memref<256x128xf32, #tpu.memory_space<vmem>>) attributes {dimension_semantics = [#tpu.dimension_semantics<parallel>, #tpu.dimension_semantics<parallel>], iteration_bounds = array<i64: 2, 1>, scalar_prefetch = 0 : i64, scratch_operands = 1 : i64, tpu.core_type = #tpu.core_type<tc>, window_params = [{transform_indices = @transform_0, window_bounds = array<i64: 1, 18, 18, 4>}, {pipeline_mode = #tpu.pipeline_mode<synchronous>, transform_indices = @transform_1, window_bounds = array<i64: 9, 4, 128>}, {pipeline_mode = #tpu.pipeline_mode<synchronous>, transform_indices = @transform_2, window_bounds = array<i64: 1, 128>}, {transform_indices = @transform_3, window_bounds = array<i64: 1, 256, 8>}]} {
    %c16_i32 = arith.constant 16 : i32
    %0 = arith.muli %arg1, %c16_i32 : i32
    %1 = tpu.assume_multiple %0, 16 : i32
    %c0_i32 = arith.constant 0 : i32
    %2 = arith.addi %1, %c0_i32 : i32
    %c0 = arith.constant 0 : index
    %3 = arith.index_cast %2 : i32 to index
    %c0_0 = arith.constant 0 : index
    %c0_1 = arith.constant 0 : index
    %4 = vector.load %arg2[%c0, %3, %c0_0, %c0_1] : memref<1x18x18x4xf32, #tpu.memory_space<vmem>>, vector<1x16x16x4xf32>
    %5 = vector.shape_cast %4 : vector<1x16x16x4xf32> to vector<16x16x4xf32>
    %6 = vector.shape_cast %5 : vector<16x16x4xf32> to vector<256x4xf32>
    %c0_2 = arith.constant 0 : index
    %c0_3 = arith.constant 0 : index
    %c0_4 = arith.constant 0 : index
    %7 = vector.load %arg3[%c0_2, %c0_3, %c0_4] : memref<9x4x128xf32, #tpu.memory_space<vmem>>, vector<1x4x128xf32>
    %8 = vector.shape_cast %7 : vector<1x4x128xf32> to vector<4x128xf32>
    %cst = arith.constant dense<0.000000e+00> : vector<256x128xf32>
    %9 = tpu.matmul %6, %8, %cst {dimension_numbers = #tpu.dot_dimension_numbers<[1], [0], [0], [1], [0, 0, 1, 1], [], []>} : vector<256x4xf32>, vector<4x128xf32>, vector<256x128xf32> -> vector<256x128xf32>
    %c0_5 = arith.constant 0 : index
    %c0_6 = arith.constant 0 : index
    %10 = vector.load %arg6[%c0_5, %c0_6] : memref<256x128xf32, #tpu.memory_space<vmem>>, vector<256x128xf32>
    tpu.vector_store %arg6[%c0_5, %c0_6], %9 {strides = array<i32>} : memref<256x128xf32, #tpu.memory_space<vmem>>, vector<256x128xf32>,
    %c0_i32_7 = arith.constant 0 : i32
    %11 = arith.addi %1, %c0_i32_7 : i32
    %c0_8 = arith.constant 0 : index
    %12 = arith.index_cast %11 : i32 to index
    %c1 = arith.constant 1 : index
    %c0_9 = arith.constant 0 : index
    %13 = vector.load %arg2[%c0_8, %12, %c1, %c0_9] : memref<1x18x18x4xf32, #tpu.memory_space<vmem>>, vector<1x16x16x4xf32>
    %14 = vector.shape_cast %13 : vector<1x16x16x4xf32> to vector<16x16x4xf32>
    %15 = vector.shape_cast %14 : vector<16x16x4xf32> to vector<256x4xf32>
    %c1_10 = arith.constant 1 : index
    %c0_11 = arith.constant 0 : index
    %c0_12 = arith.constant 0 : index
    %16 = vector.load %arg3[%c1_10, %c0_11, %c0_12] : memref<9x4x128xf32, #tpu.memory_space<vmem>>, vector<1x4x128xf32>
    %17 = vector.shape_cast %16 : vector<1x4x128xf32> to vector<4x128xf32>
    %cst_13 = arith.constant dense<0.000000e+00> : vector<256x128xf32>
    %18 = tpu.matmul %15, %17, %cst_13 {dimension_numbers = #tpu.dot_dimension_numbers<[1], [0], [0], [1], [0, 0, 1, 1], [], []>} : vector<256x4xf32>, vector<4x128xf32>, vector<256x128xf32> -> vector<256x128xf32>
    %c0_14 = arith.constant 0 : index
    %c0_15 = arith.constant 0 : index
    %19 = vector.load %arg6[%c0_14, %c0_15] : memref<256x128xf32, #tpu.memory_space<vmem>>, vector<256x128xf32>
    %20 = arith.addf %19, %18 : vector<256x128xf32>
    %c0_16 = arith.constant 0 : index
    %c0_17 = arith.constant 0 : index
    %21 = vector.load %arg6[%c0_16, %c0_17] : memref<256x128xf32, #tpu.memory_space<vmem>>, vector<256x128xf32>
    tpu.vector_store %arg6[%c0_16, %c0_17], %20 {strides = array<i32>} : memref<256x128xf32, #tpu.memory_space<vmem>>, vector<256x128xf32>,
    %c0_i32_18 = arith.constant 0 : i32
    %22 = arith.addi %1, %c0_i32_18 : i32
    %c0_19 = arith.constant 0 : index
    %23 = arith.index_cast %22 : i32 to index
    %c2 = arith.constant 2 : index
    %c0_20 = arith.constant 0 : index
    %24 = vector.load %arg2[%c0_19, %23, %c2, %c0_20] : memref<1x18x18x4xf32, #tpu.memory_space<vmem>>, vector<1x16x16x4xf32>
    %25 = vector.shape_cast %24 : vector<1x16x16x4xf32> to vector<16x16x4xf32>
    %26 = vector.shape_cast %25 : vector<16x16x4xf32> to vector<256x4xf32>
    %c2_21 = arith.constant 2 : index
    %c0_22 = arith.constant 0 : index
    %c0_23 = arith.constant 0 : index
    %27 = vector.load %arg3[%c2_21, %c0_22, %c0_23] : memref<9x4x128xf32, #tpu.memory_space<vmem>>, vector<1x4x128xf32>
    %28 = vector.shape_cast %27 : vector<1x4x128xf32> to vector<4x128xf32>
    %cst_24 = arith.constant dense<0.000000e+00> : vector<256x128xf32>
    %29 = tpu.matmul %26, %28, %cst_24 {dimension_numbers = #tpu.dot_dimension_numbers<[1], [0], [0], [1], [0, 0, 1, 1], [], []>} : vector<256x4xf32>, vector<4x128xf32>, vector<256x128xf32> -> vector<256x128xf32>
    %c0_25 = arith.constant 0 : index
    %c0_26 = arith.constant 0 : index
    %30 = vector.load %arg6[%c0_25, %c0_26] : memref<256x128xf32, #tpu.memory_space<vmem>>, vector<256x128xf32>
    %31 = arith.addf %30, %29 : vector<256x128xf32>
    %c0_27 = arith.constant 0 : index
    %c0_28 = arith.constant 0 : index
    %32 = vector.load %arg6[%c0_27, %c0_28] : memref<256x128xf32, #tpu.memory_space<vmem>>, vector<256x128xf32>
    tpu.vector_store %arg6[%c0_27, %c0_28], %31 {strides = array<i32>} : memref<256x128xf32, #tpu.memory_space<vmem>>, vector<256x128xf32>,
    %c1_i32 = arith.constant 1 : i32
    %33 = arith.addi %1, %c1_i32 : i32
    %c0_29 = arith.constant 0 : index
    %34 = arith.index_cast %33 : i32 to index
    %c0_30 = arith.constant 0 : index
    %c0_31 = arith.constant 0 : index
    %35 = vector.load %arg2[%c0_29, %34, %c0_30, %c0_31] : memref<1x18x18x4xf32, #tpu.memory_space<vmem>>, vector<1x16x16x4xf32>
    %36 = vector.shape_cast %35 : vector<1x16x16x4xf32> to vector<16x16x4xf32>
    %37 = vector.shape_cast %36 : vector<16x16x4xf32> to vector<256x4xf32>
    %c3 = arith.constant 3 : index
    %c0_32 = arith.constant 0 : index
    %c0_33 = arith.constant 0 : index
    %38 = vector.load %arg3[%c3, %c0_32, %c0_33] : memref<9x4x128xf32, #tpu.memory_space<vmem>>, vector<1x4x128xf32>
    %39 = vector.shape_cast %38 : vector<1x4x128xf32> to vector<4x128xf32>
    %cst_34 = arith.constant dense<0.000000e+00> : vector<256x128xf32>
    %40 = tpu.matmul %37, %39, %cst_34 {dimension_numbers = #tpu.dot_dimension_numbers<[1], [0], [0], [1], [0, 0, 1, 1], [], []>} : vector<256x4xf32>, vector<4x128xf32>, vector<256x128xf32> -> vector<256x128xf32>
    %c0_35 = arith.constant 0 : index
    %c0_36 = arith.constant 0 : index
    %41 = vector.load %arg6[%c0_35, %c0_36] : memref<256x128xf32, #tpu.memory_space<vmem>>, vector<256x128xf32>
    %42 = arith.addf %41, %40 : vector<256x128xf32>
    %c0_37 = arith.constant 0 : index
    %c0_38 = arith.constant 0 : index
    %43 = vector.load %arg6[%c0_37, %c0_38] : memref<256x128xf32, #tpu.memory_space<vmem>>, vector<256x128xf32>
    tpu.vector_store %arg6[%c0_37, %c0_38], %42 {strides = array<i32>} : memref<256x128xf32, #tpu.memory_space<vmem>>, vector<256x128xf32>,
    %c1_i32_39 = arith.constant 1 : i32
    %44 = arith.addi %1, %c1_i32_39 : i32
    %c0_40 = arith.constant 0 : index
    %45 = arith.index_cast %44 : i32 to index
    %c1_41 = arith.constant 1 : index
    %c0_42 = arith.constant 0 : index
    %46 = vector.load %arg2[%c0_40, %45, %c1_41, %c0_42] : memref<1x18x18x4xf32, #tpu.memory_space<vmem>>, vector<1x16x16x4xf32>
    %47 = vector.shape_cast %46 : vector<1x16x16x4xf32> to vector<16x16x4xf32>
    %48 = vector.shape_cast %47 : vector<16x16x4xf32> to vector<256x4xf32>
    %c4 = arith.constant 4 : index
    %c0_43 = arith.constant 0 : index
    %c0_44 = arith.constant 0 : index
    %49 = vector.load %arg3[%c4, %c0_43, %c0_44] : memref<9x4x128xf32, #tpu.memory_space<vmem>>, vector<1x4x128xf32>
    %50 = vector.shape_cast %49 : vector<1x4x128xf32> to vector<4x128xf32>
    %cst_45 = arith.constant dense<0.000000e+00> : vector<256x128xf32>
    %51 = tpu.matmul %48, %50, %cst_45 {dimension_numbers = #tpu.dot_dimension_numbers<[1], [0], [0], [1], [0, 0, 1, 1], [], []>} : vector<256x4xf32>, vector<4x128xf32>, vector<256x128xf32> -> vector<256x128xf32>
    %c0_46 = arith.constant 0 : index
    %c0_47 = arith.constant 0 : index
    %52 = vector.load %arg6[%c0_46, %c0_47] : memref<256x128xf32, #tpu.memory_space<vmem>>, vector<256x128xf32>
    %53 = arith.addf %52, %51 : vector<256x128xf32>
    %c0_48 = arith.constant 0 : index
    %c0_49 = arith.constant 0 : index
    %54 = vector.load %arg6[%c0_48, %c0_49] : memref<256x128xf32, #tpu.memory_space<vmem>>, vector<256x128xf32>
    tpu.vector_store %arg6[%c0_48, %c0_49], %53 {strides = array<i32>} : memref<256x128xf32, #tpu.memory_space<vmem>>, vector<256x128xf32>,
    %c1_i32_50 = arith.constant 1 : i32
    %55 = arith.addi %1, %c1_i32_50 : i32
    %c0_51 = arith.constant 0 : index
    %56 = arith.index_cast %55 : i32 to index
    %c2_52 = arith.constant 2 : index
    %c0_53 = arith.constant 0 : index
    %57 = vector.load %arg2[%c0_51, %56, %c2_52, %c0_53] : memref<1x18x18x4xf32, #tpu.memory_space<vmem>>, vector<1x16x16x4xf32>
    %58 = vector.shape_cast %57 : vector<1x16x16x4xf32> to vector<16x16x4xf32>
    %59 = vector.shape_cast %58 : vector<16x16x4xf32> to vector<256x4xf32>
    %c5 = arith.constant 5 : index
    %c0_54 = arith.constant 0 : index
    %c0_55 = arith.constant 0 : index
    %60 = vector.load %arg3[%c5, %c0_54, %c0_55] : memref<9x4x128xf32, #tpu.memory_space<vmem>>, vector<1x4x128xf32>
    %61 = vector.shape_cast %60 : vector<1x4x128xf32> to vector<4x128xf32>
    %cst_56 = arith.constant dense<0.000000e+00> : vector<256x128xf32>
    %62 = tpu.matmul %59, %61, %cst_56 {dimension_numbers = #tpu.dot_dimension_numbers<[1], [0], [0], [1], [0, 0, 1, 1], [], []>} : vector<256x4xf32>, vector<4x128xf32>, vector<256x128xf32> -> vector<256x128xf32>
    %c0_57 = arith.constant 0 : index
    %c0_58 = arith.constant 0 : index
    %63 = vector.load %arg6[%c0_57, %c0_58] : memref<256x128xf32, #tpu.memory_space<vmem>>, vector<256x128xf32>
    %64 = arith.addf %63, %62 : vector<256x128xf32>
    %c0_59 = arith.constant 0 : index
    %c0_60 = arith.constant 0 : index
    %65 = vector.load %arg6[%c0_59, %c0_60] : memref<256x128xf32, #tpu.memory_space<vmem>>, vector<256x128xf32>
    tpu.vector_store %arg6[%c0_59, %c0_60], %64 {strides = array<i32>} : memref<256x128xf32, #tpu.memory_space<vmem>>, vector<256x128xf32>,
    %c2_i32 = arith.constant 2 : i32
    %66 = arith.addi %1, %c2_i32 : i32
    %c0_61 = arith.constant 0 : index
    %67 = arith.index_cast %66 : i32 to index
    %c0_62 = arith.constant 0 : index
    %c0_63 = arith.constant 0 : index
    %68 = vector.load %arg2[%c0_61, %67, %c0_62, %c0_63] : memref<1x18x18x4xf32, #tpu.memory_space<vmem>>, vector<1x16x16x4xf32>
    %69 = vector.shape_cast %68 : vector<1x16x16x4xf32> to vector<16x16x4xf32>
    %70 = vector.shape_cast %69 : vector<16x16x4xf32> to vector<256x4xf32>
    %c6 = arith.constant 6 : index
    %c0_64 = arith.constant 0 : index
    %c0_65 = arith.constant 0 : index
    %71 = vector.load %arg3[%c6, %c0_64, %c0_65] : memref<9x4x128xf32, #tpu.memory_space<vmem>>, vector<1x4x128xf32>
    %72 = vector.shape_cast %71 : vector<1x4x128xf32> to vector<4x128xf32>
    %cst_66 = arith.constant dense<0.000000e+00> : vector<256x128xf32>
    %73 = tpu.matmul %70, %72, %cst_66 {dimension_numbers = #tpu.dot_dimension_numbers<[1], [0], [0], [1], [0, 0, 1, 1], [], []>} : vector<256x4xf32>, vector<4x128xf32>, vector<256x128xf32> -> vector<256x128xf32>
    %c0_67 = arith.constant 0 : index
    %c0_68 = arith.constant 0 : index
    %74 = vector.load %arg6[%c0_67, %c0_68] : memref<256x128xf32, #tpu.memory_space<vmem>>, vector<256x128xf32>
    %75 = arith.addf %74, %73 : vector<256x128xf32>
    %c0_69 = arith.constant 0 : index
    %c0_70 = arith.constant 0 : index
    %76 = vector.load %arg6[%c0_69, %c0_70] : memref<256x128xf32, #tpu.memory_space<vmem>>, vector<256x128xf32>
    tpu.vector_store %arg6[%c0_69, %c0_70], %75 {strides = array<i32>} : memref<256x128xf32, #tpu.memory_space<vmem>>, vector<256x128xf32>,
    %c2_i32_71 = arith.constant 2 : i32
    %77 = arith.addi %1, %c2_i32_71 : i32
    %c0_72 = arith.constant 0 : index
    %78 = arith.index_cast %77 : i32 to index
    %c1_73 = arith.constant 1 : index
    %c0_74 = arith.constant 0 : index
    %79 = vector.load %arg2[%c0_72, %78, %c1_73, %c0_74] : memref<1x18x18x4xf32, #tpu.memory_space<vmem>>, vector<1x16x16x4xf32>
    %80 = vector.shape_cast %79 : vector<1x16x16x4xf32> to vector<16x16x4xf32>
    %81 = vector.shape_cast %80 : vector<16x16x4xf32> to vector<256x4xf32>
    %c7 = arith.constant 7 : index
    %c0_75 = arith.constant 0 : index
    %c0_76 = arith.constant 0 : index
    %82 = vector.load %arg3[%c7, %c0_75, %c0_76] : memref<9x4x128xf32, #tpu.memory_space<vmem>>, vector<1x4x128xf32>
    %83 = vector.shape_cast %82 : vector<1x4x128xf32> to vector<4x128xf32>
    %cst_77 = arith.constant dense<0.000000e+00> : vector<256x128xf32>
    %84 = tpu.matmul %81, %83, %cst_77 {dimension_numbers = #tpu.dot_dimension_numbers<[1], [0], [0], [1], [0, 0, 1, 1], [], []>} : vector<256x4xf32>, vector<4x128xf32>, vector<256x128xf32> -> vector<256x128xf32>
    %c0_78 = arith.constant 0 : index
    %c0_79 = arith.constant 0 : index
    %85 = vector.load %arg6[%c0_78, %c0_79] : memref<256x128xf32, #tpu.memory_space<vmem>>, vector<256x128xf32>
    %86 = arith.addf %85, %84 : vector<256x128xf32>
    %c0_80 = arith.constant 0 : index
    %c0_81 = arith.constant 0 : index
    %87 = vector.load %arg6[%c0_80, %c0_81] : memref<256x128xf32, #tpu.memory_space<vmem>>, vector<256x128xf32>
    tpu.vector_store %arg6[%c0_80, %c0_81], %86 {strides = array<i32>} : memref<256x128xf32, #tpu.memory_space<vmem>>, vector<256x128xf32>,
    %c2_i32_82 = arith.constant 2 : i32
    %88 = arith.addi %1, %c2_i32_82 : i32
    %c0_83 = arith.constant 0 : index
    %89 = arith.index_cast %88 : i32 to index
    %c2_84 = arith.constant 2 : index
    %c0_85 = arith.constant 0 : index
    %90 = vector.load %arg2[%c0_83, %89, %c2_84, %c0_85] : memref<1x18x18x4xf32, #tpu.memory_space<vmem>>, vector<1x16x16x4xf32>
    %91 = vector.shape_cast %90 : vector<1x16x16x4xf32> to vector<16x16x4xf32>
    %92 = vector.shape_cast %91 : vector<16x16x4xf32> to vector<256x4xf32>
    %c8 = arith.constant 8 : index
    %c0_86 = arith.constant 0 : index
    %c0_87 = arith.constant 0 : index
    %93 = vector.load %arg3[%c8, %c0_86, %c0_87] : memref<9x4x128xf32, #tpu.memory_space<vmem>>, vector<1x4x128xf32>
    %94 = vector.shape_cast %93 : vector<1x4x128xf32> to vector<4x128xf32>
    %cst_88 = arith.constant dense<0.000000e+00> : vector<256x128xf32>
    %95 = tpu.matmul %92, %94, %cst_88 {dimension_numbers = #tpu.dot_dimension_numbers<[1], [0], [0], [1], [0, 0, 1, 1], [], []>} : vector<256x4xf32>, vector<4x128xf32>, vector<256x128xf32> -> vector<256x128xf32>
    %c0_89 = arith.constant 0 : index
    %c0_90 = arith.constant 0 : index
    %96 = vector.load %arg6[%c0_89, %c0_90] : memref<256x128xf32, #tpu.memory_space<vmem>>, vector<256x128xf32>
    %97 = arith.addf %96, %95 : vector<256x128xf32>
    %c0_91 = arith.constant 0 : index
    %c0_92 = arith.constant 0 : index
    %98 = vector.load %arg6[%c0_91, %c0_92] : memref<256x128xf32, #tpu.memory_space<vmem>>, vector<256x128xf32>
    tpu.vector_store %arg6[%c0_91, %c0_92], %97 {strides = array<i32>} : memref<256x128xf32, #tpu.memory_space<vmem>>, vector<256x128xf32>,
    %c0_93 = arith.constant 0 : index
    %c0_94 = arith.constant 0 : index
    %99 = vector.load %arg6[%c0_93, %c0_94] : memref<256x128xf32, #tpu.memory_space<vmem>>, vector<256x128xf32>
    %c0_95 = arith.constant 0 : index
    %c0_96 = arith.constant 0 : index
    %100 = vector.load %arg4[%c0_95, %c0_96] : memref<1x128xf32, #tpu.memory_space<vmem>>, vector<1x128xf32>
    %101 = vector.broadcast %100 : vector<1x128xf32> to vector<256x128xf32>
    %102 = arith.addf %99, %101 : vector<256x128xf32>
    %103 = vector.extract_strided_slice %102 {offsets = [0, 0], sizes = [256, 8], strides = [1, 1]} : vector<256x128xf32> to vector<256x8xf32>
    %c0_97 = arith.constant 0 : index
    %c0_98 = arith.constant 0 : index
    %c0_99 = arith.constant 0 : index
    %104 = vector.load %arg5[%c0_97, %c0_98, %c0_99] : memref<1x256x8xf32, #tpu.memory_space<vmem>>, vector<1x256x8xf32>
    %105 = vector.shape_cast %104 : vector<1x256x8xf32> to vector<256x8xf32>
    %106 = vector.shape_cast %103 : vector<256x8xf32> to vector<1x256x8xf32>
    tpu.vector_store %arg5[%c0_97, %c0_98, %c0_99], %106 {strides = array<i32>} : memref<1x256x8xf32, #tpu.memory_space<vmem>>, vector<1x256x8xf32>,
    return
  }
  func.func @transform_0(%arg0: i32, %arg1: i32) -> (i32, i32, i32, i32) {
    %c0_i32 = arith.constant 0 : i32
    %c0_i32_0 = arith.constant 0 : i32
    %c0_i32_1 = arith.constant 0 : i32
    %c0_i32_2 = arith.constant 0 : i32
    return %arg0, %c0_i32, %c0_i32_0, %c0_i32_1 : i32, i32, i32, i32
  }
  func.func @transform_1(%arg0: i32, %arg1: i32) -> (i32, i32, i32) {
    %c0_i32 = arith.constant 0 : i32
    %c0_i32_0 = arith.constant 0 : i32
    %c0_i32_1 = arith.constant 0 : i32
    %c0_i32_2 = arith.constant 0 : i32
    return %c0_i32, %c0_i32_0, %c0_i32_1 : i32, i32, i32
  }
  func.func @transform_2(%arg0: i32, %arg1: i32) -> (i32, i32) {
    %c0_i32 = arith.constant 0 : i32
    %c0_i32_0 = arith.constant 0 : i32
    %c0_i32_1 = arith.constant 0 : i32
    return %c0_i32, %c0_i32_0 : i32, i32
  }
  func.func @transform_3(%arg0: i32, %arg1: i32) -> (i32, i32, i32) {
    %c0_i32 = arith.constant 0 : i32
    %c0_i32_0 = arith.constant 0 : i32
    return %arg0, %arg1, %c0_i32 : i32, i32, i32
  }
}

</mosaic_0001>

<llo_original>
// kernel: tpu_custom_call.1
$region0: #{tpu_custom_call.1}
  #allocation0 [shape = 'u32[]', space=smem, size = 0x4, offset = 0x4, fixed_abs, tag = 'smem constant byte address 0x4 - core index']
  #allocation1 [shape = 'u32[144,128]{1,0:T(1,128)}', space=vmem, size = 0x12000, scoped, tag = 'internal scratch']
  #allocation2 [shape = 'f32[256,128]{1,0:T(8,128)}', space=vmem, size = 0x20000, scoped, tag = 'scratch operand']
  %s0 = inlined_call_operand.vmem [shape: f32[2,18,18,4], index: 0, kind: input, shape index: {}]
  %s1 = inlined_call_operand.vmem [shape: f32[9,4,128], index: 1, kind: input, shape index: {}]
  %s2 = inlined_call_operand.vmem [shape: f32[1,128], index: 2, kind: input, shape index: {}]
  %s3 = inlined_call_operand.vmem [shape: f32[2,256,8], index: 3, kind: output, shape index: {}]
  %s4 = sld [smem:[#allocation0]]
  $region45: #{tpu_custom_call.1} parent=0
    _
  %s6 = ssub.s32 1, %s4
  %s7 = scalar_select 0, %s6, %s4
  loop: start=0, step=1, limit=4
  $region2: #{tpu_custom_call.1} parent=0 // loop_pre_header
    _
  $region3: #{tpu_custom_call.1} parent=0 // loop_header
    %s9 = sphi 0, %s13
    %p10 = scmp.ge.s32.totalorder %s9, 4
    %s16 = sphi 0, %s28
    %s17 = sphi 0, %s24
    %s18 = sphi 0, %s16
    %s19 = sphi 0, %s17
    %s20 = sphi 0, %s18
    %s21 = sphi 0, %s19
    %s31 = sphi 0, %s33
    %s34 = sphi 0, %s31
    %s35 = sphi 0, %s34
    %s51 = sphi 0, %s35
    %s55 = sphi 0, %s55
    %s57 = sphi 0, %s55
    %s58 = sphi 0, %s57
    %s72 = sphi 0, %s58
    %s76 = sphi 0, %s76
    %s78 = sphi 0, %s76
    %s79 = sphi 0, %s78
    %s93 = sphi 0, %s79
    %s101 = sphi 0, %s103
    %s104 = sphi 0, %s101
    %s105 = sphi 0, %s104
    %s121 = sphi 0, %s105
  $region4: #{tpu_custom_call.1} parent=0 // loop_header_branch
    %12 = sbr.rel (%p10) target = $region8
  $region5: #{tpu_custom_call.1} parent=0 // loop_body
    %s14 = ssub.s32 %s9, 1
    %s15 = ssub.s32 %s9, 2
    %s22 = sadd.s32 1, %s17
    %p23 = scmp.ge.s32.totalorder %s22, 1
    %s24 = scalar_select %p23, 0, %s22
    %s25 = sadd.s32 1, %s16
    %s26 = scalar_select %p23, %s25, %s16
    %p27 = scmp.ge.s32.totalorder %s26, 2
    %s28 = scalar_select %p27, 0, %s26
    %s29 = ssub.s32 %s16, %s28
    %p30 = scmp.eq.s32.totalorder %s29, 0
    %s32 = sadd.s32 %s31, 1
    %s33 = scalar_select %p30, %s31, %s32
    %p36 = pneg %p30
    %p37 = scmp.eq.s32.totalorder %s9, 1
    %p38 = por %p36, %p37
    %p39 = scmp.ne.s32.totalorder %s31, %s34
    %p40 = scmp.eq.s32.totalorder %s9, 0
    %p41 = por %p39, %p40
    %p42 = scmp.ne.s32.totalorder %s31, %s34
    %p43 = scmp.eq.s32.totalorder %s14, 1
    %p44 = por %p42, %p43
    %p45 = scmp.ne.s32.totalorder %s34, %s35
    %p46 = scmp.eq.s32.totalorder %s14, 0
    %p47 = por %p45, %p46
    %p48 = scmp.ne.s32.totalorder %s34, %s35
    %p49 = scmp.eq.s32.totalorder %s15, 1
    %p50 = por %p48, %p49
    %p52 = scmp.ne.s32.totalorder %s35, %s51
    %p53 = scmp.eq.s32.totalorder %s15, 0
    %p54 = por %p52, %p53
    %s56 = sadd.s32 %s55, 1
    %p59 = scmp.eq.s32.totalorder %s9, 1
    %p60 = scmp.ne.s32.totalorder %s55, %s57
    %p61 = scmp.eq.s32.totalorder %s9, 0
    %p62 = por %p60, %p61
    %p63 = scmp.ne.s32.totalorder %s55, %s57
    %p64 = scmp.eq.s32.totalorder %s14, 1
    %p65 = por %p63, %p64
    %p66 = scmp.ne.s32.totalorder %s57, %s58
    %p67 = scmp.eq.s32.totalorder %s14, 0
    %p68 = por %p66, %p67
    %p69 = scmp.ne.s32.totalorder %s57, %s58
    %p70 = scmp.eq.s32.totalorder %s15, 1
    %p71 = por %p69, %p70
    %p73 = scmp.ne.s32.totalorder %s58, %s72
    %p74 = scmp.eq.s32.totalorder %s15, 0
    %p75 = por %p73, %p74
    %s77 = sadd.s32 %s76, 1
    %p80 = scmp.eq.s32.totalorder %s9, 1
    %p81 = scmp.ne.s32.totalorder %s76, %s78
    %p82 = scmp.eq.s32.totalorder %s9, 0
    %p83 = por %p81, %p82
    %p84 = scmp.ne.s32.totalorder %s76, %s78
    %p85 = scmp.eq.s32.totalorder %s14, 1
    %p86 = por %p84, %p85
    %p87 = scmp.ne.s32.totalorder %s78, %s79
    %p88 = scmp.eq.s32.totalorder %s14, 0
    %p89 = por %p87, %p88
    %p90 = scmp.ne.s32.totalorder %s78, %s79
    %p91 = scmp.eq.s32.totalorder %s15, 1
    %p92 = por %p90, %p91
    %p94 = scmp.ne.s32.totalorder %s79, %s93
    %p95 = scmp.eq.s32.totalorder %s15, 0
    %p96 = por %p94, %p95
    %s97 = ssub.s32 %s16, %s28
    %s98 = ssub.s32 %s17, %s24
    %s99 = sor.u32 %s97, %s98
    %p100 = scmp.eq.s32.totalorder %s99, 0
    %s102 = sadd.s32 %s101, 1
    %s103 = scalar_select %p100, %s101, %s102
    %p106 = pneg %p100
    %p107 = scmp.eq.s32.totalorder %s9, 1
    %p108 = por %p106, %p107
    %p109 = scmp.ne.s32.totalorder %s101, %s104
    %p110 = scmp.eq.s32.totalorder %s9, 0
    %p111 = por %p109, %p110
    %p112 = scmp.ne.s32.totalorder %s101, %s104
    %p113 = scmp.eq.s32.totalorder %s14, 1
    %p114 = por %p112, %p113
    %p115 = scmp.ne.s32.totalorder %s104, %s105
    %p116 = scmp.eq.s32.totalorder %s14, 0
    %p117 = por %p115, %p116
    %p118 = scmp.ne.s32.totalorder %s104, %s105
    %p119 = scmp.eq.s32.totalorder %s15, 1
    %p120 = por %p118, %p119
    %p122 = scmp.ne.s32.totalorder %s105, %s121
    %p123 = scmp.eq.s32.totalorder %s15, 0
    %p124 = por %p122, %p123
    %p125 = scmp.le.s32.totalorder 1, %s9
    %p126 = scmp.lt.s32.totalorder %s9, 3
    %p127 = pnand %p125, %p126
    %p128 = pneg %p127
    // Predicated region
    $region9: #{tpu_custom_call.1} parent=5 // pred_check
      _
    $region10: #{tpu_custom_call.1} parent=5 // pred_check_branch
      %130 = sbr.rel (%p127) target = $region12
    $region11: #{tpu_custom_call.1} parent=5 // pred_region
      %s131 = ssub.s32 %s9, 1
      // Predicated region
      $region13: #{tpu_custom_call.1} parent=11 // pred_check
        %p132 = pneg %p68
      $region14: #{tpu_custom_call.1} parent=11 // pred_check_branch
        %134 = sbr.rel (%p132) target = $region16
      $region15: #{tpu_custom_call.1} parent=11 // pred_region
        _
      $region16: #{tpu_custom_call.1} parent=11 // pred_fallthru
        _
      // Predicated region
      $region17: #{tpu_custom_call.1} parent=11 // pred_check
        %p135 = pneg %p89
      $region18: #{tpu_custom_call.1} parent=11 // pred_check_branch
        %137 = sbr.rel (%p135) target = $region20
      $region19: #{tpu_custom_call.1} parent=11 // pred_region
        _
      $region20: #{tpu_custom_call.1} parent=11 // pred_fallthru
        _
    $region12: #{tpu_custom_call.1} parent=5 // pred_fallthru
      _
    %p138 = scmp.lt.s32.totalorder %s9, 2
    // Predicated region
    $region21: #{tpu_custom_call.1} parent=5 // pred_check
      %p139 = pneg %p138
    $region22: #{tpu_custom_call.1} parent=5 // pred_check_branch
      %141 = sbr.rel (%p139) target = $region24
    $region23: #{tpu_custom_call.1} parent=5 // pred_region
      // Predicated region
      $region25: #{tpu_custom_call.1} parent=23 // pred_check
        %p142 = pneg %p41
      $region26: #{tpu_custom_call.1} parent=23 // pred_check_branch
        %144 = sbr.rel (%p142) target = $region28
      $region27: #{tpu_custom_call.1} parent=23 // pred_region
        %p145 = scmp.lt.s32.totalorder %s16, 1
        %s146 = scalar_select %p145, %s16, 1
        %s147 = smul.addr %s146, 54
        %s148 = smul.addr %s147, 8
        %s149 = scalar_lea.vmem %s0, %s148
      $region28: #{tpu_custom_call.1} parent=23 // pred_fallthru
        _
    $region24: #{tpu_custom_call.1} parent=5 // pred_fallthru
      _
    %p150 = scmp.le.s32.totalorder 1, %s9
    %p151 = scmp.lt.s32.totalorder %s9, 3
    %p152 = pnand %p150, %p151
    %p153 = pneg %p152
    // Predicated region
    $region29: #{tpu_custom_call.1} parent=5 // pred_check
      _
    $region30: #{tpu_custom_call.1} parent=5 // pred_check_branch
      %155 = sbr.rel (%p152) target = $region32
    $region31: #{tpu_custom_call.1} parent=5 // pred_region
      %s156 = ssub.s32 %s9, 1
      %p157 = scmp.lt.s32.totalorder %s18, 1
      %s158 = scalar_select %p157, %s18, 1
      %s159 = smul.addr %s158, 54
      %s160 = smul.addr %s159, 8
      %s161 = scalar_lea.vmem %s0, %s160
      %p162 = pneg %p47
      %p163 = pneg %p44
      %p164 = pneg %p68
      %p165 = pneg %p65
      %p166 = pneg %p89
      %p167 = pneg %p86
      %p168 = pneg %p117
      %p169 = pneg %p114
      %s170 = smul.u32 32, %s19
      %p171 = scmp.lt.s32.totalorder %s18, 1
      %s172 = scalar_select %p171, %s18, 1
      %p173 = scmp.lt.s32.totalorder %s170, 31
      %s174 = scalar_select %p173, %s170, 31
      %s175 = smul.addr %s172, 32
      %s176 = sadd.s32 %s174, %s175
      %s177 = smul.addr %s176, 8
      %s178 = scalar_lea.vmem %s3, %s177
      %p179 = scmp.lt.s32.totalorder %s18, 1
      %s180 = scalar_select %p179, %s18, 1
      %s181 = smul.addr %s180, 54
      %s182 = smul.addr %s181, 8
      %s183 = scalar_lea.vmem %s0, %s182
      %s184 = smul.u32 32, %s19
      %p185 = scmp.lt.s32.totalorder %s18, 1
      %s186 = scalar_select %p185, %s18, 1
      %p187 = scmp.lt.s32.totalorder %s184, 31
      %s188 = scalar_select %p187, %s184, 31
      %s189 = smul.addr %s186, 32
      %s190 = sadd.s32 %s188, %s189
      %s191 = smul.addr %s190, 8
      %s192 = scalar_lea.vmem %s3, %s191
      %s193 = smul.u32 32, %s19
      %s194 = smul.u32 %s19, 16
      %s195 = smul.u32 %s194, 24
      %s196 = scalar_lea.vmem %s183, %s195
      %v197 = vld [vmem:[%s196] sm:$0xff]
      %v198 = vld [vmem:[%s196 + $0x8] sm:$0xff]
      %v199 = vld [vmem:[%s196 + $0x18] sm:$0xff]
      %v200 = vld [vmem:[%s196 + $0x20] sm:$0xff]
      %v201 = vld [vmem:[%s196 + $0x30] sm:$0xff]
      %v202 = vld [vmem:[%s196 + $0x38] sm:$0xff]
      %v203 = vld [vmem:[%s196 + $0x48] sm:$0xff]
      %v204 = vld [vmem:[%s196 + $0x50] sm:$0xff]
      %v205 = vld [vmem:[%s196 + $0x60] sm:$0xff]
      %v206 = vld [vmem:[%s196 + $0x68] sm:$0xff]
      %v207 = vld [vmem:[%s196 + $0x78] sm:$0xff]
      %v208 = vld [vmem:[%s196 + $0x80] sm:$0xff]
      %v209 = vld [vmem:[%s196 + $0x90] sm:$0xff]
      %v210 = vld [vmem:[%s196 + $0x98] sm:$0xff]
      %v211 = vld [vmem:[%s196 + $0xa8] sm:$0xff]
      %v212 = vld [vmem:[%s196 + $0xb0] sm:$0xff]
      %v213 = vld [vmem:[%s196 + $0xc0] sm:$0xff]
      %v214 = vld [vmem:[%s196 + $0xc8] sm:$0xff]
      %v215 = vld [vmem:[%s196 + $0xd8] sm:$0xff]
      %v216 = vld [vmem:[%s196 + $0xe0] sm:$0xff]
      %v217 = vld [vmem:[%s196 + $0xf0] sm:$0xff]
      %v218 = vld [vmem:[%s196 + $0xf8] sm:$0xff]
      %v219 = vld [vmem:[%s196 + $0x108] sm:$0xff]
      %v220 = vld [vmem:[%s196 + $0x110] sm:$0xff]
      %v221 = vld [vmem:[%s196 + $0x120] sm:$0xff]
      %v222 = vld [vmem:[%s196 + $0x128] sm:$0xff]
      %v223 = vld [vmem:[%s196 + $0x138] sm:$0xff]
      %v224 = vld [vmem:[%s196 + $0x140] sm:$0xff]
      %v225 = vld [vmem:[%s196 + $0x150] sm:$0xff]
      %v226 = vld [vmem:[%s196 + $0x158] sm:$0xff]
      %v227 = vld [vmem:[%s196 + $0x168] sm:$0xff]
      %v228 = vld [vmem:[%s196 + $0x170] sm:$0xff]
      %v229 = vld [vmem:[%s1] sm:$0xf]
      %vm230 = vcmask 31744
      %v232 = vsel %vm230, %v197, 0
      %v235 = vsel %vm230, %v198, 0
      %v238 = vsel %vm230, %v199, 0
      %v241 = vsel %vm230, %v200, 0
      %v244 = vsel %vm230, %v201, 0
      %v247 = vsel %vm230, %v202, 0
      %v250 = vsel %vm230, %v203, 0
      %v253 = vsel %vm230, %v204, 0
      %v256 = vsel %vm230, %v205, 0
      %v259 = vsel %vm230, %v206, 0
      %v262 = vsel %vm230, %v207, 0
      %v265 = vsel %vm230, %v208, 0
      %v268 = vsel %vm230, %v209, 0
      %v271 = vsel %vm230, %v210, 0
      %v274 = vsel %vm230, %v211, 0
      %v277 = vsel %vm230, %v212, 0
      %v280 = vsel %vm230, %v213, 0
      %v283 = vsel %vm230, %v214, 0
      %v286 = vsel %vm230, %v215, 0
      %v289 = vsel %vm230, %v216, 0
      %v292 = vsel %vm230, %v217, 0
      %v295 = vsel %vm230, %v218, 0
      %v298 = vsel %vm230, %v219, 0
      %v301 = vsel %vm230, %v220, 0
      %v304 = vsel %vm230, %v221, 0
      %v307 = vsel %vm230, %v222, 0
      %v310 = vsel %vm230, %v223, 0
      %v313 = vsel %vm230, %v224, 0
      %v316 = vsel %vm230, %v225, 0
      %v319 = vsel %vm230, %v226, 0
      %v322 = vsel %vm230, %v227, 0
      %v325 = vsel %vm230, %v228, 0
      %vm327 = vcmask 1043456
      %v329 = vsel %vm327, %v229, 0
      %331 = vmatprep.subr.mxu0 0.0
      %332 = vmatpush1.msra.mxu0 %v329
      %333 = vmatprep.subr.mxu0 0.0
      %334 = vmatpush1.msra.mxu0 0.0
      %335 = vmatprep.subr.mxu0 0.0
      %336 = vmatpush1.msra.mxu0 0.0
      %337 = vmatprep.subr.mxu0 0.0
      %338 = vmatpush1.msra.mxu0 0.0
      %339 = vmatprep.subr.mxu0 0.0
      %340 = vmatpush1.msra.mxu0 0.0
      %341 = vmatprep.subr.mxu0 0.0
      %342 = vmatpush1.msra.mxu0 0.0
      %343 = vmatprep.subr.mxu0 0.0
      %344 = vmatpush1.msra.mxu0 0.0
      %345 = vmatprep.subr.mxu0 0.0
      %346 = vmatpush1.msra.mxu0 0.0
      %347 = vmatprep.subr.mxu0 0.0
      %348 = vmatpush1.msra.mxu0 0.0
      %349 = vmatprep.subr.mxu0 0.0
      %350 = vmatpush1.msra.mxu0 0.0
      %351 = vmatprep.subr.mxu0 0.0
      %352 = vmatpush1.msra.mxu0 0.0
      %353 = vmatprep.subr.mxu0 0.0
      %354 = vmatpush1.msra.mxu0 0.0
      %355 = vmatprep.subr.mxu0 0.0
      %356 = vmatpush1.msra.mxu0 0.0
      %357 = vmatprep.subr.mxu0 0.0
      %358 = vmatpush1.msra.mxu0 0.0
      %359 = vmatprep.subr.mxu0 0.0
      %360 = vmatpush1.msra.mxu0 0.0
      %361 = vmatprep.subr.mxu0 0.0
      %362 = vmatpush1.msra.mxu0 0.0
      %363 = vmatprep.subr.mxu0 0.0
      %364 = vmatpush1.msra.mxu0 0.0
      %365 = vmatprep.subr.mxu0 0.0
      %366 = vmatpush1.msra.mxu0 0.0
      %367 = vmatprep.subr.mxu0 0.0
      %368 = vmatpush1.msra.mxu0 0.0
      %369 = vmatprep.subr.mxu0 0.0
      %370 = vmatpush1.msra.mxu0 0.0
      %371 = vmatprep.subr.mxu0 0.0
      %372 = vmatpush1.msra.mxu0 0.0
      %373 = vmatprep.subr.mxu0 0.0
      %374 = vmatpush1.msra.mxu0 0.0
      %375 = vmatprep.subr.mxu0 0.0
      %376 = vmatpush1.msra.mxu0 0.0
      %377 = vmatprep.subr.mxu0 0.0
      %378 = vmatpush1.msra.mxu0 0.0
      %379 = vmatprep.subr.mxu0 0.0
      %380 = vmatpush1.msra.mxu0 0.0
      %381 = vmatprep.subr.mxu0 0.0
      %382 = vmatpush1.msra.mxu0 0.0
      %383 = vmatprep.subr.mxu0 0.0
      %384 = vmatpush1.msra.mxu0 0.0
      %385 = vmatprep.subr.mxu0 0.0
      %386 = vmatpush1.msra.mxu0 0.0
      %387 = vmatprep.subr.mxu0 0.0
      %388 = vmatpush1.msra.mxu0 0.0
      %389 = vmatprep.subr.mxu0 0.0
      %390 = vmatpush1.msra.mxu0 0.0
      %391 = vmatprep.subr.mxu0 0.0
      %392 = vmatpush1.msra.mxu0 0.0
      %393 = vmatprep.subr.mxu0 0.0
      %394 = vmatpush1.msra.mxu0 0.0
      %395 = vmatprep.mubr.f32.mxu0 0.0
      %396 = vmatmul.mubr.f32.gmra.mrb[0].mxu0 %v232
      %v397 = vpop.f32.mrb[0].mxu0
      %v398 = vadd.f32 0.0, %v397
      %v399 = vpop.f32.mrb[0].mxu0
      %400 = vmatprep.mubr.f32.mxu0 0.0
      %401 = vmatmul.mubr.f32.gmra.mrb[0].mxu0 %v235
      %v402 = vpop.f32.mrb[0].mxu0
      %v403 = vadd.f32 0.0, %v402
      %v404 = vpop.f32.mrb[0].mxu0
      %405 = vmatprep.mubr.f32.mxu0 0.0
      %406 = vmatmul.mubr.f32.gmra.mrb[0].mxu0 %v238
      %v407 = vpop.f32.mrb[0].mxu0
      %v408 = vadd.f32 0.0, %v407
      %v409 = vpop.f32.mrb[0].mxu0
      %410 = vmatprep.mubr.f32.mxu0 0.0
      %411 = vmatmul.mubr.f32.gmra.mrb[0].mxu0 %v241
      %v412 = vpop.f32.mrb[0].mxu0
      %v413 = vadd.f32 0.0, %v412
      %v414 = vpop.f32.mrb[0].mxu0
      %415 = vmatprep.mubr.f32.mxu0 0.0
      %416 = vmatmul.mubr.f32.gmra.mrb[0].mxu0 %v244
      %v417 = vpop.f32.mrb[0].mxu0
      %v418 = vadd.f32 0.0, %v417
      %v419 = vpop.f32.mrb[0].mxu0
      %420 = vmatprep.mubr.f32.mxu0 0.0
      %421 = vmatmul.mubr.f32.gmra.mrb[0].mxu0 %v247
      %v422 = vpop.f32.mrb[0].mxu0
      %v423 = vadd.f32 0.0, %v422
      %v424 = vpop.f32.mrb[0].mxu0
      %425 = vmatprep.mubr.f32.mxu0 0.0
      %426 = vmatmul.mubr.f32.gmra.mrb[0].mxu0 %v250
      %v427 = vpop.f32.mrb[0].mxu0
      %v428 = vadd.f32 0.0, %v427
      %v429 = vpop.f32.mrb[0].mxu0
      %430 = vmatprep.mubr.f32.mxu0 0.0
      %431 = vmatmul.mubr.f32.gmra.mrb[0].mxu0 %v253
      %v432 = vpop.f32.mrb[0].mxu0
      %v433 = vadd.f32 0.0, %v432
      %v434 = vpop.f32.mrb[0].mxu0
      %435 = vmatprep.mubr.f32.mxu0 0.0
      %436 = vmatmul.mubr.f32.gmra.mrb[0].mxu0 %v256
      %v437 = vpop.f32.mrb[0].mxu0
      %v438 = vadd.f32 0.0, %v437
      %v439 = vpop.f32.mrb[0].mxu0
      %440 = vmatprep.mubr.f32.mxu0 0.0
      %441 = vmatmul.mubr.f32.gmra.mrb[0].mxu0 %v259
      %v442 = vpop.f32.mrb[0].mxu0
      %v443 = vadd.f32 0.0, %v442
      %v444 = vpop.f32.mrb[0].mxu0
      %445 = vmatprep.mubr.f32.mxu0 0.0
      %446 = vmatmul.mubr.f32.gmra.mrb[0].mxu0 %v262
      %v447 = vpop.f32.mrb[0].mxu0
      %v448 = vadd.f32 0.0, %v447
      %v449 = vpop.f32.mrb[0].mxu0
      %450 = vmatprep.mubr.f32.mxu0 0.0
      %451 = vmatmul.mubr.f32.gmra.mrb[0].mxu0 %v265
      %v452 = vpop.f32.mrb[0].mxu0
      %v453 = vadd.f32 0.0, %v452
      %v454 = vpop.f32.mrb[0].mxu0
      %455 = vmatprep.mubr.f32.mxu0 0.0
      %456 = vmatmul.mubr.f32.gmra.mrb[0].mxu0 %v268
      %v457 = vpop.f32.mrb[0].mxu0
      %v458 = vadd.f32 0.0, %v457
      %v459 = vpop.f32.mrb[0].mxu0
      %460 = vmatprep.mubr.f32.mxu0 0.0
      %461 = vmatmul.mubr.f32.gmra.mrb[0].mxu0 %v271
      %v462 = vpop.f32.mrb[0].mxu0
      %v463 = vadd.f32 0.0, %v462
      %v464 = vpop.f32.mrb[0].mxu0
      %465 = vmatprep.mubr.f32.mxu0 0.0
      %466 = vmatmul.mubr.f32.gmra.mrb[0].mxu0 %v274
      %v467 = vpop.f32.mrb[0].mxu0
      %v468 = vadd.f32 0.0, %v467
      %v469 = vpop.f32.mrb[0].mxu0
      %470 = vmatprep.mubr.f32.mxu0 0.0
      %471 = vmatmul.mubr.f32.gmra.mrb[0].mxu0 %v277
      %v472 = vpop.f32.mrb[0].mxu0
      %v473 = vadd.f32 0.0, %v472
      %v474 = vpop.f32.mrb[0].mxu0
      %475 = vmatprep.mubr.f32.mxu0 0.0
      %476 = vmatmul.mubr.f32.gmra.mrb[0].mxu0 %v280
      %v477 = vpop.f32.mrb[0].mxu0
      %v478 = vadd.f32 0.0, %v477
      %v479 = vpop.f32.mrb[0].mxu0
      %480 = vmatprep.mubr.f32.mxu0 0.0
      %481 = vmatmul.mubr.f32.gmra.mrb[0].mxu0 %v283
      %v482 = vpop.f32.mrb[0].mxu0
      %v483 = vadd.f32 0.0, %v482
      %v484 = vpop.f32.mrb[0].mxu0
      %485 = vmatprep.mubr.f32.mxu0 0.0
      %486 = vmatmul.mubr.f32.gmra.mrb[0].mxu0 %v286
      %v487 = vpop.f32.mrb[0].mxu0
      %v488 = vadd.f32 0.0, %v487
      %v489 = vpop.f32.mrb[0].mxu0
      %490 = vmatprep.mubr.f32.mxu0 0.0
      %491 = vmatmul.mubr.f32.gmra.mrb[0].mxu0 %v289
      %v492 = vpop.f32.mrb[0].mxu0
      %v493 = vadd.f32 0.0, %v492
      %v494 = vpop.f32.mrb[0].mxu0
      %495 = vmatprep.mubr.f32.mxu0 0.0
      %496 = vmatmul.mubr.f32.gmra.mrb[0].mxu0 %v292
      %v497 = vpop.f32.mrb[0].mxu0
      %v498 = vadd.f32 0.0, %v497
      %v499 = vpop.f32.mrb[0].mxu0
      %500 = vmatprep.mubr.f32.mxu0 0.0
      %501 = vmatmul.mubr.f32.gmra.mrb[0].mxu0 %v295
      %v502 = vpop.f32.mrb[0].mxu0
      %v503 = vadd.f32 0.0, %v502
      %v504 = vpop.f32.mrb[0].mxu0
      %505 = vmatprep.mubr.f32.mxu0 0.0
      %506 = vmatmul.mubr.f32.gmra.mrb[0].mxu0 %v298
      %v507 = vpop.f32.mrb[0].mxu0
      %v508 = vadd.f32 0.0, %v507
      %v509 = vpop.f32.mrb[0].mxu0
      %510 = vmatprep.mubr.f32.mxu0 0.0
      %511 = vmatmul.mubr.f32.gmra.mrb[0].mxu0 %v301
      %v512 = vpop.f32.mrb[0].mxu0
      %v513 = vadd.f32 0.0, %v512
      %v514 = vpop.f32.mrb[0].mxu0
      %515 = vmatprep.mubr.f32.mxu0 0.0
      %516 = vmatmul.mubr.f32.gmra.mrb[0].mxu0 %v304
      %v517 = vpop.f32.mrb[0].mxu0
      %v518 = vadd.f32 0.0, %v517
      %v519 = vpop.f32.mrb[0].mxu0
      %520 = vmatprep.mubr.f32.mxu0 0.0
      %521 = vmatmul.mubr.f32.gmra.mrb[0].mxu0 %v307
      %v522 = vpop.f32.mrb[0].mxu0
      %v523 = vadd.f32 0.0, %v522
      %v524 = vpop.f32.mrb[0].mxu0
      %525 = vmatprep.mubr.f32.mxu0 0.0
      %526 = vmatmul.mubr.f32.gmra.mrb[0].mxu0 %v310
      %v527 = vpop.f32.mrb[0].mxu0
      %v528 = vadd.f32 0.0, %v527
      %v529 = vpop.f32.mrb[0].mxu0
      %530 = vmatprep.mubr.f32.mxu0 0.0
      %531 = vmatmul.mubr.f32.gmra.mrb[0].mxu0 %v313
      %v532 = vpop.f32.mrb[0].mxu0
      %v533 = vadd.f32 0.0, %v532
      %v534 = vpop.f32.mrb[0].mxu0
      %535 = vmatprep.mubr.f32.mxu0 0.0
      %536 = vmatmul.mubr.f32.gmra.mrb[0].mxu0 %v316
      %v537 = vpop.f32.mrb[0].mxu0
      %v538 = vadd.f32 0.0, %v537
      %v539 = vpop.f32.mrb[0].mxu0
      %540 = vmatprep.mubr.f32.mxu0 0.0
      %541 = vmatmul.mubr.f32.gmra.mrb[0].mxu0 %v319
      %v542 = vpop.f32.mrb[0].mxu0
      %v543 = vadd.f32 0.0, %v542
      %v544 = vpop.f32.mrb[0].mxu0
      %545 = vmatprep.mubr.f32.mxu0 0.0
      %546 = vmatmul.mubr.f32.gmra.mrb[0].mxu0 %v322
      %v547 = vpop.f32.mrb[0].mxu0
      %v548 = vadd.f32 0.0, %v547
      %v549 = vpop.f32.mrb[0].mxu0
      %550 = vmatprep.mubr.f32.mxu0 0.0
      %551 = vmatmul.mubr.f32.gmra.mrb[0].mxu0 %v325
      %v552 = vpop.f32.mrb[0].mxu0
      %v553 = vadd.f32 0.0, %v552
      %v554 = vpop.f32.mrb[0].mxu0
      %555 = vdwg.mxu0
      %556 = vst [vmem:[#allocation2] sm:$0xff] %v398
      %557 = vst [vmem:[#allocation2 + $0x8] sm:$0xff] %v403
      %558 = vst [vmem:[#allocation2 + $0x10] sm:$0xff] %v408
      %559 = vst [vmem:[#allocation2 + $0x18] sm:$0xff] %v413
      %560 = vst [vmem:[#allocation2 + $0x20] sm:$0xff] %v418
      %561 = vst [vmem:[#allocation2 + $0x28] sm:$0xff] %v423
      %562 = vst [vmem:[#allocation2 + $0x30] sm:$0xff] %v428
      %563 = vst [vmem:[#allocation2 + $0x38] sm:$0xff] %v433
      %564 = vst [vmem:[#allocation2 + $0x40] sm:$0xff] %v438
      %565 = vst [vmem:[#allocation2 + $0x48] sm:$0xff] %v443
      %566 = vst [vmem:[#allocation2 + $0x50] sm:$0xff] %v448
      %567 = vst [vmem:[#allocation2 + $0x58] sm:$0xff] %v453
      %568 = vst [vmem:[#allocation2 + $0x60] sm:$0xff] %v458
      %569 = vst [vmem:[#allocation2 + $0x68] sm:$0xff] %v463
      %570 = vst [vmem:[#allocation2 + $0x70] sm:$0xff] %v468
      %571 = vst [vmem:[#allocation2 + $0x78] sm:$0xff] %v473
      %572 = vst [vmem:[#allocation2 + $0x80] sm:$0xff] %v478
      %573 = vst [vmem:[#allocation2 + $0x88] sm:$0xff] %v483
      %574 = vst [vmem:[#allocation2 + $0x90] sm:$0xff] %v488
      %575 = vst [vmem:[#allocation2 + $0x98] sm:$0xff] %v493
      %576 = vst [vmem:[#allocation2 + $0xa0] sm:$0xff] %v498
      %577 = vst [vmem:[#allocation2 + $0xa8] sm:$0xff] %v503
      %578 = vst [vmem:[#allocation2 + $0xb0] sm:$0xff] %v508
      %579 = vst [vmem:[#allocation2 + $0xb8] sm:$0xff] %v513
      %580 = vst [vmem:[#allocation2 + $0xc0] sm:$0xff] %v518
      %581 = vst [vmem:[#allocation2 + $0xc8] sm:$0xff] %v523
      %582 = vst [vmem:[#allocation2 + $0xd0] sm:$0xff] %v528
      %583 = vst [vmem:[#allocation2 + $0xd8] sm:$0xff] %v533
      %584 = vst [vmem:[#allocation2 + $0xe0] sm:$0xff] %v538
      %585 = vst [vmem:[#allocation2 + $0xe8] sm:$0xff] %v543
      %586 = vst [vmem:[#allocation2 + $0xf0] sm:$0xff] %v548
      %587 = vst [vmem:[#allocation2 + $0xf8] sm:$0xff] %v553
      %v588 = vld [vmem:[%s196 + $0x1] sm:$0xff]
      %v589 = vld [vmem:[%s196 + $0x9] sm:$0xff]
      %v590 = vld [vmem:[%s196 + $0x19] sm:$0xff]
      %v591 = vld [vmem:[%s196 + $0x21] sm:$0xff]
      %v592 = vld [vmem:[%s196 + $0x31] sm:$0xff]
      %v593 = vld [vmem:[%s196 + $0x39] sm:$0xff]
      %v594 = vld [vmem:[%s196 + $0x49] sm:$0xff]
      %v595 = vld [vmem:[%s196 + $0x51] sm:$0xff]
      %v596 = vld [vmem:[%s196 + $0x61] sm:$0xff]
      %v597 = vld [vmem:[%s196 + $0x69] sm:$0xff]
      %v598 = vld [vmem:[%s196 + $0x79] sm:$0xff]
      %v599 = vld [vmem:[%s196 + $0x81] sm:$0xff]
      %v600 = vld [vmem:[%s196 + $0x91] sm:$0xff]
      %v601 = vld [vmem:[%s196 + $0x99] sm:$0xff]
      %v602 = vld [vmem:[%s196 + $0xa9] sm:$0xff]
      %v603 = vld [vmem:[%s196 + $0xb1] sm:$0xff]
      %v604 = vld [vmem:[%s196 + $0xc1] sm:$0xff]
      %v605 = vld [vmem:[%s196 + $0xc9] sm:$0xff]
      %v606 = vld [vmem:[%s196 + $0xd9] sm:$0xff]
      %v607 = vld [vmem:[%s196 + $0xe1] sm:$0xff]
      %v608 = vld [vmem:[%s196 + $0xf1] sm:$0xff]
      %v609 = vld [vmem:[%s196 + $0xf9] sm:$0xff]
      %v610 = vld [vmem:[%s196 + $0x109] sm:$0xff]
      %v611 = vld [vmem:[%s196 + $0x111] sm:$0xff]
      %v612 = vld [vmem:[%s196 + $0x121] sm:$0xff]
      %v613 = vld [vmem:[%s196 + $0x129] sm:$0xff]
      %v614 = vld [vmem:[%s196 + $0x139] sm:$0xff]
      %v615 = vld [vmem:[%s196 + $0x141] sm:$0xff]
      %v616 = vld [vmem:[%s196 + $0x151] sm:$0xff]
      %v617 = vld [vmem:[%s196 + $0x159] sm:$0xff]
      %v618 = vld [vmem:[%s196 + $0x169] sm:$0xff]
      %v619 = vld [vmem:[%s196 + $0x171] sm:$0xff]
      %s620 = scalar_lea.vmem %s1, 4
      %v621 = vld [vmem:[%s620] sm:$0xf]
      %v623 = vsel %vm230, %v588, 0
      %v626 = vsel %vm230, %v589, 0
      %v629 = vsel %vm230, %v590, 0
      %v632 = vsel %vm230, %v591, 0
      %v635 = vsel %vm230, %v592, 0
      %v638 = vsel %vm230, %v593, 0
      %v641 = vsel %vm230, %v594, 0
      %v644 = vsel %vm230, %v595, 0
      %v647 = vsel %vm230, %v596, 0
      %v650 = vsel %vm230, %v597, 0
      %v653 = vsel %vm230, %v598, 0
      %v656 = vsel %vm230, %v599, 0
      %v659 = vsel %vm230, %v600, 0
      %v662 = vsel %vm230, %v601, 0
      %v665 = vsel %vm230, %v602, 0
      %v668 = vsel %vm230, %v603, 0
      %v671 = vsel %vm230, %v604, 0
      %v674 = vsel %vm230, %v605, 0
      %v677 = vsel %vm230, %v606, 0
      %v680 = vsel %vm230, %v607, 0
      %v683 = vsel %vm230, %v608, 0
      %v686 = vsel %vm230, %v609, 0
      %v689 = vsel %vm230, %v610, 0
      %v692 = vsel %vm230, %v611, 0
      %v695 = vsel %vm230, %v612, 0
      %v698 = vsel %vm230, %v613, 0
      %v701 = vsel %vm230, %v614, 0
      %v704 = vsel %vm230, %v615, 0
      %v707 = vsel %vm230, %v616, 0
      %v710 = vsel %vm230, %v617, 0
      %v713 = vsel %vm230, %v618, 0
      %v716 = vsel %vm230, %v619, 0
      %v719 = vsel %vm327, %v621, 0
      %721 = vmatprep.subr.mxu0 0.0
      %722 = vmatpush1.msra.mxu0 %v719
      %723 = vmatprep.subr.mxu0 0.0
      %724 = vmatpush1.msra.mxu0 0.0
      %725 = vmatprep.subr.mxu0 0.0
      %726 = vmatpush1.msra.mxu0 0.0
      %727 = vmatprep.subr.mxu0 0.0
      %728 = vmatpush1.msra.mxu0 0.0
      %729 = vmatprep.subr.mxu0 0.0
      %730 = vmatpush1.msra.mxu0 0.0
      %731 = vmatprep.subr.mxu0 0.0
      %732 = vmatpush1.msra.mxu0 0.0
      %733 = vmatprep.subr.mxu0 0.0
      %734 = vmatpush1.msra.mxu0 0.0
      %735 = vmatprep.subr.mxu0 0.0
      %736 = vmatpush1.msra.mxu0 0.0
      %737 = vmatprep.subr.mxu0 0.0
      %738 = vmatpush1.msra.mxu0 0.0
      %739 = vmatprep.subr.mxu0 0.0
      %740 = vmatpush1.msra.mxu0 0.0
      %741 = vmatprep.subr.mxu0 0.0
      %742 = vmatpush1.msra.mxu0 0.0
      %743 = vmatprep.subr.mxu0 0.0
      %744 = vmatpush1.msra.mxu0 0.0
      %745 = vmatprep.subr.mxu0 0.0
      %746 = vmatpush1.msra.mxu0 0.0
      %747 = vmatprep.subr.mxu0 0.0
      %748 = vmatpush1.msra.mxu0 0.0
      %749 = vmatprep.subr.mxu0 0.0
      %750 = vmatpush1.msra.mxu0 0.0
      %751 = vmatprep.subr.mxu0 0.0
      %752 = vmatpush1.msra.mxu0 0.0
      %753 = vmatprep.subr.mxu0 0.0
      %754 = vmatpush1.msra.mxu0 0.0
      %755 = vmatprep.subr.mxu0 0.0
      %756 = vmatpush1.msra.mxu0 0.0
      %757 = vmatprep.subr.mxu0 0.0
      %758 = vmatpush1.msra.mxu0 0.0
      %759 = vmatprep.subr.mxu0 0.0
      %760 = vmatpush1.msra.mxu0 0.0
      %761 = vmatprep.subr.mxu0 0.0
      %762 = vmatpush1.msra.mxu0 0.0
      %763 = vmatprep.subr.mxu0 0.0
      %764 = vmatpush1.msra.mxu0 0.0
      %765 = vmatprep.subr.mxu0 0.0
      %766 = vmatpush1.msra.mxu0 0.0
      %767 = vmatprep.subr.mxu0 0.0
      %768 = vmatpush1.msra.mxu0 0.0
      %769 = vmatprep.subr.mxu0 0.0
      %770 = vmatpush1.msra.mxu0 0.0
      %771 = vmatprep.subr.mxu0 0.0
      %772 = vmatpush1.msra.mxu0 0.0
      %773 = vmatprep.subr.mxu0 0.0
      %774 = vmatpush1.msra.mxu0 0.0
      %775 = vmatprep.subr.mxu0 0.0
      %776 = vmatpush1.msra.mxu0 0.0
      %777 = vmatprep.subr.mxu0 0.0
      %778 = vmatpush1.msra.mxu0 0.0
      %779 = vmatprep.subr.mxu0 0.0
      %780 = vmatpush1.msra.mxu0 0.0
      %781 = vmatprep.subr.mxu0 0.0
      %782 = vmatpush1.msra.mxu0 0.0
      %783 = vmatprep.subr.mxu0 0.0
      %784 = vmatpush1.msra.mxu0 0.0
      %785 = vmatprep.mubr.f32.mxu0 0.0
      %786 = vmatmul.mubr.f32.gmra.mrb[0].mxu0 %v623
      %v787 = vpop.f32.mrb[0].mxu0
      %v788 = vadd.f32 0.0, %v787
      %v789 = vpop.f32.mrb[0].mxu0
      %790 = vmatprep.mubr.f32.mxu0 0.0
      %791 = vmatmul.mubr.f32.gmra.mrb[0].mxu0 %v626
      %v792 = vpop.f32.mrb[0].mxu0
      %v793 = vadd.f32 0.0, %v792
      %v794 = vpop.f32.mrb[0].mxu0
      %795 = vmatprep.mubr.f32.mxu0 0.0
      %796 = vmatmul.mubr.f32.gmra.mrb[0].mxu0 %v629
      %v797 = vpop.f32.mrb[0].mxu0
      %v798 = vadd.f32 0.0, %v797
      %v799 = vpop.f32.mrb[0].mxu0
      %800 = vmatprep.mubr.f32.mxu0 0.0
      %801 = vmatmul.mubr.f32.gmra.mrb[0].mxu0 %v632
      %v802 = vpop.f32.mrb[0].mxu0
      %v803 = vadd.f32 0.0, %v802
      %v804 = vpop.f32.mrb[0].mxu0
      %805 = vmatprep.mubr.f32.mxu0 0.0
      %806 = vmatmul.mubr.f32.gmra.mrb[0].mxu0 %v635
      %v807 = vpop.f32.mrb[0].mxu0
      %v808 = vadd.f32 0.0, %v807
      %v809 = vpop.f32.mrb[0].mxu0
      %810 = vmatprep.mubr.f32.mxu0 0.0
      %811 = vmatmul.mubr.f32.gmra.mrb[0].mxu0 %v638
      %v812 = vpop.f32.mrb[0].mxu0
      %v813 = vadd.f32 0.0, %v812
      %v814 = vpop.f32.mrb[0].mxu0
      %815 = vmatprep.mubr.f32.mxu0 0.0
      %816 = vmatmul.mubr.f32.gmra.mrb[0].mxu0 %v641
      %v817 = vpop.f32.mrb[0].mxu0
      %v818 = vadd.f32 0.0, %v817
      %v819 = vpop.f32.mrb[0].mxu0
      %820 = vmatprep.mubr.f32.mxu0 0.0
      %821 = vmatmul.mubr.f32.gmra.mrb[0].mxu0 %v644
      %v822 = vpop.f32.mrb[0].mxu0
      %v823 = vadd.f32 0.0, %v822
      %v824 = vpop.f32.mrb[0].mxu0
      %825 = vmatprep.mubr.f32.mxu0 0.0
      %826 = vmatmul.mubr.f32.gmra.mrb[0].mxu0 %v647
      %v827 = vpop.f32.mrb[0].mxu0
      %v828 = vadd.f32 0.0, %v827
      %v829 = vpop.f32.mrb[0].mxu0
      %830 = vmatprep.mubr.f32.mxu0 0.0
      %831 = vmatmul.mubr.f32.gmra.mrb[0].mxu0 %v650
      %v832 = vpop.f32.mrb[0].mxu0
      %v833 = vadd.f32 0.0, %v832
      %v834 = vpop.f32.mrb[0].mxu0
      %835 = vmatprep.mubr.f32.mxu0 0.0
      %836 = vmatmul.mubr.f32.gmra.mrb[0].mxu0 %v653
      %v837 = vpop.f32.mrb[0].mxu0
      %v838 = vadd.f32 0.0, %v837
      %v839 = vpop.f32.mrb[0].mxu0
      %840 = vmatprep.mubr.f32.mxu0 0.0
      %841 = vmatmul.mubr.f32.gmra.mrb[0].mxu0 %v656
      %v842 = vpop.f32.mrb[0].mxu0
      %v843 = vadd.f32 0.0, %v842
      %v844 = vpop.f32.mrb[0].mxu0
      %845 = vmatprep.mubr.f32.mxu0 0.0
      %846 = vmatmul.mubr.f32.gmra.mrb[0].mxu0 %v659
      %v847 = vpop.f32.mrb[0].mxu0
      %v848 = vadd.f32 0.0, %v847
      %v849 = vpop.f32.mrb[0].mxu0
      %850 = vmatprep.mubr.f32.mxu0 0.0
      %851 = vmatmul.mubr.f32.gmra.mrb[0].mxu0 %v662
      %v852 = vpop.f32.mrb[0].mxu0
      %v853 = vadd.f32 0.0, %v852
      %v854 = vpop.f32.mrb[0].mxu0
      %855 = vmatprep.mubr.f32.mxu0 0.0
      %856 = vmatmul.mubr.f32.gmra.mrb[0].mxu0 %v665
      %v857 = vpop.f32.mrb[0].mxu0
      %v858 = vadd.f32 0.0, %v857
      %v859 = vpop.f32.mrb[0].mxu0
      %860 = vmatprep.mubr.f32.mxu0 0.0
      %861 = vmatmul.mubr.f32.gmra.mrb[0].mxu0 %v668
      %v862 = vpop.f32.mrb[0].mxu0
      %v863 = vadd.f32 0.0, %v862
      %v864 = vpop.f32.mrb[0].mxu0
      %865 = vmatprep.mubr.f32.mxu0 0.0
      %866 = vmatmul.mubr.f32.gmra.mrb[0].mxu0 %v671
      %v867 = vpop.f32.mrb[0].mxu0
      %v868 = vadd.f32 0.0, %v867
      %v869 = vpop.f32.mrb[0].mxu0
      %870 = vmatprep.mubr.f32.mxu0 0.0
      %871 = vmatmul.mubr.f32.gmra.mrb[0].mxu0 %v674
      %v872 = vpop.f32.mrb[0].mxu0
      %v873 = vadd.f32 0.0, %v872
      %v874 = vpop.f32.mrb[0].mxu0
      %875 = vmatprep.mubr.f32.mxu0 0.0
      %876 = vmatmul.mubr.f32.gmra.mrb[0].mxu0 %v677
      %v877 = vpop.f32.mrb[0].mxu0
      %v878 = vadd.f32 0.0, %v877
      %v879 = vpop.f32.mrb[0].mxu0
      %880 = vmatprep.mubr.f32.mxu0 0.0
      %881 = vmatmul.mubr.f32.gmra.mrb[0].mxu0 %v680
      %v882 = vpop.f32.mrb[0].mxu0
      %v883 = vadd.f32 0.0, %v882
      %v884 = vpop.f32.mrb[0].mxu0
      %885 = vmatprep.mubr.f32.mxu0 0.0
      %886 = vmatmul.mubr.f32.gmra.mrb[0].mxu0 %v683
      %v887 = vpop.f32.mrb[0].mxu0
      %v888 = vadd.f32 0.0, %v887
      %v889 = vpop.f32.mrb[0].mxu0
      %890 = vmatprep.mubr.f32.mxu0 0.0
      %891 = vmatmul.mubr.f32.gmra.mrb[0].mxu0 %v686
      %v892 = vpop.f32.mrb[0].mxu0
      %v893 = vadd.f32 0.0, %v892
      %v894 = vpop.f32.mrb[0].mxu0
      %895 = vmatprep.mubr.f32.mxu0 0.0
      %896 = vmatmul.mubr.f32.gmra.mrb[0].mxu0 %v689
      %v897 = vpop.f32.mrb[0].mxu0
      %v898 = vadd.f32 0.0, %v897
      %v899 = vpop.f32.mrb[0].mxu0
      %900 = vmatprep.mubr.f32.mxu0 0.0
      %901 = vmatmul.mubr.f32.gmra.mrb[0].mxu0 %v692
      %v902 = vpop.f32.mrb[0].mxu0
      %v903 = vadd.f32 0.0, %v902
      %v904 = vpop.f32.mrb[0].mxu0
      %905 = vmatprep.mubr.f32.mxu0 0.0
      %906 = vmatmul.mubr.f32.gmra.mrb[0].mxu0 %v695
      %v907 = vpop.f32.mrb[0].mxu0
      %v908 = vadd.f32 0.0, %v907
      %v909 = vpop.f32.mrb[0].mxu0
      %910 = vmatprep.mubr.f32.mxu0 0.0
      %911 = vmatmul.mubr.f32.gmra.mrb[0].mxu0 %v698
      %v912 = vpop.f32.mrb[0].mxu0
      %v913 = vadd.f32 0.0, %v912
      %v914 = vpop.f32.mrb[0].mxu0
      %915 = vmatprep.mubr.f32.mxu0 0.0
      %916 = vmatmul.mubr.f32.gmra.mrb[0].mxu0 %v701
      %v917 = vpop.f32.mrb[0].mxu0
      %v918 = vadd.f32 0.0, %v917
      %v919 = vpop.f32.mrb[0].mxu0
      %920 = vmatprep.mubr.f32.mxu0 0.0
      %921 = vmatmul.mubr.f32.gmra.mrb[0].mxu0 %v704
      %v922 = vpop.f32.mrb[0].mxu0
      %v923 = vadd.f32 0.0, %v922
      %v924 = vpop.f32.mrb[0].mxu0
      %925 = vmatprep.mubr.f32.mxu0 0.0
      %926 = vmatmul.mubr.f32.gmra.mrb[0].mxu0 %v707
      %v927 = vpop.f32.mrb[0].mxu0
      %v928 = vadd.f32 0.0, %v927
      %v929 = vpop.f32.mrb[0].mxu0
      %930 = vmatprep.mubr.f32.mxu0 0.0
      %931 = vmatmul.mubr.f32.gmra.mrb[0].mxu0 %v710
      %v932 = vpop.f32.mrb[0].mxu0
      %v933 = vadd.f32 0.0, %v932
      %v934 = vpop.f32.mrb[0].mxu0
      %935 = vmatprep.mubr.f32.mxu0 0.0
      %936 = vmatmul.mubr.f32.gmra.mrb[0].mxu0 %v713
      %v937 = vpop.f32.mrb[0].mxu0
      %v938 = vadd.f32 0.0, %v937
      %v939 = vpop.f32.mrb[0].mxu0
      %940 = vmatprep.mubr.f32.mxu0 0.0
      %941 = vmatmul.mubr.f32.gmra.mrb[0].mxu0 %v716
      %v942 = vpop.f32.mrb[0].mxu0
      %v943 = vadd.f32 0.0, %v942
      %v944 = vpop.f32.mrb[0].mxu0
      %945 = vdwg.mxu0
      %v946 = vld [vmem:[#allocation2] sm:$0xff]
      %v947 = vld [vmem:[#allocation2 + $0x8] sm:$0xff]
      %v948 = vld [vmem:[#allocation2 + $0x10] sm:$0xff]
      %v949 = vld [vmem:[#allocation2 + $0x18] sm:$0xff]
      %v950 = vld [vmem:[#allocation2 + $0x20] sm:$0xff]
      %v951 = vld [vmem:[#allocation2 + $0x28] sm:$0xff]
      %v952 = vld [vmem:[#allocation2 + $0x30] sm:$0xff]
      %v953 = vld [vmem:[#allocation2 + $0x38] sm:$0xff]
      %v954 = vld [vmem:[#allocation2 + $0x40] sm:$0xff]
      %v955 = vld [vmem:[#allocation2 + $0x48] sm:$0xff]
      %v956 = vld [vmem:[#allocation2 + $0x50] sm:$0xff]
      %v957 = vld [vmem:[#allocation2 + $0x58] sm:$0xff]
      %v958 = vld [vmem:[#allocation2 + $0x60] sm:$0xff]
      %v959 = vld [vmem:[#allocation2 + $0x68] sm:$0xff]
      %v960 = vld [vmem:[#allocation2 + $0x70] sm:$0xff]
      %v961 = vld [vmem:[#allocation2 + $0x78] sm:$0xff]
      %v962 = vld [vmem:[#allocation2 + $0x80] sm:$0xff]
      %v963 = vld [vmem:[#allocation2 + $0x88] sm:$0xff]
      %v964 = vld [vmem:[#allocation2 + $0x90] sm:$0xff]
      %v965 = vld [vmem:[#allocation2 + $0x98] sm:$0xff]
      %v966 = vld [vmem:[#allocation2 + $0xa0] sm:$0xff]
      %v967 = vld [vmem:[#allocation2 + $0xa8] sm:$0xff]
      %v968 = vld [vmem:[#allocation2 + $0xb0] sm:$0xff]
      %v969 = vld [vmem:[#allocation2 + $0xb8] sm:$0xff]
      %v970 = vld [vmem:[#allocation2 + $0xc0] sm:$0xff]
      %v971 = vld [vmem:[#allocation2 + $0xc8] sm:$0xff]
      %v972 = vld [vmem:[#allocation2 + $0xd0] sm:$0xff]
      %v973 = vld [vmem:[#allocation2 + $0xd8] sm:$0xff]
      %v974 = vld [vmem:[#allocation2 + $0xe0] sm:$0xff]
      %v975 = vld [vmem:[#allocation2 + $0xe8] sm:$0xff]
      %v976 = vld [vmem:[#allocation2 + $0xf0] sm:$0xff]
      %v977 = vld [vmem:[#allocation2 + $0xf8] sm:$0xff]
      %v978 = vadd.f32 %v946, %v788
      %v979 = vadd.f32 %v947, %v793
      %v980 = vadd.f32 %v948, %v798
      %v981 = vadd.f32 %v949, %v803
      %v982 = vadd.f32 %v950, %v808
      %v983 = vadd.f32 %v951, %v813
      %v984 = vadd.f32 %v952, %v818
      %v985 = vadd.f32 %v953, %v823
      %v986 = vadd.f32 %v954, %v828
      %v987 = vadd.f32 %v955, %v833
      %v988 = vadd.f32 %v956, %v838
      %v989 = vadd.f32 %v957, %v843
      %v990 = vadd.f32 %v958, %v848
      %v991 = vadd.f32 %v959, %v853
      %v992 = vadd.f32 %v960, %v858
      %v993 = vadd.f32 %v961, %v863
      %v994 = vadd.f32 %v962, %v868
      %v995 = vadd.f32 %v963, %v873
      %v996 = vadd.f32 %v964, %v878
      %v997 = vadd.f32 %v965, %v883
      %v998 = vadd.f32 %v966, %v888
      %v999 = vadd.f32 %v967, %v893
      %v1000 = vadd.f32 %v968, %v898
      %v1001 = vadd.f32 %v969, %v903
      %v1002 = vadd.f32 %v970, %v908
      %v1003 = vadd.f32 %v971, %v913
      %v1004 = vadd.f32 %v972, %v918
      %v1005 = vadd.f32 %v973, %v923
      %v1006 = vadd.f32 %v974, %v928
      %v1007 = vadd.f32 %v975, %v933
      %v1008 = vadd.f32 %v976, %v938
      %v1009 = vadd.f32 %v977, %v943
      %1010 = vst [vmem:[#allocation2] sm:$0xff] %v978
      %1011 = vst [vmem:[#allocation2 + $0x8] sm:$0xff] %v979
      %1012 = vst [vmem:[#allocation2 + $0x10] sm:$0xff] %v980
      %1013 = vst [vmem:[#allocation2 + $0x18] sm:$0xff] %v981
      %1014 = vst [vmem:[#allocation2 + $0x20] sm:$0xff] %v982
      %1015 = vst [vmem:[#allocation2 + $0x28] sm:$0xff] %v983
      %1016 = vst [vmem:[#allocation2 + $0x30] sm:$0xff] %v984
      %1017 = vst [vmem:[#allocation2 + $0x38] sm:$0xff] %v985
      %1018 = vst [vmem:[#allocation2 + $0x40] sm:$0xff] %v986
      %1019 = vst [vmem:[#allocation2 + $0x48] sm:$0xff] %v987
      %1020 = vst [vmem:[#allocation2 + $0x50] sm:$0xff] %v988
      %1021 = vst [vmem:[#allocation2 + $0x58] sm:$0xff] %v989
      %1022 = vst [vmem:[#allocation2 + $0x60] sm:$0xff] %v990
      %1023 = vst [vmem:[#allocation2 + $0x68] sm:$0xff] %v991
      %1024 = vst [vmem:[#allocation2 + $0x70] sm:$0xff] %v992
      %1025 = vst [vmem:[#allocation2 + $0x78] sm:$0xff] %v993
      %1026 = vst [vmem:[#allocation2 + $0x80] sm:$0xff] %v994
      %1027 = vst [vmem:[#allocation2 + $0x88] sm:$0xff] %v995
      %1028 = vst [vmem:[#allocation2 + $0x90] sm:$0xff] %v996
      %1029 = vst [vmem:[#allocation2 + $0x98] sm:$0xff] %v997
      %1030 = vst [vmem:[#allocation2 + $0xa0] sm:$0xff] %v998
      %1031 = vst [vmem:[#allocation2 + $0xa8] sm:$0xff] %v999
      %1032 = vst [vmem:[#allocation2 + $0xb0] sm:$0xff] %v1000
      %1033 = vst [vmem:[#allocation2 + $0xb8] sm:$0xff] %v1001
      %1034 = vst [vmem:[#allocation2 + $0xc0] sm:$0xff] %v1002
      %1035 = vst [vmem:[#allocation2 + $0xc8] sm:$0xff] %v1003
      %1036 = vst [vmem:[#allocation2 + $0xd0] sm:$0xff] %v1004
      %1037 = vst [vmem:[#allocation2 + $0xd8] sm:$0xff] %v1005
      %1038 = vst [vmem:[#allocation2 + $0xe0] sm:$0xff] %v1006
      %1039 = vst [vmem:[#allocation2 + $0xe8] sm:$0xff] %v1007
      %1040 = vst [vmem:[#allocation2 + $0xf0] sm:$0xff] %v1008
      %1041 = vst [vmem:[#allocation2 + $0xf8] sm:$0xff] %v1009
      %v1042 = vld [vmem:[%s196 + $0x2] sm:$0xff]
      %v1043 = vld [vmem:[%s196 + $0xa] sm:$0xff]
      %v1044 = vld [vmem:[%s196 + $0x1a] sm:$0xff]
      %v1045 = vld [vmem:[%s196 + $0x22] sm:$0xff]
      %v1046 = vld [vmem:[%s196 + $0x32] sm:$0xff]
      %v1047 = vld [vmem:[%s196 + $0x3a] sm:$0xff]
      %v1048 = vld [vmem:[%s196 + $0x4a] sm:$0xff]
      %v1049 = vld [vmem:[%s196 + $0x52] sm:$0xff]
      %v1050 = vld [vmem:[%s196 + $0x62] sm:$0xff]
      %v1051 = vld [vmem:[%s196 + $0x6a] sm:$0xff]
      %v1052 = vld [vmem:[%s196 + $0x7a] sm:$0xff]
      %v1053 = vld [vmem:[%s196 + $0x82] sm:$0xff]
      %v1054 = vld [vmem:[%s196 + $0x92] sm:$0xff]
      %v1055 = vld [vmem:[%s196 + $0x9a] sm:$0xff]
      %v1056 = vld [vmem:[%s196 + $0xaa] sm:$0xff]
      %v1057 = vld [vmem:[%s196 + $0xb2] sm:$0xff]
      %v1058 = vld [vmem:[%s196 + $0xc2] sm:$0xff]
      %v1059 = vld [vmem:[%s196 + $0xca] sm:$0xff]
      %v1060 = vld [vmem:[%s196 + $0xda] sm:$0xff]
      %v1061 = vld [vmem:[%s196 + $0xe2] sm:$0xff]
      %v1062 = vld [vmem:[%s196 + $0xf2] sm:$0xff]
      %v1063 = vld [vmem:[%s196 + $0xfa] sm:$0xff]
      %v1064 = vld [vmem:[%s196 + $0x10a] sm:$0xff]
      %v1065 = vld [vmem:[%s196 + $0x112] sm:$0xff]
      %v1066 = vld [vmem:[%s196 + $0x122] sm:$0xff]
      %v1067 = vld [vmem:[%s196 + $0x12a] sm:$0xff]
      %v1068 = vld [vmem:[%s196 + $0x13a] sm:$0xff]
      %v1069 = vld [vmem:[%s196 + $0x142] sm:$0xff]
      %v1070 = vld [vmem:[%s196 + $0x152] sm:$0xff]
      %v1071 = vld [vmem:[%s196 + $0x15a] sm:$0xff]
      %v1072 = vld [vmem:[%s196 + $0x16a] sm:$0xff]
      %v1073 = vld [vmem:[%s196 + $0x172] sm:$0xff]
      %s1074 = scalar_lea.vmem %s1, 8
      %v1075 = vld [vmem:[%s1074] sm:$0xf]
      %v1077 = vsel %vm230, %v1042, 0
      %v1080 = vsel %vm230, %v1043, 0
      %v1083 = vsel %vm230, %v1044, 0
      %v1086 = vsel %vm230, %v1045, 0
      %v1089 = vsel %vm230, %v1046, 0
      %v1092 = vsel %vm230, %v1047, 0
      %v1095 = vsel %vm230, %v1048, 0
      %v1098 = vsel %vm230, %v1049, 0
      %v1101 = vsel %vm230, %v1050, 0
      %v1104 = vsel %vm230, %v1051, 0
      %v1107 = vsel %vm230, %v1052, 0
      %v1110 = vsel %vm230, %v1053, 0
      %v1113 = vsel %vm230, %v1054, 0
      %v1116 = vsel %vm230, %v1055, 0
      %v1119 = vsel %vm230, %v1056, 0
      %v1122 = vsel %vm230, %v1057, 0
      %v1125 = vsel %vm230, %v1058, 0
      %v1128 = vsel %vm230, %v1059, 0
      %v1131 = vsel %vm230, %v1060, 0
      %v1134 = vsel %vm230, %v1061, 0
      %v1137 = vsel %vm230, %v1062, 0
      %v1140 = vsel %vm230, %v1063, 0
      %v1143 = vsel %vm230, %v1064, 0
      %v1146 = vsel %vm230, %v1065, 0
      %v1149 = vsel %vm230, %v1066, 0
      %v1152 = vsel %vm230, %v1067, 0
      %v1155 = vsel %vm230, %v1068, 0
      %v1158 = vsel %vm230, %v1069, 0
      %v1161 = vsel %vm230, %v1070, 0
      %v1164 = vsel %vm230, %v1071, 0
      %v1167 = vsel %vm230, %v1072, 0
      %v1170 = vsel %vm230, %v1073, 0
      %v1173 = vsel %vm327, %v1075, 0
      %1175 = vmatprep.subr.mxu0 0.0
      %1176 = vmatpush1.msra.mxu0 %v1173
      %1177 = vmatprep.subr.mxu0 0.0
      %1178 = vmatpush1.msra.mxu0 0.0
      %1179 = vmatprep.subr.mxu0 0.0
      %1180 = vmatpush1.msra.mxu0 0.0
      %1181 = vmatprep.subr.mxu0 0.0
      %1182 = vmatpush1.msra.mxu0 0.0
      %1183 = vmatprep.subr.mxu0 0.0
      %1184 = vmatpush1.msra.mxu0 0.0
      %1185 = vmatprep.subr.mxu0 0.0
      %1186 = vmatpush1.msra.mxu0 0.0
      %1187 = vmatprep.subr.mxu0 0.0
      %1188 = vmatpush1.msra.mxu0 0.0
      %1189 = vmatprep.subr.mxu0 0.0
      %1190 = vmatpush1.msra.mxu0 0.0
      %1191 = vmatprep.subr.mxu0 0.0
      %1192 = vmatpush1.msra.mxu0 0.0
      %1193 = vmatprep.subr.mxu0 0.0
      %1194 = vmatpush1.msra.mxu0 0.0
      %1195 = vmatprep.subr.mxu0 0.0
      %1196 = vmatpush1.msra.mxu0 0.0
      %1197 = vmatprep.subr.mxu0 0.0
      %1198 = vmatpush1.msra.mxu0 0.0
      %1199 = vmatprep.subr.mxu0 0.0
      %1200 = vmatpush1.msra.mxu0 0.0
      %1201 = vmatprep.subr.mxu0 0.0
      %1202 = vmatpush1.msra.mxu0 0.0
      %1203 = vmatprep.subr.mxu0 0.0
      %1204 = vmatpush1.msra.mxu0 0.0
      %1205 = vmatprep.subr.mxu0 0.0
      %1206 = vmatpush1.msra.mxu0 0.0
      %1207 = vmatprep.subr.mxu0 0.0
      %1208 = vmatpush1.msra.mxu0 0.0
      %1209 = vmatprep.subr.mxu0 0.0
      %1210 = vmatpush1.msra.mxu0 0.0
      %1211 = vmatprep.subr.mxu0 0.0
      %1212 = vmatpush1.msra.mxu0 0.0
      %1213 = vmatprep.subr.mxu0 0.0
      %1214 = vmatpush1.msra.mxu0 0.0
      %1215 = vmatprep.subr.mxu0 0.0
      %1216 = vmatpush1.msra.mxu0 0.0
      %1217 = vmatprep.subr.mxu0 0.0
      %1218 = vmatpush1.msra.mxu0 0.0
      %1219 = vmatprep.subr.mxu0 0.0
      %1220 = vmatpush1.msra.mxu0 0.0
      %1221 = vmatprep.subr.mxu0 0.0
      %1222 = vmatpush1.msra.mxu0 0.0
      %1223 = vmatprep.subr.mxu0 0.0
      %1224 = vmatpush1.msra.mxu0 0.0
      %1225 = vmatprep.subr.mxu0 0.0
      %1226 = vmatpush1.msra.mxu0 0.0
      %1227 = vmatprep.subr.mxu0 0.0
      %1228 = vmatpush1.msra.mxu0 0.0
      %1229 = vmatprep.subr.mxu0 0.0
      %1230 = vmatpush1.msra.mxu0 0.0
      %1231 = vmatprep.subr.mxu0 0.0
      %1232 = vmatpush1.msra.mxu0 0.0
      %1233 = vmatprep.subr.mxu0 0.0
      %1234 = vmatpush1.msra.mxu0 0.0
      %1235 = vmatprep.subr.mxu0 0.0
      %1236 = vmatpush1.msra.mxu0 0.0
      %1237 = vmatprep.subr.mxu0 0.0
      %1238 = vmatpush1.msra.mxu0 0.0
      %1239 = vmatprep.mubr.f32.mxu0 0.0
      %1240 = vmatmul.mubr.f32.gmra.mrb[0].mxu0 %v1077
      %v1241 = vpop.f32.mrb[0].mxu0
      %v1242 = vadd.f32 0.0, %v1241
      %v1243 = vpop.f32.mrb[0].mxu0
      %1244 = vmatprep.mubr.f32.mxu0 0.0
      %1245 = vmatmul.mubr.f32.gmra.mrb[0].mxu0 %v1080
      %v1246 = vpop.f32.mrb[0].mxu0
      %v1247 = vadd.f32 0.0, %v1246
      %v1248 = vpop.f32.mrb[0].mxu0
      %1249 = vmatprep.mubr.f32.mxu0 0.0
      %1250 = vmatmul.mubr.f32.gmra.mrb[0].mxu0 %v1083
      %v1251 = vpop.f32.mrb[0].mxu0
      %v1252 = vadd.f32 0.0, %v1251
      %v1253 = vpop.f32.mrb[0].mxu0
      %1254 = vmatprep.mubr.f32.mxu0 0.0
      %1255 = vmatmul.mubr.f32.gmra.mrb[0].mxu0 %v1086
      %v1256 = vpop.f32.mrb[0].mxu0
      %v1257 = vadd.f32 0.0, %v1256
      %v1258 = vpop.f32.mrb[0].mxu0
      %1259 = vmatprep.mubr.f32.mxu0 0.0
      %1260 = vmatmul.mubr.f32.gmra.mrb[0].mxu0 %v1089
      %v1261 = vpop.f32.mrb[0].mxu0
      %v1262 = vadd.f32 0.0, %v1261
      %v1263 = vpop.f32.mrb[0].mxu0
      %1264 = vmatprep.mubr.f32.mxu0 0.0
      %1265 = vmatmul.mubr.f32.gmra.mrb[0].mxu0 %v1092
      %v1266 = vpop.f32.mrb[0].mxu0
      %v1267 = vadd.f32 0.0, %v1266
      %v1268 = vpop.f32.mrb[0].mxu0
      %1269 = vmatprep.mubr.f32.mxu0 0.0
      %1270 = vmatmul.mubr.f32.gmra.mrb[0].mxu0 %v1095
      %v1271 = vpop.f32.mrb[0].mxu0
      %v1272 = vadd.f32 0.0, %v1271
      %v1273 = vpop.f32.mrb[0].mxu0
      %1274 = vmatprep.mubr.f32.mxu0 0.0
      %1275 = vmatmul.mubr.f32.gmra.mrb[0].mxu0 %v1098
      %v1276 = vpop.f32.mrb[0].mxu0
      %v1277 = vadd.f32 0.0, %v1276
      %v1278 = vpop.f32.mrb[0].mxu0
      %1279 = vmatprep.mubr.f32.mxu0 0.0
      %1280 = vmatmul.mubr.f32.gmra.mrb[0].mxu0 %v1101
      %v1281 = vpop.f32.mrb[0].mxu0
      %v1282 = vadd.f32 0.0, %v1281
      %v1283 = vpop.f32.mrb[0].mxu0
      %1284 = vmatprep.mubr.f32.mxu0 0.0
      %1285 = vmatmul.mubr.f32.gmra.mrb[0].mxu0 %v1104
      %v1286 = vpop.f32.mrb[0].mxu0
      %v1287 = vadd.f32 0.0, %v1286
      %v1288 = vpop.f32.mrb[0].mxu0
      %1289 = vmatprep.mubr.f32.mxu0 0.0
      %1290 = vmatmul.mubr.f32.gmra.mrb[0].mxu0 %v1107
      %v1291 = vpop.f32.mrb[0].mxu0
      %v1292 = vadd.f32 0.0, %v1291
      %v1293 = vpop.f32.mrb[0].mxu0
      %1294 = vmatprep.mubr.f32.mxu0 0.0
      %1295 = vmatmul.mubr.f32.gmra.mrb[0].mxu0 %v1110
      %v1296 = vpop.f32.mrb[0].mxu0
      %v1297 = vadd.f32 0.0, %v1296
      %v1298 = vpop.f32.mrb[0].mxu0
      %1299 = vmatprep.mubr.f32.mxu0 0.0
      %1300 = vmatmul.mubr.f32.gmra.mrb[0].mxu0 %v1113
      %v1301 = vpop.f32.mrb[0].mxu0
      %v1302 = vadd.f32 0.0, %v1301
      %v1303 = vpop.f32.mrb[0].mxu0
      %1304 = vmatprep.mubr.f32.mxu0 0.0
      %1305 = vmatmul.mubr.f32.gmra.mrb[0].mxu0 %v1116
      %v1306 = vpop.f32.mrb[0].mxu0
      %v1307 = vadd.f32 0.0, %v1306
      %v1308 = vpop.f32.mrb[0].mxu0
      %1309 = vmatprep.mubr.f32.mxu0 0.0
      %1310 = vmatmul.mubr.f32.gmra.mrb[0].mxu0 %v1119
      %v1311 = vpop.f32.mrb[0].mxu0
      %v1312 = vadd.f32 0.0, %v1311
      %v1313 = vpop.f32.mrb[0].mxu0
      %1314 = vmatprep.mubr.f32.mxu0 0.0
      %1315 = vmatmul.mubr.f32.gmra.mrb[0].mxu0 %v1122
      %v1316 = vpop.f32.mrb[0].mxu0
      %v1317 = vadd.f32 0.0, %v1316
      %v1318 = vpop.f32.mrb[0].mxu0
      %1319 = vmatprep.mubr.f32.mxu0 0.0
      %1320 = vmatmul.mubr.f32.gmra.mrb[0].mxu0 %v1125
      %v1321 = vpop.f32.mrb[0].mxu0
      %v1322 = vadd.f32 0.0, %v1321
      %v1323 = vpop.f32.mrb[0].mxu0
      %1324 = vmatprep.mubr.f32.mxu0 0.0
      %1325 = vmatmul.mubr.f32.gmra.mrb[0].mxu0 %v1128
      %v1326 = vpop.f32.mrb[0].mxu0
      %v1327 = vadd.f32 0.0, %v1326
      %v1328 = vpop.f32.mrb[0].mxu0
      %1329 = vmatprep.mubr.f32.mxu0 0.0
      %1330 = vmatmul.mubr.f32.gmra.mrb[0].mxu0 %v1131
      %v1331 = vpop.f32.mrb[0].mxu0
      %v1332 = vadd.f32 0.0, %v1331
      %v1333 = vpop.f32.mrb[0].mxu0
      %1334 = vmatprep.mubr.f32.mxu0 0.0
      %1335 = vmatmul.mubr.f32.gmra.mrb[0].mxu0 %v1134
      %v1336 = vpop.f32.mrb[0].mxu0
      %v1337 = vadd.f32 0.0, %v1336
      %v1338 = vpop.f32.mrb[0].mxu0
      %1339 = vmatprep.mubr.f32.mxu0 0.0
      %1340 = vmatmul.mubr.f32.gmra.mrb[0].mxu0 %v1137
      %v1341 = vpop.f32.mrb[0].mxu0
      %v1342 = vadd.f32 0.0, %v1341
      %v1343 = vpop.f32.mrb[0].mxu0
      %1344 = vmatprep.mubr.f32.mxu0 0.0
      %1345 = vmatmul.mubr.f32.gmra.mrb[0].mxu0 %v1140
      %v1346 = vpop.f32.mrb[0].mxu0
      %v1347 = vadd.f32 0.0, %v1346
      %v1348 = vpop.f32.mrb[0].mxu0
      %1349 = vmatprep.mubr.f32.mxu0 0.0
      %1350 = vmatmul.mubr.f32.gmra.mrb[0].mxu0 %v1143
      %v1351 = vpop.f32.mrb[0].mxu0
      %v1352 = vadd.f32 0.0, %v1351
      %v1353 = vpop.f32.mrb[0].mxu0
      %1354 = vmatprep.mubr.f32.mxu0 0.0
      %1355 = vmatmul.mubr.f32.gmra.mrb[0].mxu0 %v1146
      %v1356 = vpop.f32.mrb[0].mxu0
      %v1357 = vadd.f32 0.0, %v1356
      %v1358 = vpop.f32.mrb[0].mxu0
      %1359 = vmatprep.mubr.f32.mxu0 0.0
      %1360 = vmatmul.mubr.f32.gmra.mrb[0].mxu0 %v1149
      %v1361 = vpop.f32.mrb[0].mxu0
      %v1362 = vadd.f32 0.0, %v1361
      %v1363 = vpop.f32.mrb[0].mxu0
      %1364 = vmatprep.mubr.f32.mxu0 0.0
      %1365 = vmatmul.mubr.f32.gmra.mrb[0].mxu0 %v1152
      %v1366 = vpop.f32.mrb[0].mxu0
      %v1367 = vadd.f32 0.0, %v1366
      %v1368 = vpop.f32.mrb[0].mxu0
      %1369 = vmatprep.mubr.f32.mxu0 0.0
      %1370 = vmatmul.mubr.f32.gmra.mrb[0].mxu0 %v1155
      %v1371 = vpop.f32.mrb[0].mxu0
      %v1372 = vadd.f32 0.0, %v1371
      %v1373 = vpop.f32.mrb[0].mxu0
      %1374 = vmatprep.mubr.f32.mxu0 0.0
      %1375 = vmatmul.mubr.f32.gmra.mrb[0].mxu0 %v1158
      %v1376 = vpop.f32.mrb[0].mxu0
      %v1377 = vadd.f32 0.0, %v1376
      %v1378 = vpop.f32.mrb[0].mxu0
      %1379 = vmatprep.mubr.f32.mxu0 0.0
      %1380 = vmatmul.mubr.f32.gmra.mrb[0].mxu0 %v1161
      %v1381 = vpop.f32.mrb[0].mxu0
      %v1382 = vadd.f32 0.0, %v1381
      %v1383 = vpop.f32.mrb[0].mxu0
      %1384 = vmatprep.mubr.f32.mxu0 0.0
      %1385 = vmatmul.mubr.f32.gmra.mrb[0].mxu0 %v1164
      %v1386 = vpop.f32.mrb[0].mxu0
      %v1387 = vadd.f32 0.0, %v1386
      %v1388 = vpop.f32.mrb[0].mxu0
      %1389 = vmatprep.mubr.f32.mxu0 0.0
      %1390 = vmatmul.mubr.f32.gmra.mrb[0].mxu0 %v1167
      %v1391 = vpop.f32.mrb[0].mxu0
      %v1392 = vadd.f32 0.0, %v1391
      %v1393 = vpop.f32.mrb[0].mxu0
      %1394 = vmatprep.mubr.f32.mxu0 0.0
      %1395 = vmatmul.mubr.f32.gmra.mrb[0].mxu0 %v1170
      %v1396 = vpop.f32.mrb[0].mxu0
      %v1397 = vadd.f32 0.0, %v1396
      %v1398 = vpop.f32.mrb[0].mxu0
      %1399 = vdwg.mxu0
      %v1400 = vld [vmem:[#allocation2] sm:$0xff]
      %v1401 = vld [vmem:[#allocation2 + $0x8] sm:$0xff]
      %v1402 = vld [vmem:[#allocation2 + $0x10] sm:$0xff]
      %v1403 = vld [vmem:[#allocation2 + $0x18] sm:$0xff]
      %v1404 = vld [vmem:[#allocation2 + $0x20] sm:$0xff]
      %v1405 = vld [vmem:[#allocation2 + $0x28] sm:$0xff]
      %v1406 = vld [vmem:[#allocation2 + $0x30] sm:$0xff]
      %v1407 = vld [vmem:[#allocation2 + $0x38] sm:$0xff]
      %v1408 = vld [vmem:[#allocation2 + $0x40] sm:$0xff]
      %v1409 = vld [vmem:[#allocation2 + $0x48] sm:$0xff]
      %v1410 = vld [vmem:[#allocation2 + $0x50] sm:$0xff]
      %v1411 = vld [vmem:[#allocation2 + $0x58] sm:$0xff]
      %v1412 = vld [vmem:[#allocation2 + $0x60] sm:$0xff]
      %v1413 = vld [vmem:[#allocation2 + $0x68] sm:$0xff]
      %v1414 = vld [vmem:[#allocation2 + $0x70] sm:$0xff]
      %v1415 = vld [vmem:[#allocation2 + $0x78] sm:$0xff]
      %v1416 = vld [vmem:[#allocation2 + $0x80] sm:$0xff]
      %v1417 = vld [vmem:[#allocation2 + $0x88] sm:$0xff]
      %v1418 = vld [vmem:[#allocation2 + $0x90] sm:$0xff]
      %v1419 = vld [vmem:[#allocation2 + $0x98] sm:$0xff]
      %v1420 = vld [vmem:[#allocation2 + $0xa0] sm:$0xff]
      %v1421 = vld [vmem:[#allocation2 + $0xa8] sm:$0xff]
      %v1422 = vld [vmem:[#allocation2 + $0xb0] sm:$0xff]
      %v1423 = vld [vmem:[#allocation2 + $0xb8] sm:$0xff]
      %v1424 = vld [vmem:[#allocation2 + $0xc0] sm:$0xff]
      %v1425 = vld [vmem:[#allocation2 + $0xc8] sm:$0xff]
      %v1426 = vld [vmem:[#allocation2 + $0xd0] sm:$0xff]
      %v1427 = vld [vmem:[#allocation2 + $0xd8] sm:$0xff]
      %v1428 = vld [vmem:[#allocation2 + $0xe0] sm:$0xff]
      %v1429 = vld [vmem:[#allocation2 + $0xe8] sm:$0xff]
      %v1430 = vld [vmem:[#allocation2 + $0xf0] sm:$0xff]
      %v1431 = vld [vmem:[#allocation2 + $0xf8] sm:$0xff]
      %v1432 = vadd.f32 %v1400, %v1242
      %v1433 = vadd.f32 %v1401, %v1247
      %v1434 = vadd.f32 %v1402, %v1252
      %v1435 = vadd.f32 %v1403, %v1257
      %v1436 = vadd.f32 %v1404, %v1262
      %v1437 = vadd.f32 %v1405, %v1267
      %v1438 = vadd.f32 %v1406, %v1272
      %v1439 = vadd.f32 %v1407, %v1277
      %v1440 = vadd.f32 %v1408, %v1282
      %v1441 = vadd.f32 %v1409, %v1287
      %v1442 = vadd.f32 %v1410, %v1292
      %v1443 = vadd.f32 %v1411, %v1297
      %v1444 = vadd.f32 %v1412, %v1302
      %v1445 = vadd.f32 %v1413, %v1307
      %v1446 = vadd.f32 %v1414, %v1312
      %v1447 = vadd.f32 %v1415, %v1317
      %v1448 = vadd.f32 %v1416, %v1322
      %v1449 = vadd.f32 %v1417, %v1327
      %v1450 = vadd.f32 %v1418, %v1332
      %v1451 = vadd.f32 %v1419, %v1337
      %v1452 = vadd.f32 %v1420, %v1342
      %v1453 = vadd.f32 %v1421, %v1347
      %v1454 = vadd.f32 %v1422, %v1352
      %v1455 = vadd.f32 %v1423, %v1357
      %v1456 = vadd.f32 %v1424, %v1362
      %v1457 = vadd.f32 %v1425, %v1367
      %v1458 = vadd.f32 %v1426, %v1372
      %v1459 = vadd.f32 %v1427, %v1377
      %v1460 = vadd.f32 %v1428, %v1382
      %v1461 = vadd.f32 %v1429, %v1387
      %v1462 = vadd.f32 %v1430, %v1392
      %v1463 = vadd.f32 %v1431, %v1397
      %1464 = vst [vmem:[#allocation2] sm:$0xff] %v1432
      %1465 = vst [vmem:[#allocation2 + $0x8] sm:$0xff] %v1433
      %1466 = vst [vmem:[#allocation2 + $0x10] sm:$0xff] %v1434
      %1467 = vst [vmem:[#allocation2 + $0x18] sm:$0xff] %v1435
      %1468 = vst [vmem:[#allocation2 + $0x20] sm:$0xff] %v1436
      %1469 = vst [vmem:[#allocation2 + $0x28] sm:$0xff] %v1437
      %1470 = vst [vmem:[#allocation2 + $0x30] sm:$0xff] %v1438
      %1471 = vst [vmem:[#allocation2 + $0x38] sm:$0xff] %v1439
      %1472 = vst [vmem:[#allocation2 + $0x40] sm:$0xff] %v1440
      %1473 = vst [vmem:[#allocation2 + $0x48] sm:$0xff] %v1441
      %1474 = vst [vmem:[#allocation2 + $0x50] sm:$0xff] %v1442
      %1475 = vst [vmem:[#allocation2 + $0x58] sm:$0xff] %v1443
      %1476 = vst [vmem:[#allocation2 + $0x60] sm:$0xff] %v1444
      %1477 = vst [vmem:[#allocation2 + $0x68] sm:$0xff] %v1445
      %1478 = vst [vmem:[#allocation2 + $0x70] sm:$0xff] %v1446
      %1479 = vst [vmem:[#allocation2 + $0x78] sm:$0xff] %v1447
      %1480 = vst [vmem:[#allocation2 + $0x80] sm:$0xff] %v1448
      %1481 = vst [vmem:[#allocation2 + $0x88] sm:$0xff] %v1449
      %1482 = vst [vmem:[#allocation2 + $0x90] sm:$0xff] %v1450
      %1483 = vst [vmem:[#allocation2 + $0x98] sm:$0xff] %v1451
      %1484 = vst [vmem:[#allocation2 + $0xa0] sm:$0xff] %v1452
      %1485 = vst [vmem:[#allocation2 + $0xa8] sm:$0xff] %v1453
      %1486 = vst [vmem:[#allocation2 + $0xb0] sm:$0xff] %v1454
      %1487 = vst [vmem:[#allocation2 + $0xb8] sm:$0xff] %v1455
      %1488 = vst [vmem:[#allocation2 + $0xc0] sm:$0xff] %v1456
      %1489 = vst [vmem:[#allocation2 + $0xc8] sm:$0xff] %v1457
      %1490 = vst [vmem:[#allocation2 + $0xd0] sm:$0xff] %v1458
      %1491 = vst [vmem:[#allocation2 + $0xd8] sm:$0xff] %v1459
      %1492 = vst [vmem:[#allocation2 + $0xe0] sm:$0xff] %v1460
      %1493 = vst [vmem:[#allocation2 + $0xe8] sm:$0xff] %v1461
      %1494 = vst [vmem:[#allocation2 + $0xf0] sm:$0xff] %v1462
      %1495 = vst [vmem:[#allocation2 + $0xf8] sm:$0xff] %v1463
      %s1496 = sadd.s32 %s194, 1
      %s1497 = smul.u32 %s1496, 24
      %s1498 = scalar_lea.vmem %s183, %s1497
      %v1499 = vld [vmem:[%s1498] sm:$0xff]
      %v1500 = vld [vmem:[%s1498 + $0x8] sm:$0xff]
      %v1501 = vld [vmem:[%s1498 + $0x18] sm:$0xff]
      %v1502 = vld [vmem:[%s1498 + $0x20] sm:$0xff]
      %v1503 = vld [vmem:[%s1498 + $0x30] sm:$0xff]
      %v1504 = vld [vmem:[%s1498 + $0x38] sm:$0xff]
      %v1505 = vld [vmem:[%s1498 + $0x48] sm:$0xff]
      %v1506 = vld [vmem:[%s1498 + $0x50] sm:$0xff]
      %v1507 = vld [vmem:[%s1498 + $0x60] sm:$0xff]
      %v1508 = vld [vmem:[%s1498 + $0x68] sm:$0xff]
      %v1509 = vld [vmem:[%s1498 + $0x78] sm:$0xff]
      %v1510 = vld [vmem:[%s1498 + $0x80] sm:$0xff]
      %v1511 = vld [vmem:[%s1498 + $0x90] sm:$0xff]
      %v1512 = vld [vmem:[%s1498 + $0x98] sm:$0xff]
      %v1513 = vld [vmem:[%s1498 + $0xa8] sm:$0xff]
      %v1514 = vld [vmem:[%s1498 + $0xb0] sm:$0xff]
      %v1515 = vld [vmem:[%s1498 + $0xc0] sm:$0xff]
      %v1516 = vld [vmem:[%s1498 + $0xc8] sm:$0xff]
      %v1517 = vld [vmem:[%s1498 + $0xd8] sm:$0xff]
      %v1518 = vld [vmem:[%s1498 + $0xe0] sm:$0xff]
      %v1519 = vld [vmem:[%s1498 + $0xf0] sm:$0xff]
      %v1520 = vld [vmem:[%s1498 + $0xf8] sm:$0xff]
      %v1521 = vld [vmem:[%s1498 + $0x108] sm:$0xff]
      %v1522 = vld [vmem:[%s1498 + $0x110] sm:$0xff]
      %v1523 = vld [vmem:[%s1498 + $0x120] sm:$0xff]
      %v1524 = vld [vmem:[%s1498 + $0x128] sm:$0xff]
      %v1525 = vld [vmem:[%s1498 + $0x138] sm:$0xff]
      %v1526 = vld [vmem:[%s1498 + $0x140] sm:$0xff]
      %v1527 = vld [vmem:[%s1498 + $0x150] sm:$0xff]
      %v1528 = vld [vmem:[%s1498 + $0x158] sm:$0xff]
      %v1529 = vld [vmem:[%s1498 + $0x168] sm:$0xff]
      %v1530 = vld [vmem:[%s1498 + $0x170] sm:$0xff]
      %s1531 = scalar_lea.vmem %s1, 12
      %v1532 = vld [vmem:[%s1531] sm:$0xf]
      %v1534 = vsel %vm230, %v1499, 0
      %v1537 = vsel %vm230, %v1500, 0
      %v1540 = vsel %vm230, %v1501, 0
      %v1543 = vsel %vm230, %v1502, 0
      %v1546 = vsel %vm230, %v1503, 0
      %v1549 = vsel %vm230, %v1504, 0
      %v1552 = vsel %vm230, %v1505, 0
      %v1555 = vsel %vm230, %v1506, 0
      %v1558 = vsel %vm230, %v1507, 0
      %v1561 = vsel %vm230, %v1508, 0
      %v1564 = vsel %vm230, %v1509, 0
      %v1567 = vsel %vm230, %v1510, 0
      %v1570 = vsel %vm230, %v1511, 0
      %v1573 = vsel %vm230, %v1512, 0
      %v1576 = vsel %vm230, %v1513, 0
      %v1579 = vsel %vm230, %v1514, 0
      %v1582 = vsel %vm230, %v1515, 0
      %v1585 = vsel %vm230, %v1516, 0
      %v1588 = vsel %vm230, %v1517, 0
      %v1591 = vsel %vm230, %v1518, 0
      %v1594 = vsel %vm230, %v1519, 0
      %v1597 = vsel %vm230, %v1520, 0
      %v1600 = vsel %vm230, %v1521, 0
      %v1603 = vsel %vm230, %v1522, 0
      %v1606 = vsel %vm230, %v1523, 0
      %v1609 = vsel %vm230, %v1524, 0
      %v1612 = vsel %vm230, %v1525, 0
      %v1615 = vsel %vm230, %v1526, 0
      %v1618 = vsel %vm230, %v1527, 0
      %v1621 = vsel %vm230, %v1528, 0
      %v1624 = vsel %vm230, %v1529, 0
      %v1627 = vsel %vm230, %v1530, 0
      %v1630 = vsel %vm327, %v1532, 0
      %1632 = vmatprep.subr.mxu0 0.0
      %1633 = vmatpush1.msra.mxu0 %v1630
      %1634 = vmatprep.subr.mxu0 0.0
      %1635 = vmatpush1.msra.mxu0 0.0
      %1636 = vmatprep.subr.mxu0 0.0
      %1637 = vmatpush1.msra.mxu0 0.0
      %1638 = vmatprep.subr.mxu0 0.0
      %1639 = vmatpush1.msra.mxu0 0.0
      %1640 = vmatprep.subr.mxu0 0.0
      %1641 = vmatpush1.msra.mxu0 0.0
      %1642 = vmatprep.subr.mxu0 0.0
      %1643 = vmatpush1.msra.mxu0 0.0
      %1644 = vmatprep.subr.mxu0 0.0
      %1645 = vmatpush1.msra.mxu0 0.0
      %1646 = vmatprep.subr.mxu0 0.0
      %1647 = vmatpush1.msra.mxu0 0.0
      %1648 = vmatprep.subr.mxu0 0.0
      %1649 = vmatpush1.msra.mxu0 0.0
      %1650 = vmatprep.subr.mxu0 0.0
      %1651 = vmatpush1.msra.mxu0 0.0
      %1652 = vmatprep.subr.mxu0 0.0
      %1653 = vmatpush1.msra.mxu0 0.0
      %1654 = vmatprep.subr.mxu0 0.0
      %1655 = vmatpush1.msra.mxu0 0.0
      %1656 = vmatprep.subr.mxu0 0.0
      %1657 = vmatpush1.msra.mxu0 0.0
      %1658 = vmatprep.subr.mxu0 0.0
      %1659 = vmatpush1.msra.mxu0 0.0
      %1660 = vmatprep.subr.mxu0 0.0
      %1661 = vmatpush1.msra.mxu0 0.0
      %1662 = vmatprep.subr.mxu0 0.0
      %1663 = vmatpush1.msra.mxu0 0.0
      %1664 = vmatprep.subr.mxu0 0.0
      %1665 = vmatpush1.msra.mxu0 0.0
      %1666 = vmatprep.subr.mxu0 0.0
      %1667 = vmatpush1.msra.mxu0 0.0
      %1668 = vmatprep.subr.mxu0 0.0
      %1669 = vmatpush1.msra.mxu0 0.0
      %1670 = vmatprep.subr.mxu0 0.0
      %1671 = vmatpush1.msra.mxu0 0.0
      %1672 = vmatprep.subr.mxu0 0.0
      %1673 = vmatpush1.msra.mxu0 0.0
      %1674 = vmatprep.subr.mxu0 0.0
      %1675 = vmatpush1.msra.mxu0 0.0
      %1676 = vmatprep.subr.mxu0 0.0
      %1677 = vmatpush1.msra.mxu0 0.0
      %1678 = vmatprep.subr.mxu0 0.0
      %1679 = vmatpush1.msra.mxu0 0.0
      %1680 = vmatprep.subr.mxu0 0.0
      %1681 = vmatpush1.msra.mxu0 0.0
      %1682 = vmatprep.subr.mxu0 0.0
      %1683 = vmatpush1.msra.mxu0 0.0
      %1684 = vmatprep.subr.mxu0 0.0
      %1685 = vmatpush1.msra.mxu0 0.0
      %1686 = vmatprep.subr.mxu0 0.0
      %1687 = vmatpush1.msra.mxu0 0.0
      %1688 = vmatprep.subr.mxu0 0.0
      %1689 = vmatpush1.msra.mxu0 0.0
      %1690 = vmatprep.subr.mxu0 0.0
      %1691 = vmatpush1.msra.mxu0 0.0
      %1692 = vmatprep.subr.mxu0 0.0
      %1693 = vmatpush1.msra.mxu0 0.0
      %1694 = vmatprep.subr.mxu0 0.0
      %1695 = vmatpush1.msra.mxu0 0.0
      %1696 = vmatprep.mubr.f32.mxu0 0.0
      %1697 = vmatmul.mubr.f32.gmra.mrb[0].mxu0 %v1534
      %v1698 = vpop.f32.mrb[0].mxu0
      %v1699 = vadd.f32 0.0, %v1698
      %v1700 = vpop.f32.mrb[0].mxu0
      %1701 = vmatprep.mubr.f32.mxu0 0.0
      %1702 = vmatmul.mubr.f32.gmra.mrb[0].mxu0 %v1537
      %v1703 = vpop.f32.mrb[0].mxu0
      %v1704 = vadd.f32 0.0, %v1703
      %v1705 = vpop.f32.mrb[0].mxu0
      %1706 = vmatprep.mubr.f32.mxu0 0.0
      %1707 = vmatmul.mubr.f32.gmra.mrb[0].mxu0 %v1540
      %v1708 = vpop.f32.mrb[0].mxu0
      %v1709 = vadd.f32 0.0, %v1708
      %v1710 = vpop.f32.mrb[0].mxu0
      %1711 = vmatprep.mubr.f32.mxu0 0.0
      %1712 = vmatmul.mubr.f32.gmra.mrb[0].mxu0 %v1543
      %v1713 = vpop.f32.mrb[0].mxu0
      %v1714 = vadd.f32 0.0, %v1713
      %v1715 = vpop.f32.mrb[0].mxu0
      %1716 = vmatprep.mubr.f32.mxu0 0.0
      %1717 = vmatmul.mubr.f32.gmra.mrb[0].mxu0 %v1546
      %v1718 = vpop.f32.mrb[0].mxu0
      %v1719 = vadd.f32 0.0, %v1718
      %v1720 = vpop.f32.mrb[0].mxu0
      %1721 = vmatprep.mubr.f32.mxu0 0.0
      %1722 = vmatmul.mubr.f32.gmra.mrb[0].mxu0 %v1549
      %v1723 = vpop.f32.mrb[0].mxu0
      %v1724 = vadd.f32 0.0, %v1723
      %v1725 = vpop.f32.mrb[0].mxu0
      %1726 = vmatprep.mubr.f32.mxu0 0.0
      %1727 = vmatmul.mubr.f32.gmra.mrb[0].mxu0 %v1552
      %v1728 = vpop.f32.mrb[0].mxu0
      %v1729 = vadd.f32 0.0, %v1728
      %v1730 = vpop.f32.mrb[0].mxu0
      %1731 = vmatprep.mubr.f32.mxu0 0.0
      %1732 = vmatmul.mubr.f32.gmra.mrb[0].mxu0 %v1555
      %v1733 = vpop.f32.mrb[0].mxu0
      %v1734 = vadd.f32 0.0, %v1733
      %v1735 = vpop.f32.mrb[0].mxu0
      %1736 = vmatprep.mubr.f32.mxu0 0.0
      %1737 = vmatmul.mubr.f32.gmra.mrb[0].mxu0 %v1558
      %v1738 = vpop.f32.mrb[0].mxu0
      %v1739 = vadd.f32 0.0, %v1738
      %v1740 = vpop.f32.mrb[0].mxu0
      %1741 = vmatprep.mubr.f32.mxu0 0.0
      %1742 = vmatmul.mubr.f32.gmra.mrb[0].mxu0 %v1561
      %v1743 = vpop.f32.mrb[0].mxu0
      %v1744 = vadd.f32 0.0, %v1743
      %v1745 = vpop.f32.mrb[0].mxu0
      %1746 = vmatprep.mubr.f32.mxu0 0.0
      %1747 = vmatmul.mubr.f32.gmra.mrb[0].mxu0 %v1564
      %v1748 = vpop.f32.mrb[0].mxu0
      %v1749 = vadd.f32 0.0, %v1748
      %v1750 = vpop.f32.mrb[0].mxu0
      %1751 = vmatprep.mubr.f32.mxu0 0.0
      %1752 = vmatmul.mubr.f32.gmra.mrb[0].mxu0 %v1567
      %v1753 = vpop.f32.mrb[0].mxu0
      %v1754 = vadd.f32 0.0, %v1753
      %v1755 = vpop.f32.mrb[0].mxu0
      %1756 = vmatprep.mubr.f32.mxu0 0.0
      %1757 = vmatmul.mubr.f32.gmra.mrb[0].mxu0 %v1570
      %v1758 = vpop.f32.mrb[0].mxu0
      %v1759 = vadd.f32 0.0, %v1758
      %v1760 = vpop.f32.mrb[0].mxu0
      %1761 = vmatprep.mubr.f32.mxu0 0.0
      %1762 = vmatmul.mubr.f32.gmra.mrb[0].mxu0 %v1573
      %v1763 = vpop.f32.mrb[0].mxu0
      %v1764 = vadd.f32 0.0, %v1763
      %v1765 = vpop.f32.mrb[0].mxu0
      %1766 = vmatprep.mubr.f32.mxu0 0.0
      %1767 = vmatmul.mubr.f32.gmra.mrb[0].mxu0 %v1576
      %v1768 = vpop.f32.mrb[0].mxu0
      %v1769 = vadd.f32 0.0, %v1768
      %v1770 = vpop.f32.mrb[0].mxu0
      %1771 = vmatprep.mubr.f32.mxu0 0.0
      %1772 = vmatmul.mubr.f32.gmra.mrb[0].mxu0 %v1579
      %v1773 = vpop.f32.mrb[0].mxu0
      %v1774 = vadd.f32 0.0, %v1773
      %v1775 = vpop.f32.mrb[0].mxu0
      %1776 = vmatprep.mubr.f32.mxu0 0.0
      %1777 = vmatmul.mubr.f32.gmra.mrb[0].mxu0 %v1582
      %v1778 = vpop.f32.mrb[0].mxu0
      %v1779 = vadd.f32 0.0, %v1778
      %v1780 = vpop.f32.mrb[0].mxu0
      %1781 = vmatprep.mubr.f32.mxu0 0.0
      %1782 = vmatmul.mubr.f32.gmra.mrb[0].mxu0 %v1585
      %v1783 = vpop.f32.mrb[0].mxu0
      %v1784 = vadd.f32 0.0, %v1783
      %v1785 = vpop.f32.mrb[0].mxu0
      %1786 = vmatprep.mubr.f32.mxu0 0.0
      %1787 = vmatmul.mubr.f32.gmra.mrb[0].mxu0 %v1588
      %v1788 = vpop.f32.mrb[0].mxu0
      %v1789 = vadd.f32 0.0, %v1788
      %v1790 = vpop.f32.mrb[0].mxu0
      %1791 = vmatprep.mubr.f32.mxu0 0.0
      %1792 = vmatmul.mubr.f32.gmra.mrb[0].mxu0 %v1591
      %v1793 = vpop.f32.mrb[0].mxu0
      %v1794 = vadd.f32 0.0, %v1793
      %v1795 = vpop.f32.mrb[0].mxu0
      %1796 = vmatprep.mubr.f32.mxu0 0.0
      %1797 = vmatmul.mubr.f32.gmra.mrb[0].mxu0 %v1594
      %v1798 = vpop.f32.mrb[0].mxu0
      %v1799 = vadd.f32 0.0, %v1798
      %v1800 = vpop.f32.mrb[0].mxu0
      %1801 = vmatprep.mubr.f32.mxu0 0.0
      %1802 = vmatmul.mubr.f32.gmra.mrb[0].mxu0 %v1597
      %v1803 = vpop.f32.mrb[0].mxu0
      %v1804 = vadd.f32 0.0, %v1803
      %v1805 = vpop.f32.mrb[0].mxu0
      %1806 = vmatprep.mubr.f32.mxu0 0.0
      %1807 = vmatmul.mubr.f32.gmra.mrb[0].mxu0 %v1600
      %v1808 = vpop.f32.mrb[0].mxu0
      %v1809 = vadd.f32 0.0, %v1808
      %v1810 = vpop.f32.mrb[0].mxu0
      %1811 = vmatprep.mubr.f32.mxu0 0.0
      %1812 = vmatmul.mubr.f32.gmra.mrb[0].mxu0 %v1603
      %v1813 = vpop.f32.mrb[0].mxu0
      %v1814 = vadd.f32 0.0, %v1813
      %v1815 = vpop.f32.mrb[0].mxu0
      %1816 = vmatprep.mubr.f32.mxu0 0.0
      %1817 = vmatmul.mubr.f32.gmra.mrb[0].mxu0 %v1606
      %v1818 = vpop.f32.mrb[0].mxu0
      %v1819 = vadd.f32 0.0, %v1818
      %v1820 = vpop.f32.mrb[0].mxu0
      %1821 = vmatprep.mubr.f32.mxu0 0.0
      %1822 = vmatmul.mubr.f32.gmra.mrb[0].mxu0 %v1609
      %v1823 = vpop.f32.mrb[0].mxu0
      %v1824 = vadd.f32 0.0, %v1823
      %v1825 = vpop.f32.mrb[0].mxu0
      %1826 = vmatprep.mubr.f32.mxu0 0.0
      %1827 = vmatmul.mubr.f32.gmra.mrb[0].mxu0 %v1612
      %v1828 = vpop.f32.mrb[0].mxu0
      %v1829 = vadd.f32 0.0, %v1828
      %v1830 = vpop.f32.mrb[0].mxu0
      %1831 = vmatprep.mubr.f32.mxu0 0.0
      %1832 = vmatmul.mubr.f32.gmra.mrb[0].mxu0 %v1615
      %v1833 = vpop.f32.mrb[0].mxu0
      %v1834 = vadd.f32 0.0, %v1833
      %v1835 = vpop.f32.mrb[0].mxu0
      %1836 = vmatprep.mubr.f32.mxu0 0.0
      %1837 = vmatmul.mubr.f32.gmra.mrb[0].mxu0 %v1618
      %v1838 = vpop.f32.mrb[0].mxu0
      %v1839 = vadd.f32 0.0, %v1838
      %v1840 = vpop.f32.mrb[0].mxu0
      %1841 = vmatprep.mubr.f32.mxu0 0.0
      %1842 = vmatmul.mubr.f32.gmra.mrb[0].mxu0 %v1621
      %v1843 = vpop.f32.mrb[0].mxu0
      %v1844 = vadd.f32 0.0, %v1843
      %v1845 = vpop.f32.mrb[0].mxu0
      %1846 = vmatprep.mubr.f32.mxu0 0.0
      %1847 = vmatmul.mubr.f32.gmra.mrb[0].mxu0 %v1624
      %v1848 = vpop.f32.mrb[0].mxu0
      %v1849 = vadd.f32 0.0, %v1848
      %v1850 = vpop.f32.mrb[0].mxu0
      %1851 = vmatprep.mubr.f32.mxu0 0.0
      %1852 = vmatmul.mubr.f32.gmra.mrb[0].mxu0 %v1627
      %v1853 = vpop.f32.mrb[0].mxu0
      %v1854 = vadd.f32 0.0, %v1853
      %v1855 = vpop.f32.mrb[0].mxu0
      %1856 = vdwg.mxu0
      %v1857 = vld [vmem:[#allocation2] sm:$0xff]
      %v1858 = vld [vmem:[#allocation2 + $0x8] sm:$0xff]
      %v1859 = vld [vmem:[#allocation2 + $0x10] sm:$0xff]
      %v1860 = vld [vmem:[#allocation2 + $0x18] sm:$0xff]
      %v1861 = vld [vmem:[#allocation2 + $0x20] sm:$0xff]
      %v1862 = vld [vmem:[#allocation2 + $0x28] sm:$0xff]
      %v1863 = vld [vmem:[#allocation2 + $0x30] sm:$0xff]
      %v1864 = vld [vmem:[#allocation2 + $0x38] sm:$0xff]
      %v1865 = vld [vmem:[#allocation2 + $0x40] sm:$0xff]
      %v1866 = vld [vmem:[#allocation2 + $0x48] sm:$0xff]
      %v1867 = vld [vmem:[#allocation2 + $0x50] sm:$0xff]
      %v1868 = vld [vmem:[#allocation2 + $0x58] sm:$0xff]
      %v1869 = vld [vmem:[#allocation2 + $0x60] sm:$0xff]
      %v1870 = vld [vmem:[#allocation2 + $0x68] sm:$0xff]
      %v1871 = vld [vmem:[#allocation2 + $0x70] sm:$0xff]
      %v1872 = vld [vmem:[#allocation2 + $0x78] sm:$0xff]
      %v1873 = vld [vmem:[#allocation2 + $0x80] sm:$0xff]
      %v1874 = vld [vmem:[#allocation2 + $0x88] sm:$0xff]
      %v1875 = vld [vmem:[#allocation2 + $0x90] sm:$0xff]
      %v1876 = vld [vmem:[#allocation2 + $0x98] sm:$0xff]
      %v1877 = vld [vmem:[#allocation2 + $0xa0] sm:$0xff]
      %v1878 = vld [vmem:[#allocation2 + $0xa8] sm:$0xff]
      %v1879 = vld [vmem:[#allocation2 + $0xb0] sm:$0xff]
      %v1880 = vld [vmem:[#allocation2 + $0xb8] sm:$0xff]
      %v1881 = vld [vmem:[#allocation2 + $0xc0] sm:$0xff]
      %v1882 = vld [vmem:[#allocation2 + $0xc8] sm:$0xff]
      %v1883 = vld [vmem:[#allocation2 + $0xd0] sm:$0xff]
      %v1884 = vld [vmem:[#allocation2 + $0xd8] sm:$0xff]
      %v1885 = vld [vmem:[#allocation2 + $0xe0] sm:$0xff]
      %v1886 = vld [vmem:[#allocation2 + $0xe8] sm:$0xff]
      %v1887 = vld [vmem:[#allocation2 + $0xf0] sm:$0xff]
      %v1888 = vld [vmem:[#allocation2 + $0xf8] sm:$0xff]
      %v1889 = vadd.f32 %v1857, %v1699
      %v1890 = vadd.f32 %v1858, %v1704
      %v1891 = vadd.f32 %v1859, %v1709
      %v1892 = vadd.f32 %v1860, %v1714
      %v1893 = vadd.f32 %v1861, %v1719
      %v1894 = vadd.f32 %v1862, %v1724
      %v1895 = vadd.f32 %v1863, %v1729
      %v1896 = vadd.f32 %v1864, %v1734
      %v1897 = vadd.f32 %v1865, %v1739
      %v1898 = vadd.f32 %v1866, %v1744
      %v1899 = vadd.f32 %v1867, %v1749
      %v1900 = vadd.f32 %v1868, %v1754
      %v1901 = vadd.f32 %v1869, %v1759
      %v1902 = vadd.f32 %v1870, %v1764
      %v1903 = vadd.f32 %v1871, %v1769
      %v1904 = vadd.f32 %v1872, %v1774
      %v1905 = vadd.f32 %v1873, %v1779
      %v1906 = vadd.f32 %v1874, %v1784
      %v1907 = vadd.f32 %v1875, %v1789
      %v1908 = vadd.f32 %v1876, %v1794
      %v1909 = vadd.f32 %v1877, %v1799
      %v1910 = vadd.f32 %v1878, %v1804
      %v1911 = vadd.f32 %v1879, %v1809
      %v1912 = vadd.f32 %v1880, %v1814
      %v1913 = vadd.f32 %v1881, %v1819
      %v1914 = vadd.f32 %v1882, %v1824
      %v1915 = vadd.f32 %v1883, %v1829
      %v1916 = vadd.f32 %v1884, %v1834
      %v1917 = vadd.f32 %v1885, %v1839
      %v1918 = vadd.f32 %v1886, %v1844
      %v1919 = vadd.f32 %v1887, %v1849
      %v1920 = vadd.f32 %v1888, %v1854
      %1921 = vst [vmem:[#allocation2] sm:$0xff] %v1889
      %1922 = vst [vmem:[#allocation2 + $0x8] sm:$0xff] %v1890
      %1923 = vst [vmem:[#allocation2 + $0x10] sm:$0xff] %v1891
      %1924 = vst [vmem:[#allocation2 + $0x18] sm:$0xff] %v1892
      %1925 = vst [vmem:[#allocation2 + $0x20] sm:$0xff] %v1893
      %1926 = vst [vmem:[#allocation2 + $0x28] sm:$0xff] %v1894
      %1927 = vst [vmem:[#allocation2 + $0x30] sm:$0xff] %v1895
      %1928 = vst [vmem:[#allocation2 + $0x38] sm:$0xff] %v1896
      %1929 = vst [vmem:[#allocation2 + $0x40] sm:$0xff] %v1897
      %1930 = vst [vmem:[#allocation2 + $0x48] sm:$0xff] %v1898
      %1931 = vst [vmem:[#allocation2 + $0x50] sm:$0xff] %v1899
      %1932 = vst [vmem:[#allocation2 + $0x58] sm:$0xff] %v1900
      %1933 = vst [vmem:[#allocation2 + $0x60] sm:$0xff] %v1901
      %1934 = vst [vmem:[#allocation2 + $0x68] sm:$0xff] %v1902
      %1935 = vst [vmem:[#allocation2 + $0x70] sm:$0xff] %v1903
      %1936 = vst [vmem:[#allocation2 + $0x78] sm:$0xff] %v1904
      %1937 = vst [vmem:[#allocation2 + $0x80] sm:$0xff] %v1905
      %1938 = vst [vmem:[#allocation2 + $0x88] sm:$0xff] %v1906
      %1939 = vst [vmem:[#allocation2 + $0x90] sm:$0xff] %v1907
      %1940 = vst [vmem:[#allocation2 + $0x98] sm:$0xff] %v1908
      %1941 = vst [vmem:[#allocation2 + $0xa0] sm:$0xff] %v1909
      %1942 = vst [vmem:[#allocation2 + $0xa8] sm:$0xff] %v1910
      %1943 = vst [vmem:[#allocation2 + $0xb0] sm:$0xff] %v1911
      %1944 = vst [vmem:[#allocation2 + $0xb8] sm:$0xff] %v1912
      %1945 = vst [vmem:[#allocation2 + $0xc0] sm:$0xff] %v1913
      %1946 = vst [vmem:[#allocation2 + $0xc8] sm:$0xff] %v1914
      %1947 = vst [vmem:[#allocation2 + $0xd0] sm:$0xff] %v1915
      %1948 = vst [vmem:[#allocation2 + $0xd8] sm:$0xff] %v1916
      %1949 = vst [vmem:[#allocation2 + $0xe0] sm:$0xff] %v1917
      %1950 = vst [vmem:[#allocation2 + $0xe8] sm:$0xff] %v1918
      %1951 = vst [vmem:[#allocation2 + $0xf0] sm:$0xff] %v1919
      %1952 = vst [vmem:[#allocation2 + $0xf8] sm:$0xff] %v1920
      %v1953 = vld [vmem:[%s1498 + $0x1] sm:$0xff]
      %v1954 = vld [vmem:[%s1498 + $0x9] sm:$0xff]
      %v1955 = vld [vmem:[%s1498 + $0x19] sm:$0xff]
      %v1956 = vld [vmem:[%s1498 + $0x21] sm:$0xff]
      %v1957 = vld [vmem:[%s1498 + $0x31] sm:$0xff]
      %v1958 = vld [vmem:[%s1498 + $0x39] sm:$0xff]
      %v1959 = vld [vmem:[%s1498 + $0x49] sm:$0xff]
      %v1960 = vld [vmem:[%s1498 + $0x51] sm:$0xff]
      %v1961 = vld [vmem:[%s1498 + $0x61] sm:$0xff]
      %v1962 = vld [vmem:[%s1498 + $0x69] sm:$0xff]
      %v1963 = vld [vmem:[%s1498 + $0x79] sm:$0xff]
      %v1964 = vld [vmem:[%s1498 + $0x81] sm:$0xff]
      %v1965 = vld [vmem:[%s1498 + $0x91] sm:$0xff]
      %v1966 = vld [vmem:[%s1498 + $0x99] sm:$0xff]
      %v1967 = vld [vmem:[%s1498 + $0xa9] sm:$0xff]
      %v1968 = vld [vmem:[%s1498 + $0xb1] sm:$0xff]
      %v1969 = vld [vmem:[%s1498 + $0xc1] sm:$0xff]
      %v1970 = vld [vmem:[%s1498 + $0xc9] sm:$0xff]
      %v1971 = vld [vmem:[%s1498 + $0xd9] sm:$0xff]
      %v1972 = vld [vmem:[%s1498 + $0xe1] sm:$0xff]
      %v1973 = vld [vmem:[%s1498 + $0xf1] sm:$0xff]
      %v1974 = vld [vmem:[%s1498 + $0xf9] sm:$0xff]
      %v1975 = vld [vmem:[%s1498 + $0x109] sm:$0xff]
      %v1976 = vld [vmem:[%s1498 + $0x111] sm:$0xff]
      %v1977 = vld [vmem:[%s1498 + $0x121] sm:$0xff]
      %v1978 = vld [vmem:[%s1498 + $0x129] sm:$0xff]
      %v1979 = vld [vmem:[%s1498 + $0x139] sm:$0xff]
      %v1980 = vld [vmem:[%s1498 + $0x141] sm:$0xff]
      %v1981 = vld [vmem:[%s1498 + $0x151] sm:$0xff]
      %v1982 = vld [vmem:[%s1498 + $0x159] sm:$0xff]
      %v1983 = vld [vmem:[%s1498 + $0x169] sm:$0xff]
      %v1984 = vld [vmem:[%s1498 + $0x171] sm:$0xff]
      %s1985 = scalar_lea.vmem %s1, 16
      %v1986 = vld [vmem:[%s1985] sm:$0xf]
      %v1988 = vsel %vm230, %v1953, 0
      %v1991 = vsel %vm230, %v1954, 0
      %v1994 = vsel %vm230, %v1955, 0
      %v1997 = vsel %vm230, %v1956, 0
      %v2000 = vsel %vm230, %v1957, 0
      %v2003 = vsel %vm230, %v1958, 0
      %v2006 = vsel %vm230, %v1959, 0
      %v2009 = vsel %vm230, %v1960, 0
      %v2012 = vsel %vm230, %v1961, 0
      %v2015 = vsel %vm230, %v1962, 0
      %v2018 = vsel %vm230, %v1963, 0
      %v2021 = vsel %vm230, %v1964, 0
      %v2024 = vsel %vm230, %v1965, 0
      %v2027 = vsel %vm230, %v1966, 0
      %v2030 = vsel %vm230, %v1967, 0
      %v2033 = vsel %vm230, %v1968, 0
      %v2036 = vsel %vm230, %v1969, 0
      %v2039 = vsel %vm230, %v1970, 0
      %v2042 = vsel %vm230, %v1971, 0
      %v2045 = vsel %vm230, %v1972, 0
      %v2048 = vsel %vm230, %v1973, 0
      %v2051 = vsel %vm230, %v1974, 0
      %v2054 = vsel %vm230, %v1975, 0
      %v2057 = vsel %vm230, %v1976, 0
      %v2060 = vsel %vm230, %v1977, 0
      %v2063 = vsel %vm230, %v1978, 0
      %v2066 = vsel %vm230, %v1979, 0
      %v2069 = vsel %vm230, %v1980, 0
      %v2072 = vsel %vm230, %v1981, 0
      %v2075 = vsel %vm230, %v1982, 0
      %v2078 = vsel %vm230, %v1983, 0
      %v2081 = vsel %vm230, %v1984, 0
      %v2084 = vsel %vm327, %v1986, 0
      %2086 = vmatprep.subr.mxu0 0.0
      %2087 = vmatpush1.msra.mxu0 %v2084
      %2088 = vmatprep.subr.mxu0 0.0
      %2089 = vmatpush1.msra.mxu0 0.0
      %2090 = vmatprep.subr.mxu0 0.0
      %2091 = vmatpush1.msra.mxu0 0.0
      %2092 = vmatprep.subr.mxu0 0.0
      %2093 = vmatpush1.msra.mxu0 0.0
      %2094 = vmatprep.subr.mxu0 0.0
      %2095 = vmatpush1.msra.mxu0 0.0
      %2096 = vmatprep.subr.mxu0 0.0
      %2097 = vmatpush1.msra.mxu0 0.0
      %2098 = vmatprep.subr.mxu0 0.0
      %2099 = vmatpush1.msra.mxu0 0.0
      %2100 = vmatprep.subr.mxu0 0.0
      %2101 = vmatpush1.msra.mxu0 0.0
      %2102 = vmatprep.subr.mxu0 0.0
      %2103 = vmatpush1.msra.mxu0 0.0
      %2104 = vmatprep.subr.mxu0 0.0
      %2105 = vmatpush1.msra.mxu0 0.0
      %2106 = vmatprep.subr.mxu0 0.0
      %2107 = vmatpush1.msra.mxu0 0.0
      %2108 = vmatprep.subr.mxu0 0.0
      %2109 = vmatpush1.msra.mxu0 0.0
      %2110 = vmatprep.subr.mxu0 0.0
      %2111 = vmatpush1.msra.mxu0 0.0
      %2112 = vmatprep.subr.mxu0 0.0
      %2113 = vmatpush1.msra.mxu0 0.0
      %2114 = vmatprep.subr.mxu0 0.0
      %2115 = vmatpush1.msra.mxu0 0.0
      %2116 = vmatprep.subr.mxu0 0.0
      %2117 = vmatpush1.msra.mxu0 0.0
      %2118 = vmatprep.subr.mxu0 0.0
      %2119 = vmatpush1.msra.mxu0 0.0
      %2120 = vmatprep.subr.mxu0 0.0
      %2121 = vmatpush1.msra.mxu0 0.0
      %2122 = vmatprep.subr.mxu0 0.0
      %2123 = vmatpush1.msra.mxu0 0.0
      %2124 = vmatprep.subr.mxu0 0.0
      %2125 = vmatpush1.msra.mxu0 0.0
      %2126 = vmatprep.subr.mxu0 0.0
      %2127 = vmatpush1.msra.mxu0 0.0
      %2128 = vmatprep.subr.mxu0 0.0
      %2129 = vmatpush1.msra.mxu0 0.0
      %2130 = vmatprep.subr.mxu0 0.0
      %2131 = vmatpush1.msra.mxu0 0.0
      %2132 = vmatprep.subr.mxu0 0.0
      %2133 = vmatpush1.msra.mxu0 0.0
      %2134 = vmatprep.subr.mxu0 0.0
      %2135 = vmatpush1.msra.mxu0 0.0
      %2136 = vmatprep.subr.mxu0 0.0
      %2137 = vmatpush1.msra.mxu0 0.0
      %2138 = vmatprep.subr.mxu0 0.0
      %2139 = vmatpush1.msra.mxu0 0.0
      %2140 = vmatprep.subr.mxu0 0.0
      %2141 = vmatpush1.msra.mxu0 0.0
      %2142 = vmatprep.subr.mxu0 0.0
      %2143 = vmatpush1.msra.mxu0 0.0
      %2144 = vmatprep.subr.mxu0 0.0
      %2145 = vmatpush1.msra.mxu0 0.0
      %2146 = vmatprep.subr.mxu0 0.0
      %2147 = vmatpush1.msra.mxu0 0.0
      %2148 = vmatprep.subr.mxu0 0.0
      %2149 = vmatpush1.msra.mxu0 0.0
      %2150 = vmatprep.mubr.f32.mxu0 0.0
      %2151 = vmatmul.mubr.f32.gmra.mrb[0].mxu0 %v1988
      %v2152 = vpop.f32.mrb[0].mxu0
      %v2153 = vadd.f32 0.0, %v2152
      %v2154 = vpop.f32.mrb[0].mxu0
      %2155 = vmatprep.mubr.f32.mxu0 0.0
      %2156 = vmatmul.mubr.f32.gmra.mrb[0].mxu0 %v1991
      %v2157 = vpop.f32.mrb[0].mxu0
      %v2158 = vadd.f32 0.0, %v2157
      %v2159 = vpop.f32.mrb[0].mxu0
      %2160 = vmatprep.mubr.f32.mxu0 0.0
      %2161 = vmatmul.mubr.f32.gmra.mrb[0].mxu0 %v1994
      %v2162 = vpop.f32.mrb[0].mxu0
      %v2163 = vadd.f32 0.0, %v2162
      %v2164 = vpop.f32.mrb[0].mxu0
      %2165 = vmatprep.mubr.f32.mxu0 0.0
      %2166 = vmatmul.mubr.f32.gmra.mrb[0].mxu0 %v1997
      %v2167 = vpop.f32.mrb[0].mxu0
      %v2168 = vadd.f32 0.0, %v2167
      %v2169 = vpop.f32.mrb[0].mxu0
      %2170 = vmatprep.mubr.f32.mxu0 0.0
      %2171 = vmatmul.mubr.f32.gmra.mrb[0].mxu0 %v2000
      %v2172 = vpop.f32.mrb[0].mxu0
      %v2173 = vadd.f32 0.0, %v2172
      %v2174 = vpop.f32.mrb[0].mxu0
      %2175 = vmatprep.mubr.f32.mxu0 0.0
      %2176 = vmatmul.mubr.f32.gmra.mrb[0].mxu0 %v2003
      %v2177 = vpop.f32.mrb[0].mxu0
      %v2178 = vadd.f32 0.0, %v2177
      %v2179 = vpop.f32.mrb[0].mxu0
      %2180 = vmatprep.mubr.f32.mxu0 0.0
      %2181 = vmatmul.mubr.f32.gmra.mrb[0].mxu0 %v2006
      %v2182 = vpop.f32.mrb[0].mxu0
      %v2183 = vadd.f32 0.0, %v2182
      %v2184 = vpop.f32.mrb[0].mxu0
      %2185 = vmatprep.mubr.f32.mxu0 0.0
      %2186 = vmatmul.mubr.f32.gmra.mrb[0].mxu0 %v2009
      %v2187 = vpop.f32.mrb[0].mxu0
      %v2188 = vadd.f32 0.0, %v2187
      %v2189 = vpop.f32.mrb[0].mxu0
      %2190 = vmatprep.mubr.f32.mxu0 0.0
      %2191 = vmatmul.mubr.f32.gmra.mrb[0].mxu0 %v2012
      %v2192 = vpop.f32.mrb[0].mxu0
      %v2193 = vadd.f32 0.0, %v2192
      %v2194 = vpop.f32.mrb[0].mxu0
      %2195 = vmatprep.mubr.f32.mxu0 0.0
      %2196 = vmatmul.mubr.f32.gmra.mrb[0].mxu0 %v2015
      %v2197 = vpop.f32.mrb[0].mxu0
      %v2198 = vadd.f32 0.0, %v2197
      %v2199 = vpop.f32.mrb[0].mxu0
      %2200 = vmatprep.mubr.f32.mxu0 0.0
      %2201 = vmatmul.mubr.f32.gmra.mrb[0].mxu0 %v2018
      %v2202 = vpop.f32.mrb[0].mxu0
      %v2203 = vadd.f32 0.0, %v2202
      %v2204 = vpop.f32.mrb[0].mxu0
      %2205 = vmatprep.mubr.f32.mxu0 0.0
      %2206 = vmatmul.mubr.f32.gmra.mrb[0].mxu0 %v2021
      %v2207 = vpop.f32.mrb[0].mxu0
      %v2208 = vadd.f32 0.0, %v2207
      %v2209 = vpop.f32.mrb[0].mxu0
      %2210 = vmatprep.mubr.f32.mxu0 0.0
      %2211 = vmatmul.mubr.f32.gmra.mrb[0].mxu0 %v2024
      %v2212 = vpop.f32.mrb[0].mxu0
      %v2213 = vadd.f32 0.0, %v2212
      %v2214 = vpop.f32.mrb[0].mxu0
      %2215 = vmatprep.mubr.f32.mxu0 0.0
      %2216 = vmatmul.mubr.f32.gmra.mrb[0].mxu0 %v2027
      %v2217 = vpop.f32.mrb[0].mxu0
      %v2218 = vadd.f32 0.0, %v2217
      %v2219 = vpop.f32.mrb[0].mxu0
      %2220 = vmatprep.mubr.f32.mxu0 0.0
      %2221 = vmatmul.mubr.f32.gmra.mrb[0].mxu0 %v2030
      %v2222 = vpop.f32.mrb[0].mxu0
      %v2223 = vadd.f32 0.0, %v2222
      %v2224 = vpop.f32.mrb[0].mxu0
      %2225 = vmatprep.mubr.f32.mxu0 0.0
      %2226 = vmatmul.mubr.f32.gmra.mrb[0].mxu0 %v2033
      %v2227 = vpop.f32.mrb[0].mxu0
      %v2228 = vadd.f32 0.0, %v2227
      %v2229 = vpop.f32.mrb[0].mxu0
      %2230 = vmatprep.mubr.f32.mxu0 0.0
      %2231 = vmatmul.mubr.f32.gmra.mrb[0].mxu0 %v2036
      %v2232 = vpop.f32.mrb[0].mxu0
      %v2233 = vadd.f32 0.0, %v2232
      %v2234 = vpop.f32.mrb[0].mxu0
      %2235 = vmatprep.mubr.f32.mxu0 0.0
      %2236 = vmatmul.mubr.f32.gmra.mrb[0].mxu0 %v2039
      %v2237 = vpop.f32.mrb[0].mxu0
      %v2238 = vadd.f32 0.0, %v2237
      %v2239 = vpop.f32.mrb[0].mxu0
      %2240 = vmatprep.mubr.f32.mxu0 0.0
      %2241 = vmatmul.mubr.f32.gmra.mrb[0].mxu0 %v2042
      %v2242 = vpop.f32.mrb[0].mxu0
      %v2243 = vadd.f32 0.0, %v2242
      %v2244 = vpop.f32.mrb[0].mxu0
      %2245 = vmatprep.mubr.f32.mxu0 0.0
      %2246 = vmatmul.mubr.f32.gmra.mrb[0].mxu0 %v2045
      %v2247 = vpop.f32.mrb[0].mxu0
      %v2248 = vadd.f32 0.0, %v2247
      %v2249 = vpop.f32.mrb[0].mxu0
      %2250 = vmatprep.mubr.f32.mxu0 0.0
      %2251 = vmatmul.mubr.f32.gmra.mrb[0].mxu0 %v2048
      %v2252 = vpop.f32.mrb[0].mxu0
      %v2253 = vadd.f32 0.0, %v2252
      %v2254 = vpop.f32.mrb[0].mxu0
      %2255 = vmatprep.mubr.f32.mxu0 0.0
      %2256 = vmatmul.mubr.f32.gmra.mrb[0].mxu0 %v2051
      %v2257 = vpop.f32.mrb[0].mxu0
      %v2258 = vadd.f32 0.0, %v2257
      %v2259 = vpop.f32.mrb[0].mxu0
      %2260 = vmatprep.mubr.f32.mxu0 0.0
      %2261 = vmatmul.mubr.f32.gmra.mrb[0].mxu0 %v2054
      %v2262 = vpop.f32.mrb[0].mxu0
      %v2263 = vadd.f32 0.0, %v2262
      %v2264 = vpop.f32.mrb[0].mxu0
      %2265 = vmatprep.mubr.f32.mxu0 0.0
      %2266 = vmatmul.mubr.f32.gmra.mrb[0].mxu0 %v2057
      %v2267 = vpop.f32.mrb[0].mxu0
      %v2268 = vadd.f32 0.0, %v2267
      %v2269 = vpop.f32.mrb[0].mxu0
      %2270 = vmatprep.mubr.f32.mxu0 0.0
      %2271 = vmatmul.mubr.f32.gmra.mrb[0].mxu0 %v2060
      %v2272 = vpop.f32.mrb[0].mxu0
      %v2273 = vadd.f32 0.0, %v2272
      %v2274 = vpop.f32.mrb[0].mxu0
      %2275 = vmatprep.mubr.f32.mxu0 0.0
      %2276 = vmatmul.mubr.f32.gmra.mrb[0].mxu0 %v2063
      %v2277 = vpop.f32.mrb[0].mxu0
      %v2278 = vadd.f32 0.0, %v2277
      %v2279 = vpop.f32.mrb[0].mxu0
      %2280 = vmatprep.mubr.f32.mxu0 0.0
      %2281 = vmatmul.mubr.f32.gmra.mrb[0].mxu0 %v2066
      %v2282 = vpop.f32.mrb[0].mxu0
      %v2283 = vadd.f32 0.0, %v2282
      %v2284 = vpop.f32.mrb[0].mxu0
      %2285 = vmatprep.mubr.f32.mxu0 0.0
      %2286 = vmatmul.mubr.f32.gmra.mrb[0].mxu0 %v2069
      %v2287 = vpop.f32.mrb[0].mxu0
      %v2288 = vadd.f32 0.0, %v2287
      %v2289 = vpop.f32.mrb[0].mxu0
      %2290 = vmatprep.mubr.f32.mxu0 0.0
      %2291 = vmatmul.mubr.f32.gmra.mrb[0].mxu0 %v2072
      %v2292 = vpop.f32.mrb[0].mxu0
      %v2293 = vadd.f32 0.0, %v2292
      %v2294 = vpop.f32.mrb[0].mxu0
      %2295 = vmatprep.mubr.f32.mxu0 0.0
      %2296 = vmatmul.mubr.f32.gmra.mrb[0].mxu0 %v2075
      %v2297 = vpop.f32.mrb[0].mxu0
      %v2298 = vadd.f32 0.0, %v2297
      %v2299 = vpop.f32.mrb[0].mxu0
      %2300 = vmatprep.mubr.f32.mxu0 0.0
      %2301 = vmatmul.mubr.f32.gmra.mrb[0].mxu0 %v2078
      %v2302 = vpop.f32.mrb[0].mxu0
      %v2303 = vadd.f32 0.0, %v2302
      %v2304 = vpop.f32.mrb[0].mxu0
      %2305 = vmatprep.mubr.f32.mxu0 0.0
      %2306 = vmatmul.mubr.f32.gmra.mrb[0].mxu0 %v2081
      %v2307 = vpop.f32.mrb[0].mxu0
      %v2308 = vadd.f32 0.0, %v2307
      %v2309 = vpop.f32.mrb[0].mxu0
      %2310 = vdwg.mxu0
      %v2311 = vld [vmem:[#allocation2] sm:$0xff]
      %v2312 = vld [vmem:[#allocation2 + $0x8] sm:$0xff]
      %v2313 = vld [vmem:[#allocation2 + $0x10] sm:$0xff]
      %v2314 = vld [vmem:[#allocation2 + $0x18] sm:$0xff]
      %v2315 = vld [vmem:[#allocation2 + $0x20] sm:$0xff]
      %v2316 = vld [vmem:[#allocation2 + $0x28] sm:$0xff]
      %v2317 = vld [vmem:[#allocation2 + $0x30] sm:$0xff]
      %v2318 = vld [vmem:[#allocation2 + $0x38] sm:$0xff]
      %v2319 = vld [vmem:[#allocation2 + $0x40] sm:$0xff]
      %v2320 = vld [vmem:[#allocation2 + $0x48] sm:$0xff]
      %v2321 = vld [vmem:[#allocation2 + $0x50] sm:$0xff]
      %v2322 = vld [vmem:[#allocation2 + $0x58] sm:$0xff]
      %v2323 = vld [vmem:[#allocation2 + $0x60] sm:$0xff]
      %v2324 = vld [vmem:[#allocation2 + $0x68] sm:$0xff]
      %v2325 = vld [vmem:[#allocation2 + $0x70] sm:$0xff]
      %v2326 = vld [vmem:[#allocation2 + $0x78] sm:$0xff]
      %v2327 = vld [vmem:[#allocation2 + $0x80] sm:$0xff]
      %v2328 = vld [vmem:[#allocation2 + $0x88] sm:$0xff]
      %v2329 = vld [vmem:[#allocation2 + $0x90] sm:$0xff]
      %v2330 = vld [vmem:[#allocation2 + $0x98] sm:$0xff]
      %v2331 = vld [vmem:[#allocation2 + $0xa0] sm:$0xff]
      %v2332 = vld [vmem:[#allocation2 + $0xa8] sm:$0xff]
      %v2333 = vld [vmem:[#allocation2 + $0xb0] sm:$0xff]
      %v2334 = vld [vmem:[#allocation2 + $0xb8] sm:$0xff]
      %v2335 = vld [vmem:[#allocation2 + $0xc0] sm:$0xff]
      %v2336 = vld [vmem:[#allocation2 + $0xc8] sm:$0xff]
      %v2337 = vld [vmem:[#allocation2 + $0xd0] sm:$0xff]
      %v2338 = vld [vmem:[#allocation2 + $0xd8] sm:$0xff]
      %v2339 = vld [vmem:[#allocation2 + $0xe0] sm:$0xff]
      %v2340 = vld [vmem:[#allocation2 + $0xe8] sm:$0xff]
      %v2341 = vld [vmem:[#allocation2 + $0xf0] sm:$0xff]
      %v2342 = vld [vmem:[#allocation2 + $0xf8] sm:$0xff]
      %v2343 = vadd.f32 %v2311, %v2153
      %v2344 = vadd.f32 %v2312, %v2158
      %v2345 = vadd.f32 %v2313, %v2163
      %v2346 = vadd.f32 %v2314, %v2168
      %v2347 = vadd.f32 %v2315, %v2173
      %v2348 = vadd.f32 %v2316, %v2178
      %v2349 = vadd.f32 %v2317, %v2183
      %v2350 = vadd.f32 %v2318, %v2188
      %v2351 = vadd.f32 %v2319, %v2193
      %v2352 = vadd.f32 %v2320, %v2198
      %v2353 = vadd.f32 %v2321, %v2203
      %v2354 = vadd.f32 %v2322, %v2208
      %v2355 = vadd.f32 %v2323, %v2213
      %v2356 = vadd.f32 %v2324, %v2218
      %v2357 = vadd.f32 %v2325, %v2223
      %v2358 = vadd.f32 %v2326, %v2228
      %v2359 = vadd.f32 %v2327, %v2233
      %v2360 = vadd.f32 %v2328, %v2238
      %v2361 = vadd.f32 %v2329, %v2243
      %v2362 = vadd.f32 %v2330, %v2248
      %v2363 = vadd.f32 %v2331, %v2253
      %v2364 = vadd.f32 %v2332, %v2258
      %v2365 = vadd.f32 %v2333, %v2263
      %v2366 = vadd.f32 %v2334, %v2268
      %v2367 = vadd.f32 %v2335, %v2273
      %v2368 = vadd.f32 %v2336, %v2278
      %v2369 = vadd.f32 %v2337, %v2283
      %v2370 = vadd.f32 %v2338, %v2288
      %v2371 = vadd.f32 %v2339, %v2293
      %v2372 = vadd.f32 %v2340, %v2298
      %v2373 = vadd.f32 %v2341, %v2303
      %v2374 = vadd.f32 %v2342, %v2308
      %2375 = vst [vmem:[#allocation2] sm:$0xff] %v2343
      %2376 = vst [vmem:[#allocation2 + $0x8] sm:$0xff] %v2344
      %2377 = vst [vmem:[#allocation2 + $0x10] sm:$0xff] %v2345
      %2378 = vst [vmem:[#allocation2 + $0x18] sm:$0xff] %v2346
      %2379 = vst [vmem:[#allocation2 + $0x20] sm:$0xff] %v2347
      %2380 = vst [vmem:[#allocation2 + $0x28] sm:$0xff] %v2348
      %2381 = vst [vmem:[#allocation2 + $0x30] sm:$0xff] %v2349
      %2382 = vst [vmem:[#allocation2 + $0x38] sm:$0xff] %v2350
      %2383 = vst [vmem:[#allocation2 + $0x40] sm:$0xff] %v2351
      %2384 = vst [vmem:[#allocation2 + $0x48] sm:$0xff] %v2352
      %2385 = vst [vmem:[#allocation2 + $0x50] sm:$0xff] %v2353
      %2386 = vst [vmem:[#allocation2 + $0x58] sm:$0xff] %v2354
      %2387 = vst [vmem:[#allocation2 + $0x60] sm:$0xff] %v2355
      %2388 = vst [vmem:[#allocation2 + $0x68] sm:$0xff] %v2356
      %2389 = vst [vmem:[#allocation2 + $0x70] sm:$0xff] %v2357
      %2390 = vst [vmem:[#allocation2 + $0x78] sm:$0xff] %v2358
      %2391 = vst [vmem:[#allocation2 + $0x80] sm:$0xff] %v2359
      %2392 = vst [vmem:[#allocation2 + $0x88] sm:$0xff] %v2360
      %2393 = vst [vmem:[#allocation2 + $0x90] sm:$0xff] %v2361
      %2394 = vst [vmem:[#allocation2 + $0x98] sm:$0xff] %v2362
      %2395 = vst [vmem:[#allocation2 + $0xa0] sm:$0xff] %v2363
      %2396 = vst [vmem:[#allocation2 + $0xa8] sm:$0xff] %v2364
      %2397 = vst [vmem:[#allocation2 + $0xb0] sm:$0xff] %v2365
      %2398 = vst [vmem:[#allocation2 + $0xb8] sm:$0xff] %v2366
      %2399 = vst [vmem:[#allocation2 + $0xc0] sm:$0xff] %v2367
      %2400 = vst [vmem:[#allocation2 + $0xc8] sm:$0xff] %v2368
      %2401 = vst [vmem:[#allocation2 + $0xd0] sm:$0xff] %v2369
      %2402 = vst [vmem:[#allocation2 + $0xd8] sm:$0xff] %v2370
      %2403 = vst [vmem:[#allocation2 + $0xe0] sm:$0xff] %v2371
      %2404 = vst [vmem:[#allocation2 + $0xe8] sm:$0xff] %v2372
      %2405 = vst [vmem:[#allocation2 + $0xf0] sm:$0xff] %v2373
      %2406 = vst [vmem:[#allocation2 + $0xf8] sm:$0xff] %v2374
      %v2407 = vld [vmem:[%s1498 + $0x2] sm:$0xff]
      %v2408 = vld [vmem:[%s1498 + $0xa] sm:$0xff]
      %v2409 = vld [vmem:[%s1498 + $0x1a] sm:$0xff]
      %v2410 = vld [vmem:[%s1498 + $0x22] sm:$0xff]
      %v2411 = vld [vmem:[%s1498 + $0x32] sm:$0xff]
      %v2412 = vld [vmem:[%s1498 + $0x3a] sm:$0xff]
      %v2413 = vld [vmem:[%s1498 + $0x4a] sm:$0xff]
      %v2414 = vld [vmem:[%s1498 + $0x52] sm:$0xff]
      %v2415 = vld [vmem:[%s1498 + $0x62] sm:$0xff]
      %v2416 = vld [vmem:[%s1498 + $0x6a] sm:$0xff]
      %v2417 = vld [vmem:[%s1498 + $0x7a] sm:$0xff]
      %v2418 = vld [vmem:[%s1498 + $0x82] sm:$0xff]
      %v2419 = vld [vmem:[%s1498 + $0x92] sm:$0xff]
      %v2420 = vld [vmem:[%s1498 + $0x9a] sm:$0xff]
      %v2421 = vld [vmem:[%s1498 + $0xaa] sm:$0xff]
      %v2422 = vld [vmem:[%s1498 + $0xb2] sm:$0xff]
      %v2423 = vld [vmem:[%s1498 + $0xc2] sm:$0xff]
      %v2424 = vld [vmem:[%s1498 + $0xca] sm:$0xff]
      %v2425 = vld [vmem:[%s1498 + $0xda] sm:$0xff]
      %v2426 = vld [vmem:[%s1498 + $0xe2] sm:$0xff]
      %v2427 = vld [vmem:[%s1498 + $0xf2] sm:$0xff]
      %v2428 = vld [vmem:[%s1498 + $0xfa] sm:$0xff]
      %v2429 = vld [vmem:[%s1498 + $0x10a] sm:$0xff]
      %v2430 = vld [vmem:[%s1498 + $0x112] sm:$0xff]
      %v2431 = vld [vmem:[%s1498 + $0x122] sm:$0xff]
      %v2432 = vld [vmem:[%s1498 + $0x12a] sm:$0xff]
      %v2433 = vld [vmem:[%s1498 + $0x13a] sm:$0xff]
      %v2434 = vld [vmem:[%s1498 + $0x142] sm:$0xff]
      %v2435 = vld [vmem:[%s1498 + $0x152] sm:$0xff]
      %v2436 = vld [vmem:[%s1498 + $0x15a] sm:$0xff]
      %v2437 = vld [vmem:[%s1498 + $0x16a] sm:$0xff]
      %v2438 = vld [vmem:[%s1498 + $0x172] sm:$0xff]
      %s2439 = scalar_lea.vmem %s1, 20
      %v2440 = vld [vmem:[%s2439] sm:$0xf]
      %v2442 = vsel %vm230, %v2407, 0
      %v2445 = vsel %vm230, %v2408, 0
      %v2448 = vsel %vm230, %v2409, 0
      %v2451 = vsel %vm230, %v2410, 0
      %v2454 = vsel %vm230, %v2411, 0
      %v2457 = vsel %vm230, %v2412, 0
      %v2460 = vsel %vm230, %v2413, 0
      %v2463 = vsel %vm230, %v2414, 0
      %v2466 = vsel %vm230, %v2415, 0
      %v2469 = vsel %vm230, %v2416, 0
      %v2472 = vsel %vm230, %v2417, 0
      %v2475 = vsel %vm230, %v2418, 0
      %v2478 = vsel %vm230, %v2419, 0
      %v2481 = vsel %vm230, %v2420, 0
      %v2484 = vsel %vm230, %v2421, 0
      %v2487 = vsel %vm230, %v2422, 0
      %v2490 = vsel %vm230, %v2423, 0
      %v2493 = vsel %vm230, %v2424, 0
      %v2496 = vsel %vm230, %v2425, 0
      %v2499 = vsel %vm230, %v2426, 0
      %v2502 = vsel %vm230, %v2427, 0
      %v2505 = vsel %vm230, %v2428, 0
      %v2508 = vsel %vm230, %v2429, 0
      %v2511 = vsel %vm230, %v2430, 0
      %v2514 = vsel %vm230, %v2431, 0
      %v2517 = vsel %vm230, %v2432, 0
      %v2520 = vsel %vm230, %v2433, 0
      %v2523 = vsel %vm230, %v2434, 0
      %v2526 = vsel %vm230, %v2435, 0
      %v2529 = vsel %vm230, %v2436, 0
      %v2532 = vsel %vm230, %v2437, 0
      %v2535 = vsel %vm230, %v2438, 0
      %v2538 = vsel %vm327, %v2440, 0
      %2540 = vmatprep.subr.mxu0 0.0
      %2541 = vmatpush1.msra.mxu0 %v2538
      %2542 = vmatprep.subr.mxu0 0.0
      %2543 = vmatpush1.msra.mxu0 0.0
      %2544 = vmatprep.subr.mxu0 0.0
      %2545 = vmatpush1.msra.mxu0 0.0
      %2546 = vmatprep.subr.mxu0 0.0
      %2547 = vmatpush1.msra.mxu0 0.0
      %2548 = vmatprep.subr.mxu0 0.0
      %2549 = vmatpush1.msra.mxu0 0.0
      %2550 = vmatprep.subr.mxu0 0.0
      %2551 = vmatpush1.msra.mxu0 0.0
      %2552 = vmatprep.subr.mxu0 0.0
      %2553 = vmatpush1.msra.mxu0 0.0
      %2554 = vmatprep.subr.mxu0 0.0
      %2555 = vmatpush1.msra.mxu0 0.0
      %2556 = vmatprep.subr.mxu0 0.0
      %2557 = vmatpush1.msra.mxu0 0.0
      %2558 = vmatprep.subr.mxu0 0.0
      %2559 = vmatpush1.msra.mxu0 0.0
      %2560 = vmatprep.subr.mxu0 0.0
      %2561 = vmatpush1.msra.mxu0 0.0
      %2562 = vmatprep.subr.mxu0 0.0
      %2563 = vmatpush1.msra.mxu0 0.0
      %2564 = vmatprep.subr.mxu0 0.0
      %2565 = vmatpush1.msra.mxu0 0.0
      %2566 = vmatprep.subr.mxu0 0.0
      %2567 = vmatpush1.msra.mxu0 0.0
      %2568 = vmatprep.subr.mxu0 0.0
      %2569 = vmatpush1.msra.mxu0 0.0
      %2570 = vmatprep.subr.mxu0 0.0
      %2571 = vmatpush1.msra.mxu0 0.0
      %2572 = vmatprep.subr.mxu0 0.0
      %2573 = vmatpush1.msra.mxu0 0.0
      %2574 = vmatprep.subr.mxu0 0.0
      %2575 = vmatpush1.msra.mxu0 0.0
      %2576 = vmatprep.subr.mxu0 0.0
      %2577 = vmatpush1.msra.mxu0 0.0
      %2578 = vmatprep.subr.mxu0 0.0
      %2579 = vmatpush1.msra.mxu0 0.0
      %2580 = vmatprep.subr.mxu0 0.0
      %2581 = vmatpush1.msra.mxu0 0.0
      %2582 = vmatprep.subr.mxu0 0.0
      %2583 = vmatpush1.msra.mxu0 0.0
      %2584 = vmatprep.subr.mxu0 0.0
      %2585 = vmatpush1.msra.mxu0 0.0
      %2586 = vmatprep.subr.mxu0 0.0
      %2587 = vmatpush1.msra.mxu0 0.0
      %2588 = vmatprep.subr.mxu0 0.0
      %2589 = vmatpush1.msra.mxu0 0.0
      %2590 = vmatprep.subr.mxu0 0.0
      %2591 = vmatpush1.msra.mxu0 0.0
      %2592 = vmatprep.subr.mxu0 0.0
      %2593 = vmatpush1.msra.mxu0 0.0
      %2594 = vmatprep.subr.mxu0 0.0
      %2595 = vmatpush1.msra.mxu0 0.0
      %2596 = vmatprep.subr.mxu0 0.0
      %2597 = vmatpush1.msra.mxu0 0.0
      %2598 = vmatprep.subr.mxu0 0.0
      %2599 = vmatpush1.msra.mxu0 0.0
      %2600 = vmatprep.subr.mxu0 0.0
      %2601 = vmatpush1.msra.mxu0 0.0
      %2602 = vmatprep.subr.mxu0 0.0
      %2603 = vmatpush1.msra.mxu0 0.0
      %2604 = vmatprep.mubr.f32.mxu0 0.0
      %2605 = vmatmul.mubr.f32.gmra.mrb[0].mxu0 %v2442
      %v2606 = vpop.f32.mrb[0].mxu0
      %v2607 = vadd.f32 0.0, %v2606
      %v2608 = vpop.f32.mrb[0].mxu0
      %2609 = vmatprep.mubr.f32.mxu0 0.0
      %2610 = vmatmul.mubr.f32.gmra.mrb[0].mxu0 %v2445
      %v2611 = vpop.f32.mrb[0].mxu0
      %v2612 = vadd.f32 0.0, %v2611
      %v2613 = vpop.f32.mrb[0].mxu0
      %2614 = vmatprep.mubr.f32.mxu0 0.0
      %2615 = vmatmul.mubr.f32.gmra.mrb[0].mxu0 %v2448
      %v2616 = vpop.f32.mrb[0].mxu0
      %v2617 = vadd.f32 0.0, %v2616
      %v2618 = vpop.f32.mrb[0].mxu0
      %2619 = vmatprep.mubr.f32.mxu0 0.0
      %2620 = vmatmul.mubr.f32.gmra.mrb[0].mxu0 %v2451
      %v2621 = vpop.f32.mrb[0].mxu0
      %v2622 = vadd.f32 0.0, %v2621
      %v2623 = vpop.f32.mrb[0].mxu0
      %2624 = vmatprep.mubr.f32.mxu0 0.0
      %2625 = vmatmul.mubr.f32.gmra.mrb[0].mxu0 %v2454
      %v2626 = vpop.f32.mrb[0].mxu0
      %v2627 = vadd.f32 0.0, %v2626
      %v2628 = vpop.f32.mrb[0].mxu0
      %2629 = vmatprep.mubr.f32.mxu0 0.0
      %2630 = vmatmul.mubr.f32.gmra.mrb[0].mxu0 %v2457
      %v2631 = vpop.f32.mrb[0].mxu0
      %v2632 = vadd.f32 0.0, %v2631
      %v2633 = vpop.f32.mrb[0].mxu0
      %2634 = vmatprep.mubr.f32.mxu0 0.0
      %2635 = vmatmul.mubr.f32.gmra.mrb[0].mxu0 %v2460
      %v2636 = vpop.f32.mrb[0].mxu0
      %v2637 = vadd.f32 0.0, %v2636
      %v2638 = vpop.f32.mrb[0].mxu0
      %2639 = vmatprep.mubr.f32.mxu0 0.0
      %2640 = vmatmul.mubr.f32.gmra.mrb[0].mxu0 %v2463
      %v2641 = vpop.f32.mrb[0].mxu0
      %v2642 = vadd.f32 0.0, %v2641
      %v2643 = vpop.f32.mrb[0].mxu0
      %2644 = vmatprep.mubr.f32.mxu0 0.0
      %2645 = vmatmul.mubr.f32.gmra.mrb[0].mxu0 %v2466
      %v2646 = vpop.f32.mrb[0].mxu0
      %v2647 = vadd.f32 0.0, %v2646
      %v2648 = vpop.f32.mrb[0].mxu0
      %2649 = vmatprep.mubr.f32.mxu0 0.0
      %2650 = vmatmul.mubr.f32.gmra.mrb[0].mxu0 %v2469
      %v2651 = vpop.f32.mrb[0].mxu0
      %v2652 = vadd.f32 0.0, %v2651
      %v2653 = vpop.f32.mrb[0].mxu0
      %2654 = vmatprep.mubr.f32.mxu0 0.0
      %2655 = vmatmul.mubr.f32.gmra.mrb[0].mxu0 %v2472
      %v2656 = vpop.f32.mrb[0].mxu0
      %v2657 = vadd.f32 0.0, %v2656
      %v2658 = vpop.f32.mrb[0].mxu0
      %2659 = vmatprep.mubr.f32.mxu0 0.0
      %2660 = vmatmul.mubr.f32.gmra.mrb[0].mxu0 %v2475
      %v2661 = vpop.f32.mrb[0].mxu0
      %v2662 = vadd.f32 0.0, %v2661
      %v2663 = vpop.f32.mrb[0].mxu0
      %2664 = vmatprep.mubr.f32.mxu0 0.0
      %2665 = vmatmul.mubr.f32.gmra.mrb[0].mxu0 %v2478
      %v2666 = vpop.f32.mrb[0].mxu0
      %v2667 = vadd.f32 0.0, %v2666
      %v2668 = vpop.f32.mrb[0].mxu0
      %2669 = vmatprep.mubr.f32.mxu0 0.0
      %2670 = vmatmul.mubr.f32.gmra.mrb[0].mxu0 %v2481
      %v2671 = vpop.f32.mrb[0].mxu0
      %v2672 = vadd.f32 0.0, %v2671
      %v2673 = vpop.f32.mrb[0].mxu0
      %2674 = vmatprep.mubr.f32.mxu0 0.0
      %2675 = vmatmul.mubr.f32.gmra.mrb[0].mxu0 %v2484
      %v2676 = vpop.f32.mrb[0].mxu0
      %v2677 = vadd.f32 0.0, %v2676
      %v2678 = vpop.f32.mrb[0].mxu0
      %2679 = vmatprep.mubr.f32.mxu0 0.0
      %2680 = vmatmul.mubr.f32.gmra.mrb[0].mxu0 %v2487
      %v2681 = vpop.f32.mrb[0].mxu0
      %v2682 = vadd.f32 0.0, %v2681
      %v2683 = vpop.f32.mrb[0].mxu0
      %2684 = vmatprep.mubr.f32.mxu0 0.0
      %2685 = vmatmul.mubr.f32.gmra.mrb[0].mxu0 %v2490
      %v2686 = vpop.f32.mrb[0].mxu0
      %v2687 = vadd.f32 0.0, %v2686
      %v2688 = vpop.f32.mrb[0].mxu0
      %2689 = vmatprep.mubr.f32.mxu0 0.0
      %2690 = vmatmul.mubr.f32.gmra.mrb[0].mxu0 %v2493
      %v2691 = vpop.f32.mrb[0].mxu0
      %v2692 = vadd.f32 0.0, %v2691
      %v2693 = vpop.f32.mrb[0].mxu0
      %2694 = vmatprep.mubr.f32.mxu0 0.0
      %2695 = vmatmul.mubr.f32.gmra.mrb[0].mxu0 %v2496
      %v2696 = vpop.f32.mrb[0].mxu0
      %v2697 = vadd.f32 0.0, %v2696
      %v2698 = vpop.f32.mrb[0].mxu0
      %2699 = vmatprep.mubr.f32.mxu0 0.0
      %2700 = vmatmul.mubr.f32.gmra.mrb[0].mxu0 %v2499
      %v2701 = vpop.f32.mrb[0].mxu0
      %v2702 = vadd.f32 0.0, %v2701
      %v2703 = vpop.f32.mrb[0].mxu0
      %2704 = vmatprep.mubr.f32.mxu0 0.0
      %2705 = vmatmul.mubr.f32.gmra.mrb[0].mxu0 %v2502
      %v2706 = vpop.f32.mrb[0].mxu0
      %v2707 = vadd.f32 0.0, %v2706
      %v2708 = vpop.f32.mrb[0].mxu0
      %2709 = vmatprep.mubr.f32.mxu0 0.0
      %2710 = vmatmul.mubr.f32.gmra.mrb[0].mxu0 %v2505
      %v2711 = vpop.f32.mrb[0].mxu0
      %v2712 = vadd.f32 0.0, %v2711
      %v2713 = vpop.f32.mrb[0].mxu0
      %2714 = vmatprep.mubr.f32.mxu0 0.0
      %2715 = vmatmul.mubr.f32.gmra.mrb[0].mxu0 %v2508
      %v2716 = vpop.f32.mrb[0].mxu0
      %v2717 = vadd.f32 0.0, %v2716
      %v2718 = vpop.f32.mrb[0].mxu0
      %2719 = vmatprep.mubr.f32.mxu0 0.0
      %2720 = vmatmul.mubr.f32.gmra.mrb[0].mxu0 %v2511
      %v2721 = vpop.f32.mrb[0].mxu0
      %v2722 = vadd.f32 0.0, %v2721
      %v2723 = vpop.f32.mrb[0].mxu0
      %2724 = vmatprep.mubr.f32.mxu0 0.0
      %2725 = vmatmul.mubr.f32.gmra.mrb[0].mxu0 %v2514
      %v2726 = vpop.f32.mrb[0].mxu0
      %v2727 = vadd.f32 0.0, %v2726
      %v2728 = vpop.f32.mrb[0].mxu0
      %2729 = vmatprep.mubr.f32.mxu0 0.0
      %2730 = vmatmul.mubr.f32.gmra.mrb[0].mxu0 %v2517
      %v2731 = vpop.f32.mrb[0].mxu0
      %v2732 = vadd.f32 0.0, %v2731
      %v2733 = vpop.f32.mrb[0].mxu0
      %2734 = vmatprep.mubr.f32.mxu0 0.0
      %2735 = vmatmul.mubr.f32.gmra.mrb[0].mxu0 %v2520
      %v2736 = vpop.f32.mrb[0].mxu0
      %v2737 = vadd.f32 0.0, %v2736
      %v2738 = vpop.f32.mrb[0].mxu0
      %2739 = vmatprep.mubr.f32.mxu0 0.0
      %2740 = vmatmul.mubr.f32.gmra.mrb[0].mxu0 %v2523
      %v2741 = vpop.f32.mrb[0].mxu0
      %v2742 = vadd.f32 0.0, %v2741
      %v2743 = vpop.f32.mrb[0].mxu0
      %2744 = vmatprep.mubr.f32.mxu0 0.0
      %2745 = vmatmul.mubr.f32.gmra.mrb[0].mxu0 %v2526
      %v2746 = vpop.f32.mrb[0].mxu0
      %v2747 = vadd.f32 0.0, %v2746
      %v2748 = vpop.f32.mrb[0].mxu0
      %2749 = vmatprep.mubr.f32.mxu0 0.0
      %2750 = vmatmul.mubr.f32.gmra.mrb[0].mxu0 %v2529
      %v2751 = vpop.f32.mrb[0].mxu0
      %v2752 = vadd.f32 0.0, %v2751
      %v2753 = vpop.f32.mrb[0].mxu0
      %2754 = vmatprep.mubr.f32.mxu0 0.0
      %2755 = vmatmul.mubr.f32.gmra.mrb[0].mxu0 %v2532
      %v2756 = vpop.f32.mrb[0].mxu0
      %v2757 = vadd.f32 0.0, %v2756
      %v2758 = vpop.f32.mrb[0].mxu0
      %2759 = vmatprep.mubr.f32.mxu0 0.0
      %2760 = vmatmul.mubr.f32.gmra.mrb[0].mxu0 %v2535
      %v2761 = vpop.f32.mrb[0].mxu0
      %v2762 = vadd.f32 0.0, %v2761
      %v2763 = vpop.f32.mrb[0].mxu0
      %2764 = vdwg.mxu0
      %v2765 = vld [vmem:[#allocation2] sm:$0xff]
      %v2766 = vld [vmem:[#allocation2 + $0x8] sm:$0xff]
      %v2767 = vld [vmem:[#allocation2 + $0x10] sm:$0xff]
      %v2768 = vld [vmem:[#allocation2 + $0x18] sm:$0xff]
      %v2769 = vld [vmem:[#allocation2 + $0x20] sm:$0xff]
      %v2770 = vld [vmem:[#allocation2 + $0x28] sm:$0xff]
      %v2771 = vld [vmem:[#allocation2 + $0x30] sm:$0xff]
      %v2772 = vld [vmem:[#allocation2 + $0x38] sm:$0xff]
      %v2773 = vld [vmem:[#allocation2 + $0x40] sm:$0xff]
      %v2774 = vld [vmem:[#allocation2 + $0x48] sm:$0xff]
      %v2775 = vld [vmem:[#allocation2 + $0x50] sm:$0xff]
      %v2776 = vld [vmem:[#allocation2 + $0x58] sm:$0xff]
      %v2777 = vld [vmem:[#allocation2 + $0x60] sm:$0xff]
      %v2778 = vld [vmem:[#allocation2 + $0x68] sm:$0xff]
      %v2779 = vld [vmem:[#allocation2 + $0x70] sm:$0xff]
      %v2780 = vld [vmem:[#allocation2 + $0x78] sm:$0xff]
      %v2781 = vld [vmem:[#allocation2 + $0x80] sm:$0xff]
      %v2782 = vld [vmem:[#allocation2 + $0x88] sm:$0xff]
      %v2783 = vld [vmem:[#allocation2 + $0x90] sm:$0xff]
      %v2784 = vld [vmem:[#allocation2 + $0x98] sm:$0xff]
      %v2785 = vld [vmem:[#allocation2 + $0xa0] sm:$0xff]
      %v2786 = vld [vmem:[#allocation2 + $0xa8] sm:$0xff]
      %v2787 = vld [vmem:[#allocation2 + $0xb0] sm:$0xff]
      %v2788 = vld [vmem:[#allocation2 + $0xb8] sm:$0xff]
      %v2789 = vld [vmem:[#allocation2 + $0xc0] sm:$0xff]
      %v2790 = vld [vmem:[#allocation2 + $0xc8] sm:$0xff]
      %v2791 = vld [vmem:[#allocation2 + $0xd0] sm:$0xff]
      %v2792 = vld [vmem:[#allocation2 + $0xd8] sm:$0xff]
      %v2793 = vld [vmem:[#allocation2 + $0xe0] sm:$0xff]
      %v2794 = vld [vmem:[#allocation2 + $0xe8] sm:$0xff]
      %v2795 = vld [vmem:[#allocation2 + $0xf0] sm:$0xff]
      %v2796 = vld [vmem:[#allocation2 + $0xf8] sm:$0xff]
      %v2797 = vadd.f32 %v2765, %v2607
      %v2798 = vadd.f32 %v2766, %v2612
      %v2799 = vadd.f32 %v2767, %v2617
      %v2800 = vadd.f32 %v2768, %v2622
      %v2801 = vadd.f32 %v2769, %v2627
      %v2802 = vadd.f32 %v2770, %v2632
      %v2803 = vadd.f32 %v2771, %v2637
      %v2804 = vadd.f32 %v2772, %v2642
      %v2805 = vadd.f32 %v2773, %v2647
      %v2806 = vadd.f32 %v2774, %v2652
      %v2807 = vadd.f32 %v2775, %v2657
      %v2808 = vadd.f32 %v2776, %v2662
      %v2809 = vadd.f32 %v2777, %v2667
      %v2810 = vadd.f32 %v2778, %v2672
      %v2811 = vadd.f32 %v2779, %v2677
      %v2812 = vadd.f32 %v2780, %v2682
      %v2813 = vadd.f32 %v2781, %v2687
      %v2814 = vadd.f32 %v2782, %v2692
      %v2815 = vadd.f32 %v2783, %v2697
      %v2816 = vadd.f32 %v2784, %v2702
      %v2817 = vadd.f32 %v2785, %v2707
      %v2818 = vadd.f32 %v2786, %v2712
      %v2819 = vadd.f32 %v2787, %v2717
      %v2820 = vadd.f32 %v2788, %v2722
      %v2821 = vadd.f32 %v2789, %v2727
      %v2822 = vadd.f32 %v2790, %v2732
      %v2823 = vadd.f32 %v2791, %v2737
      %v2824 = vadd.f32 %v2792, %v2742
      %v2825 = vadd.f32 %v2793, %v2747
      %v2826 = vadd.f32 %v2794, %v2752
      %v2827 = vadd.f32 %v2795, %v2757
      %v2828 = vadd.f32 %v2796, %v2762
      %2829 = vst [vmem:[#allocation2] sm:$0xff] %v2797
      %2830 = vst [vmem:[#allocation2 + $0x8] sm:$0xff] %v2798
      %2831 = vst [vmem:[#allocation2 + $0x10] sm:$0xff] %v2799
      %2832 = vst [vmem:[#allocation2 + $0x18] sm:$0xff] %v2800
      %2833 = vst [vmem:[#allocation2 + $0x20] sm:$0xff] %v2801
      %2834 = vst [vmem:[#allocation2 + $0x28] sm:$0xff] %v2802
      %2835 = vst [vmem:[#allocation2 + $0x30] sm:$0xff] %v2803
      %2836 = vst [vmem:[#allocation2 + $0x38] sm:$0xff] %v2804
      %2837 = vst [vmem:[#allocation2 + $0x40] sm:$0xff] %v2805
      %2838 = vst [vmem:[#allocation2 + $0x48] sm:$0xff] %v2806
      %2839 = vst [vmem:[#allocation2 + $0x50] sm:$0xff] %v2807
      %2840 = vst [vmem:[#allocation2 + $0x58] sm:$0xff] %v2808
      %2841 = vst [vmem:[#allocation2 + $0x60] sm:$0xff] %v2809
      %2842 = vst [vmem:[#allocation2 + $0x68] sm:$0xff] %v2810
      %2843 = vst [vmem:[#allocation2 + $0x70] sm:$0xff] %v2811
      %2844 = vst [vmem:[#allocation2 + $0x78] sm:$0xff] %v2812
      %2845 = vst [vmem:[#allocation2 + $0x80] sm:$0xff] %v2813
      %2846 = vst [vmem:[#allocation2 + $0x88] sm:$0xff] %v2814
      %2847 = vst [vmem:[#allocation2 + $0x90] sm:$0xff] %v2815
      %2848 = vst [vmem:[#allocation2 + $0x98] sm:$0xff] %v2816
      %2849 = vst [vmem:[#allocation2 + $0xa0] sm:$0xff] %v2817
      %2850 = vst [vmem:[#allocation2 + $0xa8] sm:$0xff] %v2818
      %2851 = vst [vmem:[#allocation2 + $0xb0] sm:$0xff] %v2819
      %2852 = vst [vmem:[#allocation2 + $0xb8] sm:$0xff] %v2820
      %2853 = vst [vmem:[#allocation2 + $0xc0] sm:$0xff] %v2821
      %2854 = vst [vmem:[#allocation2 + $0xc8] sm:$0xff] %v2822
      %2855 = vst [vmem:[#allocation2 + $0xd0] sm:$0xff] %v2823
      %2856 = vst [vmem:[#allocation2 + $0xd8] sm:$0xff] %v2824
      %2857 = vst [vmem:[#allocation2 + $0xe0] sm:$0xff] %v2825
      %2858 = vst [vmem:[#allocation2 + $0xe8] sm:$0xff] %v2826
      %2859 = vst [vmem:[#allocation2 + $0xf0] sm:$0xff] %v2827
      %2860 = vst [vmem:[#allocation2 + $0xf8] sm:$0xff] %v2828
      %s2861 = sadd.s32 %s194, 2
      %s2862 = smul.u32 %s2861, 24
      %s2863 = scalar_lea.vmem %s183, %s2862
      %v2864 = vld [vmem:[%s2863] sm:$0xff]
      %v2865 = vld [vmem:[%s2863 + $0x8] sm:$0xff]
      %v2866 = vld [vmem:[%s2863 + $0x18] sm:$0xff]
      %v2867 = vld [vmem:[%s2863 + $0x20] sm:$0xff]
      %v2868 = vld [vmem:[%s2863 + $0x30] sm:$0xff]
      %v2869 = vld [vmem:[%s2863 + $0x38] sm:$0xff]
      %v2870 = vld [vmem:[%s2863 + $0x48] sm:$0xff]
      %v2871 = vld [vmem:[%s2863 + $0x50] sm:$0xff]
      %v2872 = vld [vmem:[%s2863 + $0x60] sm:$0xff]
      %v2873 = vld [vmem:[%s2863 + $0x68] sm:$0xff]
      %v2874 = vld [vmem:[%s2863 + $0x78] sm:$0xff]
      %v2875 = vld [vmem:[%s2863 + $0x80] sm:$0xff]
      %v2876 = vld [vmem:[%s2863 + $0x90] sm:$0xff]
      %v2877 = vld [vmem:[%s2863 + $0x98] sm:$0xff]
      %v2878 = vld [vmem:[%s2863 + $0xa8] sm:$0xff]
      %v2879 = vld [vmem:[%s2863 + $0xb0] sm:$0xff]
      %v2880 = vld [vmem:[%s2863 + $0xc0] sm:$0xff]
      %v2881 = vld [vmem:[%s2863 + $0xc8] sm:$0xff]
      %v2882 = vld [vmem:[%s2863 + $0xd8] sm:$0xff]
      %v2883 = vld [vmem:[%s2863 + $0xe0] sm:$0xff]
      %v2884 = vld [vmem:[%s2863 + $0xf0] sm:$0xff]
      %v2885 = vld [vmem:[%s2863 + $0xf8] sm:$0xff]
      %v2886 = vld [vmem:[%s2863 + $0x108] sm:$0xff]
      %v2887 = vld [vmem:[%s2863 + $0x110] sm:$0xff]
      %v2888 = vld [vmem:[%s2863 + $0x120] sm:$0xff]
      %v2889 = vld [vmem:[%s2863 + $0x128] sm:$0xff]
      %v2890 = vld [vmem:[%s2863 + $0x138] sm:$0xff]
      %v2891 = vld [vmem:[%s2863 + $0x140] sm:$0xff]
      %v2892 = vld [vmem:[%s2863 + $0x150] sm:$0xff]
      %v2893 = vld [vmem:[%s2863 + $0x158] sm:$0xff]
      %v2894 = vld [vmem:[%s2863 + $0x168] sm:$0xff]
      %v2895 = vld [vmem:[%s2863 + $0x170] sm:$0xff]
      %s2896 = scalar_lea.vmem %s1, 24
      %v2897 = vld [vmem:[%s2896] sm:$0xf]
      %v2899 = vsel %vm230, %v2864, 0
      %v2902 = vsel %vm230, %v2865, 0
      %v2905 = vsel %vm230, %v2866, 0
      %v2908 = vsel %vm230, %v2867, 0
      %v2911 = vsel %vm230, %v2868, 0
      %v2914 = vsel %vm230, %v2869, 0
      %v2917 = vsel %vm230, %v2870, 0
      %v2920 = vsel %vm230, %v2871, 0
      %v2923 = vsel %vm230, %v2872, 0
      %v2926 = vsel %vm230, %v2873, 0
      %v2929 = vsel %vm230, %v2874, 0
      %v2932 = vsel %vm230, %v2875, 0
      %v2935 = vsel %vm230, %v2876, 0
      %v2938 = vsel %vm230, %v2877, 0
      %v2941 = vsel %vm230, %v2878, 0
      %v2944 = vsel %vm230, %v2879, 0
      %v2947 = vsel %vm230, %v2880, 0
      %v2950 = vsel %vm230, %v2881, 0
      %v2953 = vsel %vm230, %v2882, 0
      %v2956 = vsel %vm230, %v2883, 0
      %v2959 = vsel %vm230, %v2884, 0
      %v2962 = vsel %vm230, %v2885, 0
      %v2965 = vsel %vm230, %v2886, 0
      %v2968 = vsel %vm230, %v2887, 0
      %v2971 = vsel %vm230, %v2888, 0
      %v2974 = vsel %vm230, %v2889, 0
      %v2977 = vsel %vm230, %v2890, 0
      %v2980 = vsel %vm230, %v2891, 0
      %v2983 = vsel %vm230, %v2892, 0
      %v2986 = vsel %vm230, %v2893, 0
      %v2989 = vsel %vm230, %v2894, 0
      %v2992 = vsel %vm230, %v2895, 0
      %v2995 = vsel %vm327, %v2897, 0
      %2997 = vmatprep.subr.mxu0 0.0
      %2998 = vmatpush1.msra.mxu0 %v2995
      %2999 = vmatprep.subr.mxu0 0.0
      %3000 = vmatpush1.msra.mxu0 0.0
      %3001 = vmatprep.subr.mxu0 0.0
      %3002 = vmatpush1.msra.mxu0 0.0
      %3003 = vmatprep.subr.mxu0 0.0
      %3004 = vmatpush1.msra.mxu0 0.0
      %3005 = vmatprep.subr.mxu0 0.0
      %3006 = vmatpush1.msra.mxu0 0.0
      %3007 = vmatprep.subr.mxu0 0.0
      %3008 = vmatpush1.msra.mxu0 0.0
      %3009 = vmatprep.subr.mxu0 0.0
      %3010 = vmatpush1.msra.mxu0 0.0
      %3011 = vmatprep.subr.mxu0 0.0
      %3012 = vmatpush1.msra.mxu0 0.0
      %3013 = vmatprep.subr.mxu0 0.0
      %3014 = vmatpush1.msra.mxu0 0.0
      %3015 = vmatprep.subr.mxu0 0.0
      %3016 = vmatpush1.msra.mxu0 0.0
      %3017 = vmatprep.subr.mxu0 0.0
      %3018 = vmatpush1.msra.mxu0 0.0
      %3019 = vmatprep.subr.mxu0 0.0
      %3020 = vmatpush1.msra.mxu0 0.0
      %3021 = vmatprep.subr.mxu0 0.0
      %3022 = vmatpush1.msra.mxu0 0.0
      %3023 = vmatprep.subr.mxu0 0.0
      %3024 = vmatpush1.msra.mxu0 0.0
      %3025 = vmatprep.subr.mxu0 0.0
      %3026 = vmatpush1.msra.mxu0 0.0
      %3027 = vmatprep.subr.mxu0 0.0
      %3028 = vmatpush1.msra.mxu0 0.0
      %3029 = vmatprep.subr.mxu0 0.0
      %3030 = vmatpush1.msra.mxu0 0.0
      %3031 = vmatprep.subr.mxu0 0.0
      %3032 = vmatpush1.msra.mxu0 0.0
      %3033 = vmatprep.subr.mxu0 0.0
      %3034 = vmatpush1.msra.mxu0 0.0
      %3035 = vmatprep.subr.mxu0 0.0
      %3036 = vmatpush1.msra.mxu0 0.0
      %3037 = vmatprep.subr.mxu0 0.0
      %3038 = vmatpush1.msra.mxu0 0.0
      %3039 = vmatprep.subr.mxu0 0.0
      %3040 = vmatpush1.msra.mxu0 0.0
      %3041 = vmatprep.subr.mxu0 0.0
      %3042 = vmatpush1.msra.mxu0 0.0
      %3043 = vmatprep.subr.mxu0 0.0
      %3044 = vmatpush1.msra.mxu0 0.0
      %3045 = vmatprep.subr.mxu0 0.0
      %3046 = vmatpush1.msra.mxu0 0.0
      %3047 = vmatprep.subr.mxu0 0.0
      %3048 = vmatpush1.msra.mxu0 0.0
      %3049 = vmatprep.subr.mxu0 0.0
      %3050 = vmatpush1.msra.mxu0 0.0
      %3051 = vmatprep.subr.mxu0 0.0
      %3052 = vmatpush1.msra.mxu0 0.0
      %3053 = vmatprep.subr.mxu0 0.0
      %3054 = vmatpush1.msra.mxu0 0.0
      %3055 = vmatprep.subr.mxu0 0.0
      %3056 = vmatpush1.msra.mxu0 0.0
      %3057 = vmatprep.subr.mxu0 0.0
      %3058 = vmatpush1.msra.mxu0 0.0
      %3059 = vmatprep.subr.mxu0 0.0
      %3060 = vmatpush1.msra.mxu0 0.0
      %3061 = vmatprep.mubr.f32.mxu0 0.0
      %3062 = vmatmul.mubr.f32.gmra.mrb[0].mxu0 %v2899
      %v3063 = vpop.f32.mrb[0].mxu0
      %v3064 = vadd.f32 0.0, %v3063
      %v3065 = vpop.f32.mrb[0].mxu0
      %3066 = vmatprep.mubr.f32.mxu0 0.0
      %3067 = vmatmul.mubr.f32.gmra.mrb[0].mxu0 %v2902
      %v3068 = vpop.f32.mrb[0].mxu0
      %v3069 = vadd.f32 0.0, %v3068
      %v3070 = vpop.f32.mrb[0].mxu0
      %3071 = vmatprep.mubr.f32.mxu0 0.0
      %3072 = vmatmul.mubr.f32.gmra.mrb[0].mxu0 %v2905
      %v3073 = vpop.f32.mrb[0].mxu0
      %v3074 = vadd.f32 0.0, %v3073
      %v3075 = vpop.f32.mrb[0].mxu0
      %3076 = vmatprep.mubr.f32.mxu0 0.0
      %3077 = vmatmul.mubr.f32.gmra.mrb[0].mxu0 %v2908
      %v3078 = vpop.f32.mrb[0].mxu0
      %v3079 = vadd.f32 0.0, %v3078
      %v3080 = vpop.f32.mrb[0].mxu0
      %3081 = vmatprep.mubr.f32.mxu0 0.0
      %3082 = vmatmul.mubr.f32.gmra.mrb[0].mxu0 %v2911
      %v3083 = vpop.f32.mrb[0].mxu0
      %v3084 = vadd.f32 0.0, %v3083
      %v3085 = vpop.f32.mrb[0].mxu0
      %3086 = vmatprep.mubr.f32.mxu0 0.0
      %3087 = vmatmul.mubr.f32.gmra.mrb[0].mxu0 %v2914
      %v3088 = vpop.f32.mrb[0].mxu0
      %v3089 = vadd.f32 0.0, %v3088
      %v3090 = vpop.f32.mrb[0].mxu0
      %3091 = vmatprep.mubr.f32.mxu0 0.0
      %3092 = vmatmul.mubr.f32.gmra.mrb[0].mxu0 %v2917
      %v3093 = vpop.f32.mrb[0].mxu0
      %v3094 = vadd.f32 0.0, %v3093
      %v3095 = vpop.f32.mrb[0].mxu0
      %3096 = vmatprep.mubr.f32.mxu0 0.0
      %3097 = vmatmul.mubr.f32.gmra.mrb[0].mxu0 %v2920
      %v3098 = vpop.f32.mrb[0].mxu0
      %v3099 = vadd.f32 0.0, %v3098
      %v3100 = vpop.f32.mrb[0].mxu0
      %3101 = vmatprep.mubr.f32.mxu0 0.0
      %3102 = vmatmul.mubr.f32.gmra.mrb[0].mxu0 %v2923
      %v3103 = vpop.f32.mrb[0].mxu0
      %v3104 = vadd.f32 0.0, %v3103
      %v3105 = vpop.f32.mrb[0].mxu0
      %3106 = vmatprep.mubr.f32.mxu0 0.0
      %3107 = vmatmul.mubr.f32.gmra.mrb[0].mxu0 %v2926
      %v3108 = vpop.f32.mrb[0].mxu0
      %v3109 = vadd.f32 0.0, %v3108
      %v3110 = vpop.f32.mrb[0].mxu0
      %3111 = vmatprep.mubr.f32.mxu0 0.0
      %3112 = vmatmul.mubr.f32.gmra.mrb[0].mxu0 %v2929
      %v3113 = vpop.f32.mrb[0].mxu0
      %v3114 = vadd.f32 0.0, %v3113
      %v3115 = vpop.f32.mrb[0].mxu0
      %3116 = vmatprep.mubr.f32.mxu0 0.0
      %3117 = vmatmul.mubr.f32.gmra.mrb[0].mxu0 %v2932
      %v3118 = vpop.f32.mrb[0].mxu0
      %v3119 = vadd.f32 0.0, %v3118
      %v3120 = vpop.f32.mrb[0].mxu0
      %3121 = vmatprep.mubr.f32.mxu0 0.0
      %3122 = vmatmul.mubr.f32.gmra.mrb[0].mxu0 %v2935
      %v3123 = vpop.f32.mrb[0].mxu0
      %v3124 = vadd.f32 0.0, %v3123
      %v3125 = vpop.f32.mrb[0].mxu0
      %3126 = vmatprep.mubr.f32.mxu0 0.0
      %3127 = vmatmul.mubr.f32.gmra.mrb[0].mxu0 %v2938
      %v3128 = vpop.f32.mrb[0].mxu0
      %v3129 = vadd.f32 0.0, %v3128
      %v3130 = vpop.f32.mrb[0].mxu0
      %3131 = vmatprep.mubr.f32.mxu0 0.0
      %3132 = vmatmul.mubr.f32.gmra.mrb[0].mxu0 %v2941
      %v3133 = vpop.f32.mrb[0].mxu0
      %v3134 = vadd.f32 0.0, %v3133
      %v3135 = vpop.f32.mrb[0].mxu0
      %3136 = vmatprep.mubr.f32.mxu0 0.0
      %3137 = vmatmul.mubr.f32.gmra.mrb[0].mxu0 %v2944
      %v3138 = vpop.f32.mrb[0].mxu0
      %v3139 = vadd.f32 0.0, %v3138
      %v3140 = vpop.f32.mrb[0].mxu0
      %3141 = vmatprep.mubr.f32.mxu0 0.0
      %3142 = vmatmul.mubr.f32.gmra.mrb[0].mxu0 %v2947
      %v3143 = vpop.f32.mrb[0].mxu0
      %v3144 = vadd.f32 0.0, %v3143
      %v3145 = vpop.f32.mrb[0].mxu0
      %3146 = vmatprep.mubr.f32.mxu0 0.0
      %3147 = vmatmul.mubr.f32.gmra.mrb[0].mxu0 %v2950
      %v3148 = vpop.f32.mrb[0].mxu0
      %v3149 = vadd.f32 0.0, %v3148
      %v3150 = vpop.f32.mrb[0].mxu0
      %3151 = vmatprep.mubr.f32.mxu0 0.0
      %3152 = vmatmul.mubr.f32.gmra.mrb[0].mxu0 %v2953
      %v3153 = vpop.f32.mrb[0].mxu0
      %v3154 = vadd.f32 0.0, %v3153
      %v3155 = vpop.f32.mrb[0].mxu0
      %3156 = vmatprep.mubr.f32.mxu0 0.0
      %3157 = vmatmul.mubr.f32.gmra.mrb[0].mxu0 %v2956
      %v3158 = vpop.f32.mrb[0].mxu0
      %v3159 = vadd.f32 0.0, %v3158
      %v3160 = vpop.f32.mrb[0].mxu0
      %3161 = vmatprep.mubr.f32.mxu0 0.0
      %3162 = vmatmul.mubr.f32.gmra.mrb[0].mxu0 %v2959
      %v3163 = vpop.f32.mrb[0].mxu0
      %v3164 = vadd.f32 0.0, %v3163
      %v3165 = vpop.f32.mrb[0].mxu0
      %3166 = vmatprep.mubr.f32.mxu0 0.0
      %3167 = vmatmul.mubr.f32.gmra.mrb[0].mxu0 %v2962
      %v3168 = vpop.f32.mrb[0].mxu0
      %v3169 = vadd.f32 0.0, %v3168
      %v3170 = vpop.f32.mrb[0].mxu0
      %3171 = vmatprep.mubr.f32.mxu0 0.0
      %3172 = vmatmul.mubr.f32.gmra.mrb[0].mxu0 %v2965
      %v3173 = vpop.f32.mrb[0].mxu0
      %v3174 = vadd.f32 0.0, %v3173
      %v3175 = vpop.f32.mrb[0].mxu0
      %3176 = vmatprep.mubr.f32.mxu0 0.0
      %3177 = vmatmul.mubr.f32.gmra.mrb[0].mxu0 %v2968
      %v3178 = vpop.f32.mrb[0].mxu0
      %v3179 = vadd.f32 0.0, %v3178
      %v3180 = vpop.f32.mrb[0].mxu0
      %3181 = vmatprep.mubr.f32.mxu0 0.0
      %3182 = vmatmul.mubr.f32.gmra.mrb[0].mxu0 %v2971
      %v3183 = vpop.f32.mrb[0].mxu0
      %v3184 = vadd.f32 0.0, %v3183
      %v3185 = vpop.f32.mrb[0].mxu0
      %3186 = vmatprep.mubr.f32.mxu0 0.0
      %3187 = vmatmul.mubr.f32.gmra.mrb[0].mxu0 %v2974
      %v3188 = vpop.f32.mrb[0].mxu0
      %v3189 = vadd.f32 0.0, %v3188
      %v3190 = vpop.f32.mrb[0].mxu0
      %3191 = vmatprep.mubr.f32.mxu0 0.0
      %3192 = vmatmul.mubr.f32.gmra.mrb[0].mxu0 %v2977
      %v3193 = vpop.f32.mrb[0].mxu0
      %v3194 = vadd.f32 0.0, %v3193
      %v3195 = vpop.f32.mrb[0].mxu0
      %3196 = vmatprep.mubr.f32.mxu0 0.0
      %3197 = vmatmul.mubr.f32.gmra.mrb[0].mxu0 %v2980
      %v3198 = vpop.f32.mrb[0].mxu0
      %v3199 = vadd.f32 0.0, %v3198
      %v3200 = vpop.f32.mrb[0].mxu0
      %3201 = vmatprep.mubr.f32.mxu0 0.0
      %3202 = vmatmul.mubr.f32.gmra.mrb[0].mxu0 %v2983
      %v3203 = vpop.f32.mrb[0].mxu0
      %v3204 = vadd.f32 0.0, %v3203
      %v3205 = vpop.f32.mrb[0].mxu0
      %3206 = vmatprep.mubr.f32.mxu0 0.0
      %3207 = vmatmul.mubr.f32.gmra.mrb[0].mxu0 %v2986
      %v3208 = vpop.f32.mrb[0].mxu0
      %v3209 = vadd.f32 0.0, %v3208
      %v3210 = vpop.f32.mrb[0].mxu0
      %3211 = vmatprep.mubr.f32.mxu0 0.0
      %3212 = vmatmul.mubr.f32.gmra.mrb[0].mxu0 %v2989
      %v3213 = vpop.f32.mrb[0].mxu0
      %v3214 = vadd.f32 0.0, %v3213
      %v3215 = vpop.f32.mrb[0].mxu0
      %3216 = vmatprep.mubr.f32.mxu0 0.0
      %3217 = vmatmul.mubr.f32.gmra.mrb[0].mxu0 %v2992
      %v3218 = vpop.f32.mrb[0].mxu0
      %v3219 = vadd.f32 0.0, %v3218
      %v3220 = vpop.f32.mrb[0].mxu0
      %3221 = vdwg.mxu0
      %v3222 = vld [vmem:[#allocation2] sm:$0xff]
      %v3223 = vld [vmem:[#allocation2 + $0x8] sm:$0xff]
      %v3224 = vld [vmem:[#allocation2 + $0x10] sm:$0xff]
      %v3225 = vld [vmem:[#allocation2 + $0x18] sm:$0xff]
      %v3226 = vld [vmem:[#allocation2 + $0x20] sm:$0xff]
      %v3227 = vld [vmem:[#allocation2 + $0x28] sm:$0xff]
      %v3228 = vld [vmem:[#allocation2 + $0x30] sm:$0xff]
      %v3229 = vld [vmem:[#allocation2 + $0x38] sm:$0xff]
      %v3230 = vld [vmem:[#allocation2 + $0x40] sm:$0xff]
      %v3231 = vld [vmem:[#allocation2 + $0x48] sm:$0xff]
      %v3232 = vld [vmem:[#allocation2 + $0x50] sm:$0xff]
      %v3233 = vld [vmem:[#allocation2 + $0x58] sm:$0xff]
      %v3234 = vld [vmem:[#allocation2 + $0x60] sm:$0xff]
      %v3235 = vld [vmem:[#allocation2 + $0x68] sm:$0xff]
      %v3236 = vld [vmem:[#allocation2 + $0x70] sm:$0xff]
      %v3237 = vld [vmem:[#allocation2 + $0x78] sm:$0xff]
      %v3238 = vld [vmem:[#allocation2 + $0x80] sm:$0xff]
      %v3239 = vld [vmem:[#allocation2 + $0x88] sm:$0xff]
      %v3240 = vld [vmem:[#allocation2 + $0x90] sm:$0xff]
      %v3241 = vld [vmem:[#allocation2 + $0x98] sm:$0xff]
      %v3242 = vld [vmem:[#allocation2 + $0xa0] sm:$0xff]
      %v3243 = vld [vmem:[#allocation2 + $0xa8] sm:$0xff]
      %v3244 = vld [vmem:[#allocation2 + $0xb0] sm:$0xff]
      %v3245 = vld [vmem:[#allocation2 + $0xb8] sm:$0xff]
      %v3246 = vld [vmem:[#allocation2 + $0xc0] sm:$0xff]
      %v3247 = vld [vmem:[#allocation2 + $0xc8] sm:$0xff]
      %v3248 = vld [vmem:[#allocation2 + $0xd0] sm:$0xff]
      %v3249 = vld [vmem:[#allocation2 + $0xd8] sm:$0xff]
      %v3250 = vld [vmem:[#allocation2 + $0xe0] sm:$0xff]
      %v3251 = vld [vmem:[#allocation2 + $0xe8] sm:$0xff]
      %v3252 = vld [vmem:[#allocation2 + $0xf0] sm:$0xff]
      %v3253 = vld [vmem:[#allocation2 + $0xf8] sm:$0xff]
      %v3254 = vadd.f32 %v3222, %v3064
      %v3255 = vadd.f32 %v3223, %v3069
      %v3256 = vadd.f32 %v3224, %v3074
      %v3257 = vadd.f32 %v3225, %v3079
      %v3258 = vadd.f32 %v3226, %v3084
      %v3259 = vadd.f32 %v3227, %v3089
      %v3260 = vadd.f32 %v3228, %v3094
      %v3261 = vadd.f32 %v3229, %v3099
      %v3262 = vadd.f32 %v3230, %v3104
      %v3263 = vadd.f32 %v3231, %v3109
      %v3264 = vadd.f32 %v3232, %v3114
      %v3265 = vadd.f32 %v3233, %v3119
      %v3266 = vadd.f32 %v3234, %v3124
      %v3267 = vadd.f32 %v3235, %v3129
      %v3268 = vadd.f32 %v3236, %v3134
      %v3269 = vadd.f32 %v3237, %v3139
      %v3270 = vadd.f32 %v3238, %v3144
      %v3271 = vadd.f32 %v3239, %v3149
      %v3272 = vadd.f32 %v3240, %v3154
      %v3273 = vadd.f32 %v3241, %v3159
      %v3274 = vadd.f32 %v3242, %v3164
      %v3275 = vadd.f32 %v3243, %v3169
      %v3276 = vadd.f32 %v3244, %v3174
      %v3277 = vadd.f32 %v3245, %v3179
      %v3278 = vadd.f32 %v3246, %v3184
      %v3279 = vadd.f32 %v3247, %v3189
      %v3280 = vadd.f32 %v3248, %v3194
      %v3281 = vadd.f32 %v3249, %v3199
      %v3282 = vadd.f32 %v3250, %v3204
      %v3283 = vadd.f32 %v3251, %v3209
      %v3284 = vadd.f32 %v3252, %v3214
      %v3285 = vadd.f32 %v3253, %v3219
      %3286 = vst [vmem:[#allocation2] sm:$0xff] %v3254
      %3287 = vst [vmem:[#allocation2 + $0x8] sm:$0xff] %v3255
      %3288 = vst [vmem:[#allocation2 + $0x10] sm:$0xff] %v3256
      %3289 = vst [vmem:[#allocation2 + $0x18] sm:$0xff] %v3257
      %3290 = vst [vmem:[#allocation2 + $0x20] sm:$0xff] %v3258
      %3291 = vst [vmem:[#allocation2 + $0x28] sm:$0xff] %v3259
      %3292 = vst [vmem:[#allocation2 + $0x30] sm:$0xff] %v3260
      %3293 = vst [vmem:[#allocation2 + $0x38] sm:$0xff] %v3261
      %3294 = vst [vmem:[#allocation2 + $0x40] sm:$0xff] %v3262
      %3295 = vst [vmem:[#allocation2 + $0x48] sm:$0xff] %v3263
      %3296 = vst [vmem:[#allocation2 + $0x50] sm:$0xff] %v3264
      %3297 = vst [vmem:[#allocation2 + $0x58] sm:$0xff] %v3265
      %3298 = vst [vmem:[#allocation2 + $0x60] sm:$0xff] %v3266
      %3299 = vst [vmem:[#allocation2 + $0x68] sm:$0xff] %v3267
      %3300 = vst [vmem:[#allocation2 + $0x70] sm:$0xff] %v3268
      %3301 = vst [vmem:[#allocation2 + $0x78] sm:$0xff] %v3269
      %3302 = vst [vmem:[#allocation2 + $0x80] sm:$0xff] %v3270
      %3303 = vst [vmem:[#allocation2 + $0x88] sm:$0xff] %v3271
      %3304 = vst [vmem:[#allocation2 + $0x90] sm:$0xff] %v3272
      %3305 = vst [vmem:[#allocation2 + $0x98] sm:$0xff] %v3273
      %3306 = vst [vmem:[#allocation2 + $0xa0] sm:$0xff] %v3274
      %3307 = vst [vmem:[#allocation2 + $0xa8] sm:$0xff] %v3275
      %3308 = vst [vmem:[#allocation2 + $0xb0] sm:$0xff] %v3276
      %3309 = vst [vmem:[#allocation2 + $0xb8] sm:$0xff] %v3277
      %3310 = vst [vmem:[#allocation2 + $0xc0] sm:$0xff] %v3278
      %3311 = vst [vmem:[#allocation2 + $0xc8] sm:$0xff] %v3279
      %3312 = vst [vmem:[#allocation2 + $0xd0] sm:$0xff] %v3280
      %3313 = vst [vmem:[#allocation2 + $0xd8] sm:$0xff] %v3281
      %3314 = vst [vmem:[#allocation2 + $0xe0] sm:$0xff] %v3282
      %3315 = vst [vmem:[#allocation2 + $0xe8] sm:$0xff] %v3283
      %3316 = vst [vmem:[#allocation2 + $0xf0] sm:$0xff] %v3284
      %3317 = vst [vmem:[#allocation2 + $0xf8] sm:$0xff] %v3285
      %v3318 = vld [vmem:[%s2863 + $0x1] sm:$0xff]
      %v3319 = vld [vmem:[%s2863 + $0x9] sm:$0xff]
      %v3320 = vld [vmem:[%s2863 + $0x19] sm:$0xff]
      %v3321 = vld [vmem:[%s2863 + $0x21] sm:$0xff]
      %v3322 = vld [vmem:[%s2863 + $0x31] sm:$0xff]
      %v3323 = vld [vmem:[%s2863 + $0x39] sm:$0xff]
      %v3324 = vld [vmem:[%s2863 + $0x49] sm:$0xff]
      %v3325 = vld [vmem:[%s2863 + $0x51] sm:$0xff]
      %v3326 = vld [vmem:[%s2863 + $0x61] sm:$0xff]
      %v3327 = vld [vmem:[%s2863 + $0x69] sm:$0xff]
      %v3328 = vld [vmem:[%s2863 + $0x79] sm:$0xff]
      %v3329 = vld [vmem:[%s2863 + $0x81] sm:$0xff]
      %v3330 = vld [vmem:[%s2863 + $0x91] sm:$0xff]
      %v3331 = vld [vmem:[%s2863 + $0x99] sm:$0xff]
      %v3332 = vld [vmem:[%s2863 + $0xa9] sm:$0xff]
      %v3333 = vld [vmem:[%s2863 + $0xb1] sm:$0xff]
      %v3334 = vld [vmem:[%s2863 + $0xc1] sm:$0xff]
      %v3335 = vld [vmem:[%s2863 + $0xc9] sm:$0xff]
      %v3336 = vld [vmem:[%s2863 + $0xd9] sm:$0xff]
      %v3337 = vld [vmem:[%s2863 + $0xe1] sm:$0xff]
      %v3338 = vld [vmem:[%s2863 + $0xf1] sm:$0xff]
      %v3339 = vld [vmem:[%s2863 + $0xf9] sm:$0xff]
      %v3340 = vld [vmem:[%s2863 + $0x109] sm:$0xff]
      %v3341 = vld [vmem:[%s2863 + $0x111] sm:$0xff]
      %v3342 = vld [vmem:[%s2863 + $0x121] sm:$0xff]
      %v3343 = vld [vmem:[%s2863 + $0x129] sm:$0xff]
      %v3344 = vld [vmem:[%s2863 + $0x139] sm:$0xff]
      %v3345 = vld [vmem:[%s2863 + $0x141] sm:$0xff]
      %v3346 = vld [vmem:[%s2863 + $0x151] sm:$0xff]
      %v3347 = vld [vmem:[%s2863 + $0x159] sm:$0xff]
      %v3348 = vld [vmem:[%s2863 + $0x169] sm:$0xff]
      %v3349 = vld [vmem:[%s2863 + $0x171] sm:$0xff]
      %s3350 = scalar_lea.vmem %s1, 28
      %v3351 = vld [vmem:[%s3350] sm:$0xf]
      %v3353 = vsel %vm230, %v3318, 0
      %v3356 = vsel %vm230, %v3319, 0
      %v3359 = vsel %vm230, %v3320, 0
      %v3362 = vsel %vm230, %v3321, 0
      %v3365 = vsel %vm230, %v3322, 0
      %v3368 = vsel %vm230, %v3323, 0
      %v3371 = vsel %vm230, %v3324, 0
      %v3374 = vsel %vm230, %v3325, 0
      %v3377 = vsel %vm230, %v3326, 0
      %v3380 = vsel %vm230, %v3327, 0
      %v3383 = vsel %vm230, %v3328, 0
      %v3386 = vsel %vm230, %v3329, 0
      %v3389 = vsel %vm230, %v3330, 0
      %v3392 = vsel %vm230, %v3331, 0
      %v3395 = vsel %vm230, %v3332, 0
      %v3398 = vsel %vm230, %v3333, 0
      %v3401 = vsel %vm230, %v3334, 0
      %v3404 = vsel %vm230, %v3335, 0
      %v3407 = vsel %vm230, %v3336, 0
      %v3410 = vsel %vm230, %v3337, 0
      %v3413 = vsel %vm230, %v3338, 0
      %v3416 = vsel %vm230, %v3339, 0
      %v3419 = vsel %vm230, %v3340, 0
      %v3422 = vsel %vm230, %v3341, 0
      %v3425 = vsel %vm230, %v3342, 0
      %v3428 = vsel %vm230, %v3343, 0
      %v3431 = vsel %vm230, %v3344, 0
      %v3434 = vsel %vm230, %v3345, 0
      %v3437 = vsel %vm230, %v3346, 0
      %v3440 = vsel %vm230, %v3347, 0
      %v3443 = vsel %vm230, %v3348, 0
      %v3446 = vsel %vm230, %v3349, 0
      %v3449 = vsel %vm327, %v3351, 0
      %3451 = vmatprep.subr.mxu0 0.0
      %3452 = vmatpush1.msra.mxu0 %v3449
      %3453 = vmatprep.subr.mxu0 0.0
      %3454 = vmatpush1.msra.mxu0 0.0
      %3455 = vmatprep.subr.mxu0 0.0
      %3456 = vmatpush1.msra.mxu0 0.0
      %3457 = vmatprep.subr.mxu0 0.0
      %3458 = vmatpush1.msra.mxu0 0.0
      %3459 = vmatprep.subr.mxu0 0.0
      %3460 = vmatpush1.msra.mxu0 0.0
      %3461 = vmatprep.subr.mxu0 0.0
      %3462 = vmatpush1.msra.mxu0 0.0
      %3463 = vmatprep.subr.mxu0 0.0
      %3464 = vmatpush1.msra.mxu0 0.0
      %3465 = vmatprep.subr.mxu0 0.0
      %3466 = vmatpush1.msra.mxu0 0.0
      %3467 = vmatprep.subr.mxu0 0.0
      %3468 = vmatpush1.msra.mxu0 0.0
      %3469 = vmatprep.subr.mxu0 0.0
      %3470 = vmatpush1.msra.mxu0 0.0
      %3471 = vmatprep.subr.mxu0 0.0
      %3472 = vmatpush1.msra.mxu0 0.0
      %3473 = vmatprep.subr.mxu0 0.0
      %3474 = vmatpush1.msra.mxu0 0.0
      %3475 = vmatprep.subr.mxu0 0.0
      %3476 = vmatpush1.msra.mxu0 0.0
      %3477 = vmatprep.subr.mxu0 0.0
      %3478 = vmatpush1.msra.mxu0 0.0
      %3479 = vmatprep.subr.mxu0 0.0
      %3480 = vmatpush1.msra.mxu0 0.0
      %3481 = vmatprep.subr.mxu0 0.0
      %3482 = vmatpush1.msra.mxu0 0.0
      %3483 = vmatprep.subr.mxu0 0.0
      %3484 = vmatpush1.msra.mxu0 0.0
      %3485 = vmatprep.subr.mxu0 0.0
      %3486 = vmatpush1.msra.mxu0 0.0
      %3487 = vmatprep.subr.mxu0 0.0
      %3488 = vmatpush1.msra.mxu0 0.0
      %3489 = vmatprep.subr.mxu0 0.0
      %3490 = vmatpush1.msra.mxu0 0.0
      %3491 = vmatprep.subr.mxu0 0.0
      %3492 = vmatpush1.msra.mxu0 0.0
      %3493 = vmatprep.subr.mxu0 0.0
      %3494 = vmatpush1.msra.mxu0 0.0
      %3495 = vmatprep.subr.mxu0 0.0
      %3496 = vmatpush1.msra.mxu0 0.0
      %3497 = vmatprep.subr.mxu0 0.0
      %3498 = vmatpush1.msra.mxu0 0.0
      %3499 = vmatprep.subr.mxu0 0.0
      %3500 = vmatpush1.msra.mxu0 0.0
      %3501 = vmatprep.subr.mxu0 0.0
      %3502 = vmatpush1.msra.mxu0 0.0
      %3503 = vmatprep.subr.mxu0 0.0
      %3504 = vmatpush1.msra.mxu0 0.0
      %3505 = vmatprep.subr.mxu0 0.0
      %3506 = vmatpush1.msra.mxu0 0.0
      %3507 = vmatprep.subr.mxu0 0.0
      %3508 = vmatpush1.msra.mxu0 0.0
      %3509 = vmatprep.subr.mxu0 0.0
      %3510 = vmatpush1.msra.mxu0 0.0
      %3511 = vmatprep.subr.mxu0 0.0
      %3512 = vmatpush1.msra.mxu0 0.0
      %3513 = vmatprep.subr.mxu0 0.0
      %3514 = vmatpush1.msra.mxu0 0.0
      %3515 = vmatprep.mubr.f32.mxu0 0.0
      %3516 = vmatmul.mubr.f32.gmra.mrb[0].mxu0 %v3353
      %v3517 = vpop.f32.mrb[0].mxu0
      %v3518 = vadd.f32 0.0, %v3517
      %v3519 = vpop.f32.mrb[0].mxu0
      %3520 = vmatprep.mubr.f32.mxu0 0.0
      %3521 = vmatmul.mubr.f32.gmra.mrb[0].mxu0 %v3356
      %v3522 = vpop.f32.mrb[0].mxu0
      %v3523 = vadd.f32 0.0, %v3522
      %v3524 = vpop.f32.mrb[0].mxu0
      %3525 = vmatprep.mubr.f32.mxu0 0.0
      %3526 = vmatmul.mubr.f32.gmra.mrb[0].mxu0 %v3359
      %v3527 = vpop.f32.mrb[0].mxu0
      %v3528 = vadd.f32 0.0, %v3527
      %v3529 = vpop.f32.mrb[0].mxu0
      %3530 = vmatprep.mubr.f32.mxu0 0.0
      %3531 = vmatmul.mubr.f32.gmra.mrb[0].mxu0 %v3362
      %v3532 = vpop.f32.mrb[0].mxu0
      %v3533 = vadd.f32 0.0, %v3532
      %v3534 = vpop.f32.mrb[0].mxu0
      %3535 = vmatprep.mubr.f32.mxu0 0.0
      %3536 = vmatmul.mubr.f32.gmra.mrb[0].mxu0 %v3365
      %v3537 = vpop.f32.mrb[0].mxu0
      %v3538 = vadd.f32 0.0, %v3537
      %v3539 = vpop.f32.mrb[0].mxu0
      %3540 = vmatprep.mubr.f32.mxu0 0.0
      %3541 = vmatmul.mubr.f32.gmra.mrb[0].mxu0 %v3368
      %v3542 = vpop.f32.mrb[0].mxu0
      %v3543 = vadd.f32 0.0, %v3542
      %v3544 = vpop.f32.mrb[0].mxu0
      %3545 = vmatprep.mubr.f32.mxu0 0.0
      %3546 = vmatmul.mubr.f32.gmra.mrb[0].mxu0 %v3371
      %v3547 = vpop.f32.mrb[0].mxu0
      %v3548 = vadd.f32 0.0, %v3547
      %v3549 = vpop.f32.mrb[0].mxu0
      %3550 = vmatprep.mubr.f32.mxu0 0.0
      %3551 = vmatmul.mubr.f32.gmra.mrb[0].mxu0 %v3374
      %v3552 = vpop.f32.mrb[0].mxu0
      %v3553 = vadd.f32 0.0, %v3552
      %v3554 = vpop.f32.mrb[0].mxu0
      %3555 = vmatprep.mubr.f32.mxu0 0.0
      %3556 = vmatmul.mubr.f32.gmra.mrb[0].mxu0 %v3377
      %v3557 = vpop.f32.mrb[0].mxu0
      %v3558 = vadd.f32 0.0, %v3557
      %v3559 = vpop.f32.mrb[0].mxu0
      %3560 = vmatprep.mubr.f32.mxu0 0.0
      %3561 = vmatmul.mubr.f32.gmra.mrb[0].mxu0 %v3380
      %v3562 = vpop.f32.mrb[0].mxu0
      %v3563 = vadd.f32 0.0, %v3562
      %v3564 = vpop.f32.mrb[0].mxu0
      %3565 = vmatprep.mubr.f32.mxu0 0.0
      %3566 = vmatmul.mubr.f32.gmra.mrb[0].mxu0 %v3383
      %v3567 = vpop.f32.mrb[0].mxu0
      %v3568 = vadd.f32 0.0, %v3567
      %v3569 = vpop.f32.mrb[0].mxu0
      %3570 = vmatprep.mubr.f32.mxu0 0.0
      %3571 = vmatmul.mubr.f32.gmra.mrb[0].mxu0 %v3386
      %v3572 = vpop.f32.mrb[0].mxu0
      %v3573 = vadd.f32 0.0, %v3572
      %v3574 = vpop.f32.mrb[0].mxu0
      %3575 = vmatprep.mubr.f32.mxu0 0.0
      %3576 = vmatmul.mubr.f32.gmra.mrb[0].mxu0 %v3389
      %v3577 = vpop.f32.mrb[0].mxu0
      %v3578 = vadd.f32 0.0, %v3577
      %v3579 = vpop.f32.mrb[0].mxu0
      %3580 = vmatprep.mubr.f32.mxu0 0.0
      %3581 = vmatmul.mubr.f32.gmra.mrb[0].mxu0 %v3392
      %v3582 = vpop.f32.mrb[0].mxu0
      %v3583 = vadd.f32 0.0, %v3582
      %v3584 = vpop.f32.mrb[0].mxu0
      %3585 = vmatprep.mubr.f32.mxu0 0.0
      %3586 = vmatmul.mubr.f32.gmra.mrb[0].mxu0 %v3395
      %v3587 = vpop.f32.mrb[0].mxu0
      %v3588 = vadd.f32 0.0, %v3587
      %v3589 = vpop.f32.mrb[0].mxu0
      %3590 = vmatprep.mubr.f32.mxu0 0.0
      %3591 = vmatmul.mubr.f32.gmra.mrb[0].mxu0 %v3398
      %v3592 = vpop.f32.mrb[0].mxu0
      %v3593 = vadd.f32 0.0, %v3592
      %v3594 = vpop.f32.mrb[0].mxu0
      %3595 = vmatprep.mubr.f32.mxu0 0.0
      %3596 = vmatmul.mubr.f32.gmra.mrb[0].mxu0 %v3401
      %v3597 = vpop.f32.mrb[0].mxu0
      %v3598 = vadd.f32 0.0, %v3597
      %v3599 = vpop.f32.mrb[0].mxu0
      %3600 = vmatprep.mubr.f32.mxu0 0.0
      %3601 = vmatmul.mubr.f32.gmra.mrb[0].mxu0 %v3404
      %v3602 = vpop.f32.mrb[0].mxu0
      %v3603 = vadd.f32 0.0, %v3602
      %v3604 = vpop.f32.mrb[0].mxu0
      %3605 = vmatprep.mubr.f32.mxu0 0.0
      %3606 = vmatmul.mubr.f32.gmra.mrb[0].mxu0 %v3407
      %v3607 = vpop.f32.mrb[0].mxu0
      %v3608 = vadd.f32 0.0, %v3607
      %v3609 = vpop.f32.mrb[0].mxu0
      %3610 = vmatprep.mubr.f32.mxu0 0.0
      %3611 = vmatmul.mubr.f32.gmra.mrb[0].mxu0 %v3410
      %v3612 = vpop.f32.mrb[0].mxu0
      %v3613 = vadd.f32 0.0, %v3612
      %v3614 = vpop.f32.mrb[0].mxu0
      %3615 = vmatprep.mubr.f32.mxu0 0.0
      %3616 = vmatmul.mubr.f32.gmra.mrb[0].mxu0 %v3413
      %v3617 = vpop.f32.mrb[0].mxu0
      %v3618 = vadd.f32 0.0, %v3617
      %v3619 = vpop.f32.mrb[0].mxu0
      %3620 = vmatprep.mubr.f32.mxu0 0.0
      %3621 = vmatmul.mubr.f32.gmra.mrb[0].mxu0 %v3416
      %v3622 = vpop.f32.mrb[0].mxu0
      %v3623 = vadd.f32 0.0, %v3622
      %v3624 = vpop.f32.mrb[0].mxu0
      %3625 = vmatprep.mubr.f32.mxu0 0.0
      %3626 = vmatmul.mubr.f32.gmra.mrb[0].mxu0 %v3419
      %v3627 = vpop.f32.mrb[0].mxu0
      %v3628 = vadd.f32 0.0, %v3627
      %v3629 = vpop.f32.mrb[0].mxu0
      %3630 = vmatprep.mubr.f32.mxu0 0.0
      %3631 = vmatmul.mubr.f32.gmra.mrb[0].mxu0 %v3422
      %v3632 = vpop.f32.mrb[0].mxu0
      %v3633 = vadd.f32 0.0, %v3632
      %v3634 = vpop.f32.mrb[0].mxu0
      %3635 = vmatprep.mubr.f32.mxu0 0.0
      %3636 = vmatmul.mubr.f32.gmra.mrb[0].mxu0 %v3425
      %v3637 = vpop.f32.mrb[0].mxu0
      %v3638 = vadd.f32 0.0, %v3637
      %v3639 = vpop.f32.mrb[0].mxu0
      %3640 = vmatprep.mubr.f32.mxu0 0.0
      %3641 = vmatmul.mubr.f32.gmra.mrb[0].mxu0 %v3428
      %v3642 = vpop.f32.mrb[0].mxu0
      %v3643 = vadd.f32 0.0, %v3642
      %v3644 = vpop.f32.mrb[0].mxu0
      %3645 = vmatprep.mubr.f32.mxu0 0.0
      %3646 = vmatmul.mubr.f32.gmra.mrb[0].mxu0 %v3431
      %v3647 = vpop.f32.mrb[0].mxu0
      %v3648 = vadd.f32 0.0, %v3647
      %v3649 = vpop.f32.mrb[0].mxu0
      %3650 = vmatprep.mubr.f32.mxu0 0.0
      %3651 = vmatmul.mubr.f32.gmra.mrb[0].mxu0 %v3434
      %v3652 = vpop.f32.mrb[0].mxu0
      %v3653 = vadd.f32 0.0, %v3652
      %v3654 = vpop.f32.mrb[0].mxu0
      %3655 = vmatprep.mubr.f32.mxu0 0.0
      %3656 = vmatmul.mubr.f32.gmra.mrb[0].mxu0 %v3437
      %v3657 = vpop.f32.mrb[0].mxu0
      %v3658 = vadd.f32 0.0, %v3657
      %v3659 = vpop.f32.mrb[0].mxu0
      %3660 = vmatprep.mubr.f32.mxu0 0.0
      %3661 = vmatmul.mubr.f32.gmra.mrb[0].mxu0 %v3440
      %v3662 = vpop.f32.mrb[0].mxu0
      %v3663 = vadd.f32 0.0, %v3662
      %v3664 = vpop.f32.mrb[0].mxu0
      %3665 = vmatprep.mubr.f32.mxu0 0.0
      %3666 = vmatmul.mubr.f32.gmra.mrb[0].mxu0 %v3443
      %v3667 = vpop.f32.mrb[0].mxu0
      %v3668 = vadd.f32 0.0, %v3667
      %v3669 = vpop.f32.mrb[0].mxu0
      %3670 = vmatprep.mubr.f32.mxu0 0.0
      %3671 = vmatmul.mubr.f32.gmra.mrb[0].mxu0 %v3446
      %v3672 = vpop.f32.mrb[0].mxu0
      %v3673 = vadd.f32 0.0, %v3672
      %v3674 = vpop.f32.mrb[0].mxu0
      %3675 = vdwg.mxu0
      %v3676 = vld [vmem:[#allocation2] sm:$0xff]
      %v3677 = vld [vmem:[#allocation2 + $0x8] sm:$0xff]
      %v3678 = vld [vmem:[#allocation2 + $0x10] sm:$0xff]
      %v3679 = vld [vmem:[#allocation2 + $0x18] sm:$0xff]
      %v3680 = vld [vmem:[#allocation2 + $0x20] sm:$0xff]
      %v3681 = vld [vmem:[#allocation2 + $0x28] sm:$0xff]
      %v3682 = vld [vmem:[#allocation2 + $0x30] sm:$0xff]
      %v3683 = vld [vmem:[#allocation2 + $0x38] sm:$0xff]
      %v3684 = vld [vmem:[#allocation2 + $0x40] sm:$0xff]
      %v3685 = vld [vmem:[#allocation2 + $0x48] sm:$0xff]
      %v3686 = vld [vmem:[#allocation2 + $0x50] sm:$0xff]
      %v3687 = vld [vmem:[#allocation2 + $0x58] sm:$0xff]
      %v3688 = vld [vmem:[#allocation2 + $0x60] sm:$0xff]
      %v3689 = vld [vmem:[#allocation2 + $0x68] sm:$0xff]
      %v3690 = vld [vmem:[#allocation2 + $0x70] sm:$0xff]
      %v3691 = vld [vmem:[#allocation2 + $0x78] sm:$0xff]
      %v3692 = vld [vmem:[#allocation2 + $0x80] sm:$0xff]
      %v3693 = vld [vmem:[#allocation2 + $0x88] sm:$0xff]
      %v3694 = vld [vmem:[#allocation2 + $0x90] sm:$0xff]
      %v3695 = vld [vmem:[#allocation2 + $0x98] sm:$0xff]
      %v3696 = vld [vmem:[#allocation2 + $0xa0] sm:$0xff]
      %v3697 = vld [vmem:[#allocation2 + $0xa8] sm:$0xff]
      %v3698 = vld [vmem:[#allocation2 + $0xb0] sm:$0xff]
      %v3699 = vld [vmem:[#allocation2 + $0xb8] sm:$0xff]
      %v3700 = vld [vmem:[#allocation2 + $0xc0] sm:$0xff]
      %v3701 = vld [vmem:[#allocation2 + $0xc8] sm:$0xff]
      %v3702 = vld [vmem:[#allocation2 + $0xd0] sm:$0xff]
      %v3703 = vld [vmem:[#allocation2 + $0xd8] sm:$0xff]
      %v3704 = vld [vmem:[#allocation2 + $0xe0] sm:$0xff]
      %v3705 = vld [vmem:[#allocation2 + $0xe8] sm:$0xff]
      %v3706 = vld [vmem:[#allocation2 + $0xf0] sm:$0xff]
      %v3707 = vld [vmem:[#allocation2 + $0xf8] sm:$0xff]
      %v3708 = vadd.f32 %v3676, %v3518
      %v3709 = vadd.f32 %v3677, %v3523
      %v3710 = vadd.f32 %v3678, %v3528
      %v3711 = vadd.f32 %v3679, %v3533
      %v3712 = vadd.f32 %v3680, %v3538
      %v3713 = vadd.f32 %v3681, %v3543
      %v3714 = vadd.f32 %v3682, %v3548
      %v3715 = vadd.f32 %v3683, %v3553
      %v3716 = vadd.f32 %v3684, %v3558
      %v3717 = vadd.f32 %v3685, %v3563
      %v3718 = vadd.f32 %v3686, %v3568
      %v3719 = vadd.f32 %v3687, %v3573
      %v3720 = vadd.f32 %v3688, %v3578
      %v3721 = vadd.f32 %v3689, %v3583
      %v3722 = vadd.f32 %v3690, %v3588
      %v3723 = vadd.f32 %v3691, %v3593
      %v3724 = vadd.f32 %v3692, %v3598
      %v3725 = vadd.f32 %v3693, %v3603
      %v3726 = vadd.f32 %v3694, %v3608
      %v3727 = vadd.f32 %v3695, %v3613
      %v3728 = vadd.f32 %v3696, %v3618
      %v3729 = vadd.f32 %v3697, %v3623
      %v3730 = vadd.f32 %v3698, %v3628
      %v3731 = vadd.f32 %v3699, %v3633
      %v3732 = vadd.f32 %v3700, %v3638
      %v3733 = vadd.f32 %v3701, %v3643
      %v3734 = vadd.f32 %v3702, %v3648
      %v3735 = vadd.f32 %v3703, %v3653
      %v3736 = vadd.f32 %v3704, %v3658
      %v3737 = vadd.f32 %v3705, %v3663
      %v3738 = vadd.f32 %v3706, %v3668
      %v3739 = vadd.f32 %v3707, %v3673
      %3740 = vst [vmem:[#allocation2] sm:$0xff] %v3708
      %3741 = vst [vmem:[#allocation2 + $0x8] sm:$0xff] %v3709
      %3742 = vst [vmem:[#allocation2 + $0x10] sm:$0xff] %v3710
      %3743 = vst [vmem:[#allocation2 + $0x18] sm:$0xff] %v3711
      %3744 = vst [vmem:[#allocation2 + $0x20] sm:$0xff] %v3712
      %3745 = vst [vmem:[#allocation2 + $0x28] sm:$0xff] %v3713
      %3746 = vst [vmem:[#allocation2 + $0x30] sm:$0xff] %v3714
      %3747 = vst [vmem:[#allocation2 + $0x38] sm:$0xff] %v3715
      %3748 = vst [vmem:[#allocation2 + $0x40] sm:$0xff] %v3716
      %3749 = vst [vmem:[#allocation2 + $0x48] sm:$0xff] %v3717
      %3750 = vst [vmem:[#allocation2 + $0x50] sm:$0xff] %v3718
      %3751 = vst [vmem:[#allocation2 + $0x58] sm:$0xff] %v3719
      %3752 = vst [vmem:[#allocation2 + $0x60] sm:$0xff] %v3720
      %3753 = vst [vmem:[#allocation2 + $0x68] sm:$0xff] %v3721
      %3754 = vst [vmem:[#allocation2 + $0x70] sm:$0xff] %v3722
      %3755 = vst [vmem:[#allocation2 + $0x78] sm:$0xff] %v3723
      %3756 = vst [vmem:[#allocation2 + $0x80] sm:$0xff] %v3724
      %3757 = vst [vmem:[#allocation2 + $0x88] sm:$0xff] %v3725
      %3758 = vst [vmem:[#allocation2 + $0x90] sm:$0xff] %v3726
      %3759 = vst [vmem:[#allocation2 + $0x98] sm:$0xff] %v3727
      %3760 = vst [vmem:[#allocation2 + $0xa0] sm:$0xff] %v3728
      %3761 = vst [vmem:[#allocation2 + $0xa8] sm:$0xff] %v3729
      %3762 = vst [vmem:[#allocation2 + $0xb0] sm:$0xff] %v3730
      %3763 = vst [vmem:[#allocation2 + $0xb8] sm:$0xff] %v3731
      %3764 = vst [vmem:[#allocation2 + $0xc0] sm:$0xff] %v3732
      %3765 = vst [vmem:[#allocation2 + $0xc8] sm:$0xff] %v3733
      %3766 = vst [vmem:[#allocation2 + $0xd0] sm:$0xff] %v3734
      %3767 = vst [vmem:[#allocation2 + $0xd8] sm:$0xff] %v3735
      %3768 = vst [vmem:[#allocation2 + $0xe0] sm:$0xff] %v3736
      %3769 = vst [vmem:[#allocation2 + $0xe8] sm:$0xff] %v3737
      %3770 = vst [vmem:[#allocation2 + $0xf0] sm:$0xff] %v3738
      %3771 = vst [vmem:[#allocation2 + $0xf8] sm:$0xff] %v3739
      %v3772 = vld [vmem:[%s2863 + $0x2] sm:$0xff]
      %v3773 = vld [vmem:[%s2863 + $0xa] sm:$0xff]
      %v3774 = vld [vmem:[%s2863 + $0x1a] sm:$0xff]
      %v3775 = vld [vmem:[%s2863 + $0x22] sm:$0xff]
      %v3776 = vld [vmem:[%s2863 + $0x32] sm:$0xff]
      %v3777 = vld [vmem:[%s2863 + $0x3a] sm:$0xff]
      %v3778 = vld [vmem:[%s2863 + $0x4a] sm:$0xff]
      %v3779 = vld [vmem:[%s2863 + $0x52] sm:$0xff]
      %v3780 = vld [vmem:[%s2863 + $0x62] sm:$0xff]
      %v3781 = vld [vmem:[%s2863 + $0x6a] sm:$0xff]
      %v3782 = vld [vmem:[%s2863 + $0x7a] sm:$0xff]
      %v3783 = vld [vmem:[%s2863 + $0x82] sm:$0xff]
      %v3784 = vld [vmem:[%s2863 + $0x92] sm:$0xff]
      %v3785 = vld [vmem:[%s2863 + $0x9a] sm:$0xff]
      %v3786 = vld [vmem:[%s2863 + $0xaa] sm:$0xff]
      %v3787 = vld [vmem:[%s2863 + $0xb2] sm:$0xff]
      %v3788 = vld [vmem:[%s2863 + $0xc2] sm:$0xff]
      %v3789 = vld [vmem:[%s2863 + $0xca] sm:$0xff]
      %v3790 = vld [vmem:[%s2863 + $0xda] sm:$0xff]
      %v3791 = vld [vmem:[%s2863 + $0xe2] sm:$0xff]
      %v3792 = vld [vmem:[%s2863 + $0xf2] sm:$0xff]
      %v3793 = vld [vmem:[%s2863 + $0xfa] sm:$0xff]
      %v3794 = vld [vmem:[%s2863 + $0x10a] sm:$0xff]
      %v3795 = vld [vmem:[%s2863 + $0x112] sm:$0xff]
      %v3796 = vld [vmem:[%s2863 + $0x122] sm:$0xff]
      %v3797 = vld [vmem:[%s2863 + $0x12a] sm:$0xff]
      %v3798 = vld [vmem:[%s2863 + $0x13a] sm:$0xff]
      %v3799 = vld [vmem:[%s2863 + $0x142] sm:$0xff]
      %v3800 = vld [vmem:[%s2863 + $0x152] sm:$0xff]
      %v3801 = vld [vmem:[%s2863 + $0x15a] sm:$0xff]
      %v3802 = vld [vmem:[%s2863 + $0x16a] sm:$0xff]
      %v3803 = vld [vmem:[%s2863 + $0x172] sm:$0xff]
      %s3804 = scalar_lea.vmem %s1, 32
      %v3805 = vld [vmem:[%s3804] sm:$0xf]
      %v3807 = vsel %vm230, %v3772, 0
      %v3810 = vsel %vm230, %v3773, 0
      %v3813 = vsel %vm230, %v3774, 0
      %v3816 = vsel %vm230, %v3775, 0
      %v3819 = vsel %vm230, %v3776, 0
      %v3822 = vsel %vm230, %v3777, 0
      %v3825 = vsel %vm230, %v3778, 0
      %v3828 = vsel %vm230, %v3779, 0
      %v3831 = vsel %vm230, %v3780, 0
      %v3834 = vsel %vm230, %v3781, 0
      %v3837 = vsel %vm230, %v3782, 0
      %v3840 = vsel %vm230, %v3783, 0
      %v3843 = vsel %vm230, %v3784, 0
      %v3846 = vsel %vm230, %v3785, 0
      %v3849 = vsel %vm230, %v3786, 0
      %v3852 = vsel %vm230, %v3787, 0
      %v3855 = vsel %vm230, %v3788, 0
      %v3858 = vsel %vm230, %v3789, 0
      %v3861 = vsel %vm230, %v3790, 0
      %v3864 = vsel %vm230, %v3791, 0
      %v3867 = vsel %vm230, %v3792, 0
      %v3870 = vsel %vm230, %v3793, 0
      %v3873 = vsel %vm230, %v3794, 0
      %v3876 = vsel %vm230, %v3795, 0
      %v3879 = vsel %vm230, %v3796, 0
      %v3882 = vsel %vm230, %v3797, 0
      %v3885 = vsel %vm230, %v3798, 0
      %v3888 = vsel %vm230, %v3799, 0
      %v3891 = vsel %vm230, %v3800, 0
      %v3894 = vsel %vm230, %v3801, 0
      %v3897 = vsel %vm230, %v3802, 0
      %v3900 = vsel %vm230, %v3803, 0
      %v3903 = vsel %vm327, %v3805, 0
      %3905 = vmatprep.subr.mxu0 0.0
      %3906 = vmatpush1.msra.mxu0 %v3903
      %3907 = vmatprep.subr.mxu0 0.0
      %3908 = vmatpush1.msra.mxu0 0.0
      %3909 = vmatprep.subr.mxu0 0.0
      %3910 = vmatpush1.msra.mxu0 0.0
      %3911 = vmatprep.subr.mxu0 0.0
      %3912 = vmatpush1.msra.mxu0 0.0
      %3913 = vmatprep.subr.mxu0 0.0
      %3914 = vmatpush1.msra.mxu0 0.0
      %3915 = vmatprep.subr.mxu0 0.0
      %3916 = vmatpush1.msra.mxu0 0.0
      %3917 = vmatprep.subr.mxu0 0.0
      %3918 = vmatpush1.msra.mxu0 0.0
      %3919 = vmatprep.subr.mxu0 0.0
      %3920 = vmatpush1.msra.mxu0 0.0
      %3921 = vmatprep.subr.mxu0 0.0
      %3922 = vmatpush1.msra.mxu0 0.0
      %3923 = vmatprep.subr.mxu0 0.0
      %3924 = vmatpush1.msra.mxu0 0.0
      %3925 = vmatprep.subr.mxu0 0.0
      %3926 = vmatpush1.msra.mxu0 0.0
      %3927 = vmatprep.subr.mxu0 0.0
      %3928 = vmatpush1.msra.mxu0 0.0
      %3929 = vmatprep.subr.mxu0 0.0
      %3930 = vmatpush1.msra.mxu0 0.0
      %3931 = vmatprep.subr.mxu0 0.0
      %3932 = vmatpush1.msra.mxu0 0.0
      %3933 = vmatprep.subr.mxu0 0.0
      %3934 = vmatpush1.msra.mxu0 0.0
      %3935 = vmatprep.subr.mxu0 0.0
      %3936 = vmatpush1.msra.mxu0 0.0
      %3937 = vmatprep.subr.mxu0 0.0
      %3938 = vmatpush1.msra.mxu0 0.0
      %3939 = vmatprep.subr.mxu0 0.0
      %3940 = vmatpush1.msra.mxu0 0.0
      %3941 = vmatprep.subr.mxu0 0.0
      %3942 = vmatpush1.msra.mxu0 0.0
      %3943 = vmatprep.subr.mxu0 0.0
      %3944 = vmatpush1.msra.mxu0 0.0
      %3945 = vmatprep.subr.mxu0 0.0
      %3946 = vmatpush1.msra.mxu0 0.0
      %3947 = vmatprep.subr.mxu0 0.0
      %3948 = vmatpush1.msra.mxu0 0.0
      %3949 = vmatprep.subr.mxu0 0.0
      %3950 = vmatpush1.msra.mxu0 0.0
      %3951 = vmatprep.subr.mxu0 0.0
      %3952 = vmatpush1.msra.mxu0 0.0
      %3953 = vmatprep.subr.mxu0 0.0
      %3954 = vmatpush1.msra.mxu0 0.0
      %3955 = vmatprep.subr.mxu0 0.0
      %3956 = vmatpush1.msra.mxu0 0.0
      %3957 = vmatprep.subr.mxu0 0.0
      %3958 = vmatpush1.msra.mxu0 0.0
      %3959 = vmatprep.subr.mxu0 0.0
      %3960 = vmatpush1.msra.mxu0 0.0
      %3961 = vmatprep.subr.mxu0 0.0
      %3962 = vmatpush1.msra.mxu0 0.0
      %3963 = vmatprep.subr.mxu0 0.0
      %3964 = vmatpush1.msra.mxu0 0.0
      %3965 = vmatprep.subr.mxu0 0.0
      %3966 = vmatpush1.msra.mxu0 0.0
      %3967 = vmatprep.subr.mxu0 0.0
      %3968 = vmatpush1.msra.mxu0 0.0
      %3969 = vmatprep.mubr.f32.mxu0 0.0
      %3970 = vmatmul.mubr.f32.gmra.mrb[0].mxu0 %v3807
      %v3971 = vpop.f32.mrb[0].mxu0
      %v3972 = vadd.f32 0.0, %v3971
      %v3973 = vpop.f32.mrb[0].mxu0
      %3974 = vmatprep.mubr.f32.mxu0 0.0
      %3975 = vmatmul.mubr.f32.gmra.mrb[0].mxu0 %v3810
      %v3976 = vpop.f32.mrb[0].mxu0
      %v3977 = vadd.f32 0.0, %v3976
      %v3978 = vpop.f32.mrb[0].mxu0
      %3979 = vmatprep.mubr.f32.mxu0 0.0
      %3980 = vmatmul.mubr.f32.gmra.mrb[0].mxu0 %v3813
      %v3981 = vpop.f32.mrb[0].mxu0
      %v3982 = vadd.f32 0.0, %v3981
      %v3983 = vpop.f32.mrb[0].mxu0
      %3984 = vmatprep.mubr.f32.mxu0 0.0
      %3985 = vmatmul.mubr.f32.gmra.mrb[0].mxu0 %v3816
      %v3986 = vpop.f32.mrb[0].mxu0
      %v3987 = vadd.f32 0.0, %v3986
      %v3988 = vpop.f32.mrb[0].mxu0
      %3989 = vmatprep.mubr.f32.mxu0 0.0
      %3990 = vmatmul.mubr.f32.gmra.mrb[0].mxu0 %v3819
      %v3991 = vpop.f32.mrb[0].mxu0
      %v3992 = vadd.f32 0.0, %v3991
      %v3993 = vpop.f32.mrb[0].mxu0
      %3994 = vmatprep.mubr.f32.mxu0 0.0
      %3995 = vmatmul.mubr.f32.gmra.mrb[0].mxu0 %v3822
      %v3996 = vpop.f32.mrb[0].mxu0
      %v3997 = vadd.f32 0.0, %v3996
      %v3998 = vpop.f32.mrb[0].mxu0
      %3999 = vmatprep.mubr.f32.mxu0 0.0
      %4000 = vmatmul.mubr.f32.gmra.mrb[0].mxu0 %v3825
      %v4001 = vpop.f32.mrb[0].mxu0
      %v4002 = vadd.f32 0.0, %v4001
      %v4003 = vpop.f32.mrb[0].mxu0
      %4004 = vmatprep.mubr.f32.mxu0 0.0
      %4005 = vmatmul.mubr.f32.gmra.mrb[0].mxu0 %v3828
      %v4006 = vpop.f32.mrb[0].mxu0
      %v4007 = vadd.f32 0.0, %v4006
      %v4008 = vpop.f32.mrb[0].mxu0
      %4009 = vmatprep.mubr.f32.mxu0 0.0
      %4010 = vmatmul.mubr.f32.gmra.mrb[0].mxu0 %v3831
      %v4011 = vpop.f32.mrb[0].mxu0
      %v4012 = vadd.f32 0.0, %v4011
      %v4013 = vpop.f32.mrb[0].mxu0
      %4014 = vmatprep.mubr.f32.mxu0 0.0
      %4015 = vmatmul.mubr.f32.gmra.mrb[0].mxu0 %v3834
      %v4016 = vpop.f32.mrb[0].mxu0
      %v4017 = vadd.f32 0.0, %v4016
      %v4018 = vpop.f32.mrb[0].mxu0
      %4019 = vmatprep.mubr.f32.mxu0 0.0
      %4020 = vmatmul.mubr.f32.gmra.mrb[0].mxu0 %v3837
      %v4021 = vpop.f32.mrb[0].mxu0
      %v4022 = vadd.f32 0.0, %v4021
      %v4023 = vpop.f32.mrb[0].mxu0
      %4024 = vmatprep.mubr.f32.mxu0 0.0
      %4025 = vmatmul.mubr.f32.gmra.mrb[0].mxu0 %v3840
      %v4026 = vpop.f32.mrb[0].mxu0
      %v4027 = vadd.f32 0.0, %v4026
      %v4028 = vpop.f32.mrb[0].mxu0
      %4029 = vmatprep.mubr.f32.mxu0 0.0
      %4030 = vmatmul.mubr.f32.gmra.mrb[0].mxu0 %v3843
      %v4031 = vpop.f32.mrb[0].mxu0
      %v4032 = vadd.f32 0.0, %v4031
      %v4033 = vpop.f32.mrb[0].mxu0
      %4034 = vmatprep.mubr.f32.mxu0 0.0
      %4035 = vmatmul.mubr.f32.gmra.mrb[0].mxu0 %v3846
      %v4036 = vpop.f32.mrb[0].mxu0
      %v4037 = vadd.f32 0.0, %v4036
      %v4038 = vpop.f32.mrb[0].mxu0
      %4039 = vmatprep.mubr.f32.mxu0 0.0
      %4040 = vmatmul.mubr.f32.gmra.mrb[0].mxu0 %v3849
      %v4041 = vpop.f32.mrb[0].mxu0
      %v4042 = vadd.f32 0.0, %v4041
      %v4043 = vpop.f32.mrb[0].mxu0
      %4044 = vmatprep.mubr.f32.mxu0 0.0
      %4045 = vmatmul.mubr.f32.gmra.mrb[0].mxu0 %v3852
      %v4046 = vpop.f32.mrb[0].mxu0
      %v4047 = vadd.f32 0.0, %v4046
      %v4048 = vpop.f32.mrb[0].mxu0
      %4049 = vmatprep.mubr.f32.mxu0 0.0
      %4050 = vmatmul.mubr.f32.gmra.mrb[0].mxu0 %v3855
      %v4051 = vpop.f32.mrb[0].mxu0
      %v4052 = vadd.f32 0.0, %v4051
      %v4053 = vpop.f32.mrb[0].mxu0
      %4054 = vmatprep.mubr.f32.mxu0 0.0
      %4055 = vmatmul.mubr.f32.gmra.mrb[0].mxu0 %v3858
      %v4056 = vpop.f32.mrb[0].mxu0
      %v4057 = vadd.f32 0.0, %v4056
      %v4058 = vpop.f32.mrb[0].mxu0
      %4059 = vmatprep.mubr.f32.mxu0 0.0
      %4060 = vmatmul.mubr.f32.gmra.mrb[0].mxu0 %v3861
      %v4061 = vpop.f32.mrb[0].mxu0
      %v4062 = vadd.f32 0.0, %v4061
      %v4063 = vpop.f32.mrb[0].mxu0
      %4064 = vmatprep.mubr.f32.mxu0 0.0
      %4065 = vmatmul.mubr.f32.gmra.mrb[0].mxu0 %v3864
      %v4066 = vpop.f32.mrb[0].mxu0
      %v4067 = vadd.f32 0.0, %v4066
      %v4068 = vpop.f32.mrb[0].mxu0
      %4069 = vmatprep.mubr.f32.mxu0 0.0
      %4070 = vmatmul.mubr.f32.gmra.mrb[0].mxu0 %v3867
      %v4071 = vpop.f32.mrb[0].mxu0
      %v4072 = vadd.f32 0.0, %v4071
      %v4073 = vpop.f32.mrb[0].mxu0
      %4074 = vmatprep.mubr.f32.mxu0 0.0
      %4075 = vmatmul.mubr.f32.gmra.mrb[0].mxu0 %v3870
      %v4076 = vpop.f32.mrb[0].mxu0
      %v4077 = vadd.f32 0.0, %v4076
      %v4078 = vpop.f32.mrb[0].mxu0
      %4079 = vmatprep.mubr.f32.mxu0 0.0
      %4080 = vmatmul.mubr.f32.gmra.mrb[0].mxu0 %v3873
      %v4081 = vpop.f32.mrb[0].mxu0
      %v4082 = vadd.f32 0.0, %v4081
      %v4083 = vpop.f32.mrb[0].mxu0
      %4084 = vmatprep.mubr.f32.mxu0 0.0
      %4085 = vmatmul.mubr.f32.gmra.mrb[0].mxu0 %v3876
      %v4086 = vpop.f32.mrb[0].mxu0
      %v4087 = vadd.f32 0.0, %v4086
      %v4088 = vpop.f32.mrb[0].mxu0
      %4089 = vmatprep.mubr.f32.mxu0 0.0
      %4090 = vmatmul.mubr.f32.gmra.mrb[0].mxu0 %v3879
      %v4091 = vpop.f32.mrb[0].mxu0
      %v4092 = vadd.f32 0.0, %v4091
      %v4093 = vpop.f32.mrb[0].mxu0
      %4094 = vmatprep.mubr.f32.mxu0 0.0
      %4095 = vmatmul.mubr.f32.gmra.mrb[0].mxu0 %v3882
      %v4096 = vpop.f32.mrb[0].mxu0
      %v4097 = vadd.f32 0.0, %v4096
      %v4098 = vpop.f32.mrb[0].mxu0
      %4099 = vmatprep.mubr.f32.mxu0 0.0
      %4100 = vmatmul.mubr.f32.gmra.mrb[0].mxu0 %v3885
      %v4101 = vpop.f32.mrb[0].mxu0
      %v4102 = vadd.f32 0.0, %v4101
      %v4103 = vpop.f32.mrb[0].mxu0
      %4104 = vmatprep.mubr.f32.mxu0 0.0
      %4105 = vmatmul.mubr.f32.gmra.mrb[0].mxu0 %v3888
      %v4106 = vpop.f32.mrb[0].mxu0
      %v4107 = vadd.f32 0.0, %v4106
      %v4108 = vpop.f32.mrb[0].mxu0
      %4109 = vmatprep.mubr.f32.mxu0 0.0
      %4110 = vmatmul.mubr.f32.gmra.mrb[0].mxu0 %v3891
      %v4111 = vpop.f32.mrb[0].mxu0
      %v4112 = vadd.f32 0.0, %v4111
      %v4113 = vpop.f32.mrb[0].mxu0
      %4114 = vmatprep.mubr.f32.mxu0 0.0
      %4115 = vmatmul.mubr.f32.gmra.mrb[0].mxu0 %v3894
      %v4116 = vpop.f32.mrb[0].mxu0
      %v4117 = vadd.f32 0.0, %v4116
      %v4118 = vpop.f32.mrb[0].mxu0
      %4119 = vmatprep.mubr.f32.mxu0 0.0
      %4120 = vmatmul.mubr.f32.gmra.mrb[0].mxu0 %v3897
      %v4121 = vpop.f32.mrb[0].mxu0
      %v4122 = vadd.f32 0.0, %v4121
      %v4123 = vpop.f32.mrb[0].mxu0
      %4124 = vmatprep.mubr.f32.mxu0 0.0
      %4125 = vmatmul.mubr.f32.gmra.mrb[0].mxu0 %v3900
      %v4126 = vpop.f32.mrb[0].mxu0
      %v4127 = vadd.f32 0.0, %v4126
      %v4128 = vpop.f32.mrb[0].mxu0
      %4129 = vdwg.mxu0
      %v4130 = vld [vmem:[#allocation2] sm:$0xff]
      %v4131 = vld [vmem:[#allocation2 + $0x8] sm:$0xff]
      %v4132 = vld [vmem:[#allocation2 + $0x10] sm:$0xff]
      %v4133 = vld [vmem:[#allocation2 + $0x18] sm:$0xff]
      %v4134 = vld [vmem:[#allocation2 + $0x20] sm:$0xff]
      %v4135 = vld [vmem:[#allocation2 + $0x28] sm:$0xff]
      %v4136 = vld [vmem:[#allocation2 + $0x30] sm:$0xff]
      %v4137 = vld [vmem:[#allocation2 + $0x38] sm:$0xff]
      %v4138 = vld [vmem:[#allocation2 + $0x40] sm:$0xff]
      %v4139 = vld [vmem:[#allocation2 + $0x48] sm:$0xff]
      %v4140 = vld [vmem:[#allocation2 + $0x50] sm:$0xff]
      %v4141 = vld [vmem:[#allocation2 + $0x58] sm:$0xff]
      %v4142 = vld [vmem:[#allocation2 + $0x60] sm:$0xff]
      %v4143 = vld [vmem:[#allocation2 + $0x68] sm:$0xff]
      %v4144 = vld [vmem:[#allocation2 + $0x70] sm:$0xff]
      %v4145 = vld [vmem:[#allocation2 + $0x78] sm:$0xff]
      %v4146 = vld [vmem:[#allocation2 + $0x80] sm:$0xff]
      %v4147 = vld [vmem:[#allocation2 + $0x88] sm:$0xff]
      %v4148 = vld [vmem:[#allocation2 + $0x90] sm:$0xff]
      %v4149 = vld [vmem:[#allocation2 + $0x98] sm:$0xff]
      %v4150 = vld [vmem:[#allocation2 + $0xa0] sm:$0xff]
      %v4151 = vld [vmem:[#allocation2 + $0xa8] sm:$0xff]
      %v4152 = vld [vmem:[#allocation2 + $0xb0] sm:$0xff]
      %v4153 = vld [vmem:[#allocation2 + $0xb8] sm:$0xff]
      %v4154 = vld [vmem:[#allocation2 + $0xc0] sm:$0xff]
      %v4155 = vld [vmem:[#allocation2 + $0xc8] sm:$0xff]
      %v4156 = vld [vmem:[#allocation2 + $0xd0] sm:$0xff]
      %v4157 = vld [vmem:[#allocation2 + $0xd8] sm:$0xff]
      %v4158 = vld [vmem:[#allocation2 + $0xe0] sm:$0xff]
      %v4159 = vld [vmem:[#allocation2 + $0xe8] sm:$0xff]
      %v4160 = vld [vmem:[#allocation2 + $0xf0] sm:$0xff]
      %v4161 = vld [vmem:[#allocation2 + $0xf8] sm:$0xff]
      %v4162 = vadd.f32 %v4130, %v3972
      %v4163 = vadd.f32 %v4131, %v3977
      %v4164 = vadd.f32 %v4132, %v3982
      %v4165 = vadd.f32 %v4133, %v3987
      %v4166 = vadd.f32 %v4134, %v3992
      %v4167 = vadd.f32 %v4135, %v3997
      %v4168 = vadd.f32 %v4136, %v4002
      %v4169 = vadd.f32 %v4137, %v4007
      %v4170 = vadd.f32 %v4138, %v4012
      %v4171 = vadd.f32 %v4139, %v4017
      %v4172 = vadd.f32 %v4140, %v4022
      %v4173 = vadd.f32 %v4141, %v4027
      %v4174 = vadd.f32 %v4142, %v4032
      %v4175 = vadd.f32 %v4143, %v4037
      %v4176 = vadd.f32 %v4144, %v4042
      %v4177 = vadd.f32 %v4145, %v4047
      %v4178 = vadd.f32 %v4146, %v4052
      %v4179 = vadd.f32 %v4147, %v4057
      %v4180 = vadd.f32 %v4148, %v4062
      %v4181 = vadd.f32 %v4149, %v4067
      %v4182 = vadd.f32 %v4150, %v4072
      %v4183 = vadd.f32 %v4151, %v4077
      %v4184 = vadd.f32 %v4152, %v4082
      %v4185 = vadd.f32 %v4153, %v4087
      %v4186 = vadd.f32 %v4154, %v4092
      %v4187 = vadd.f32 %v4155, %v4097
      %v4188 = vadd.f32 %v4156, %v4102
      %v4189 = vadd.f32 %v4157, %v4107
      %v4190 = vadd.f32 %v4158, %v4112
      %v4191 = vadd.f32 %v4159, %v4117
      %v4192 = vadd.f32 %v4160, %v4122
      %v4193 = vadd.f32 %v4161, %v4127
      %4194 = vst [vmem:[#allocation2] sm:$0xff] %v4162
      %4195 = vst [vmem:[#allocation2 + $0x8] sm:$0xff] %v4163
      %4196 = vst [vmem:[#allocation2 + $0x10] sm:$0xff] %v4164
      %4197 = vst [vmem:[#allocation2 + $0x18] sm:$0xff] %v4165
      %4198 = vst [vmem:[#allocation2 + $0x20] sm:$0xff] %v4166
      %4199 = vst [vmem:[#allocation2 + $0x28] sm:$0xff] %v4167
      %4200 = vst [vmem:[#allocation2 + $0x30] sm:$0xff] %v4168
      %4201 = vst [vmem:[#allocation2 + $0x38] sm:$0xff] %v4169
      %4202 = vst [vmem:[#allocation2 + $0x40] sm:$0xff] %v4170
      %4203 = vst [vmem:[#allocation2 + $0x48] sm:$0xff] %v4171
      %4204 = vst [vmem:[#allocation2 + $0x50] sm:$0xff] %v4172
      %4205 = vst [vmem:[#allocation2 + $0x58] sm:$0xff] %v4173
      %4206 = vst [vmem:[#allocation2 + $0x60] sm:$0xff] %v4174
      %4207 = vst [vmem:[#allocation2 + $0x68] sm:$0xff] %v4175
      %4208 = vst [vmem:[#allocation2 + $0x70] sm:$0xff] %v4176
      %4209 = vst [vmem:[#allocation2 + $0x78] sm:$0xff] %v4177
      %4210 = vst [vmem:[#allocation2 + $0x80] sm:$0xff] %v4178
      %4211 = vst [vmem:[#allocation2 + $0x88] sm:$0xff] %v4179
      %4212 = vst [vmem:[#allocation2 + $0x90] sm:$0xff] %v4180
      %4213 = vst [vmem:[#allocation2 + $0x98] sm:$0xff] %v4181
      %4214 = vst [vmem:[#allocation2 + $0xa0] sm:$0xff] %v4182
      %4215 = vst [vmem:[#allocation2 + $0xa8] sm:$0xff] %v4183
      %4216 = vst [vmem:[#allocation2 + $0xb0] sm:$0xff] %v4184
      %4217 = vst [vmem:[#allocation2 + $0xb8] sm:$0xff] %v4185
      %4218 = vst [vmem:[#allocation2 + $0xc0] sm:$0xff] %v4186
      %4219 = vst [vmem:[#allocation2 + $0xc8] sm:$0xff] %v4187
      %4220 = vst [vmem:[#allocation2 + $0xd0] sm:$0xff] %v4188
      %4221 = vst [vmem:[#allocation2 + $0xd8] sm:$0xff] %v4189
      %4222 = vst [vmem:[#allocation2 + $0xe0] sm:$0xff] %v4190
      %4223 = vst [vmem:[#allocation2 + $0xe8] sm:$0xff] %v4191
      %4224 = vst [vmem:[#allocation2 + $0xf0] sm:$0xff] %v4192
      %4225 = vst [vmem:[#allocation2 + $0xf8] sm:$0xff] %v4193
      %v4226 = vld [vmem:[#allocation2] sm:$0xff]
      %v4227 = vld [vmem:[#allocation2 + $0x8] sm:$0xff]
      %v4228 = vld [vmem:[#allocation2 + $0x10] sm:$0xff]
      %v4229 = vld [vmem:[#allocation2 + $0x18] sm:$0xff]
      %v4230 = vld [vmem:[#allocation2 + $0x20] sm:$0xff]
      %v4231 = vld [vmem:[#allocation2 + $0x28] sm:$0xff]
      %v4232 = vld [vmem:[#allocation2 + $0x30] sm:$0xff]
      %v4233 = vld [vmem:[#allocation2 + $0x38] sm:$0xff]
      %v4234 = vld [vmem:[#allocation2 + $0x40] sm:$0xff]
      %v4235 = vld [vmem:[#allocation2 + $0x48] sm:$0xff]
      %v4236 = vld [vmem:[#allocation2 + $0x50] sm:$0xff]
      %v4237 = vld [vmem:[#allocation2 + $0x58] sm:$0xff]
      %v4238 = vld [vmem:[#allocation2 + $0x60] sm:$0xff]
      %v4239 = vld [vmem:[#allocation2 + $0x68] sm:$0xff]
      %v4240 = vld [vmem:[#allocation2 + $0x70] sm:$0xff]
      %v4241 = vld [vmem:[#allocation2 + $0x78] sm:$0xff]
      %v4242 = vld [vmem:[#allocation2 + $0x80] sm:$0xff]
      %v4243 = vld [vmem:[#allocation2 + $0x88] sm:$0xff]
      %v4244 = vld [vmem:[#allocation2 + $0x90] sm:$0xff]
      %v4245 = vld [vmem:[#allocation2 + $0x98] sm:$0xff]
      %v4246 = vld [vmem:[#allocation2 + $0xa0] sm:$0xff]
      %v4247 = vld [vmem:[#allocation2 + $0xa8] sm:$0xff]
      %v4248 = vld [vmem:[#allocation2 + $0xb0] sm:$0xff]
      %v4249 = vld [vmem:[#allocation2 + $0xb8] sm:$0xff]
      %v4250 = vld [vmem:[#allocation2 + $0xc0] sm:$0xff]
      %v4251 = vld [vmem:[#allocation2 + $0xc8] sm:$0xff]
      %v4252 = vld [vmem:[#allocation2 + $0xd0] sm:$0xff]
      %v4253 = vld [vmem:[#allocation2 + $0xd8] sm:$0xff]
      %v4254 = vld [vmem:[#allocation2 + $0xe0] sm:$0xff]
      %v4255 = vld [vmem:[#allocation2 + $0xe8] sm:$0xff]
      %v4256 = vld [vmem:[#allocation2 + $0xf0] sm:$0xff]
      %v4257 = vld [vmem:[#allocation2 + $0xf8] sm:$0xff]
      %v4258 = vld [vmem:[%s2] sm:$0x1]
      %v4260 = vlaneseq
      %v4261 = vshrl.u32 %v4260, 7
      %v4262 = vsub.s32 0, %v4261
      %v4263 = vrot.slane %v4258, %v4262
      %v4265 = vadd.f32 %v4226, %v4263
      %v4266 = vadd.f32 %v4227, %v4263
      %v4267 = vadd.f32 %v4228, %v4263
      %v4268 = vadd.f32 %v4229, %v4263
      %v4269 = vadd.f32 %v4230, %v4263
      %v4270 = vadd.f32 %v4231, %v4263
      %v4271 = vadd.f32 %v4232, %v4263
      %v4272 = vadd.f32 %v4233, %v4263
      %v4273 = vadd.f32 %v4234, %v4263
      %v4274 = vadd.f32 %v4235, %v4263
      %v4275 = vadd.f32 %v4236, %v4263
      %v4276 = vadd.f32 %v4237, %v4263
      %v4277 = vadd.f32 %v4238, %v4263
      %v4278 = vadd.f32 %v4239, %v4263
      %v4279 = vadd.f32 %v4240, %v4263
      %v4280 = vadd.f32 %v4241, %v4263
      %v4281 = vadd.f32 %v4242, %v4263
      %v4282 = vadd.f32 %v4243, %v4263
      %v4283 = vadd.f32 %v4244, %v4263
      %v4284 = vadd.f32 %v4245, %v4263
      %v4285 = vadd.f32 %v4246, %v4263
      %v4286 = vadd.f32 %v4247, %v4263
      %v4287 = vadd.f32 %v4248, %v4263
      %v4288 = vadd.f32 %v4249, %v4263
      %v4289 = vadd.f32 %v4250, %v4263
      %v4290 = vadd.f32 %v4251, %v4263
      %v4291 = vadd.f32 %v4252, %v4263
      %v4292 = vadd.f32 %v4253, %v4263
      %v4293 = vadd.f32 %v4254, %v4263
      %v4294 = vadd.f32 %v4255, %v4263
      %v4295 = vadd.f32 %v4256, %v4263
      %v4296 = vadd.f32 %v4257, %v4263
      %vm4297 = vcmask 64512
      %4298 = vst.msk [vmem:[%s192] sm:$0xff] %vm4297, %v4265
      %4299 = vst.msk [vmem:[%s192 + $0x8] sm:$0xff] %vm4297, %v4266
      %4300 = vst.msk [vmem:[%s192 + $0x10] sm:$0xff] %vm4297, %v4267
      %4301 = vst.msk [vmem:[%s192 + $0x18] sm:$0xff] %vm4297, %v4268
      %4302 = vst.msk [vmem:[%s192 + $0x20] sm:$0xff] %vm4297, %v4269
      %4303 = vst.msk [vmem:[%s192 + $0x28] sm:$0xff] %vm4297, %v4270
      %4304 = vst.msk [vmem:[%s192 + $0x30] sm:$0xff] %vm4297, %v4271
      %4305 = vst.msk [vmem:[%s192 + $0x38] sm:$0xff] %vm4297, %v4272
      %4306 = vst.msk [vmem:[%s192 + $0x40] sm:$0xff] %vm4297, %v4273
      %4307 = vst.msk [vmem:[%s192 + $0x48] sm:$0xff] %vm4297, %v4274
      %4308 = vst.msk [vmem:[%s192 + $0x50] sm:$0xff] %vm4297, %v4275
      %4309 = vst.msk [vmem:[%s192 + $0x58] sm:$0xff] %vm4297, %v4276
      %4310 = vst.msk [vmem:[%s192 + $0x60] sm:$0xff] %vm4297, %v4277
      %4311 = vst.msk [vmem:[%s192 + $0x68] sm:$0xff] %vm4297, %v4278
      %4312 = vst.msk [vmem:[%s192 + $0x70] sm:$0xff] %vm4297, %v4279
      %4313 = vst.msk [vmem:[%s192 + $0x78] sm:$0xff] %vm4297, %v4280
      %4314 = vst.msk [vmem:[%s192 + $0x80] sm:$0xff] %vm4297, %v4281
      %4315 = vst.msk [vmem:[%s192 + $0x88] sm:$0xff] %vm4297, %v4282
      %4316 = vst.msk [vmem:[%s192 + $0x90] sm:$0xff] %vm4297, %v4283
      %4317 = vst.msk [vmem:[%s192 + $0x98] sm:$0xff] %vm4297, %v4284
      %4318 = vst.msk [vmem:[%s192 + $0xa0] sm:$0xff] %vm4297, %v4285
      %4319 = vst.msk [vmem:[%s192 + $0xa8] sm:$0xff] %vm4297, %v4286
      %4320 = vst.msk [vmem:[%s192 + $0xb0] sm:$0xff] %vm4297, %v4287
      %4321 = vst.msk [vmem:[%s192 + $0xb8] sm:$0xff] %vm4297, %v4288
      %4322 = vst.msk [vmem:[%s192 + $0xc0] sm:$0xff] %vm4297, %v4289
      %4323 = vst.msk [vmem:[%s192 + $0xc8] sm:$0xff] %vm4297, %v4290
      %4324 = vst.msk [vmem:[%s192 + $0xd0] sm:$0xff] %vm4297, %v4291
      %4325 = vst.msk [vmem:[%s192 + $0xd8] sm:$0xff] %vm4297, %v4292
      %4326 = vst.msk [vmem:[%s192 + $0xe0] sm:$0xff] %vm4297, %v4293
      %4327 = vst.msk [vmem:[%s192 + $0xe8] sm:$0xff] %vm4297, %v4294
      %4328 = vst.msk [vmem:[%s192 + $0xf0] sm:$0xff] %vm4297, %v4295
      %4329 = vst.msk [vmem:[%s192 + $0xf8] sm:$0xff] %vm4297, %v4296
      %s4330 = smul.u32 32, %s19
      %p4331 = scmp.lt.s32.totalorder %s18, 1
      %s4332 = scalar_select %p4331, %s18, 1
      %p4333 = scmp.lt.s32.totalorder %s4330, 31
      %s4334 = scalar_select %p4333, %s4330, 31
      %s4335 = smul.addr %s4332, 32
      %s4336 = sadd.s32 %s4334, %s4335
      %s4337 = smul.addr %s4336, 8
      %s4338 = scalar_lea.vmem %s3, %s4337
      // Predicated region
      $region33: #{tpu_custom_call.1} parent=31 // pred_check
        %p4339 = pneg %p114
      $region34: #{tpu_custom_call.1} parent=31 // pred_check_branch
        %4341 = sbr.rel (%p4339) target = $region36
      $region35: #{tpu_custom_call.1} parent=31 // pred_region
        %s4342 = smul.u32 32, %s19
      $region36: #{tpu_custom_call.1} parent=31 // pred_fallthru
        _
    $region32: #{tpu_custom_call.1} parent=5 // pred_fallthru
      _
    %p4343 = scmp.le.s32.totalorder 2, %s9
    // Predicated region
    $region37: #{tpu_custom_call.1} parent=5 // pred_check
      %p4344 = pneg %p4343
    $region38: #{tpu_custom_call.1} parent=5 // pred_check_branch
      %4346 = sbr.rel (%p4344) target = $region40
    $region39: #{tpu_custom_call.1} parent=5 // pred_region
      %s4347 = ssub.s32 %s9, 2
      // Predicated region
      $region41: #{tpu_custom_call.1} parent=39 // pred_check
        %p4348 = pneg %p120
      $region42: #{tpu_custom_call.1} parent=39 // pred_check_branch
        %4350 = sbr.rel (%p4348) target = $region44
      $region43: #{tpu_custom_call.1} parent=39 // pred_region
        %s4351 = smul.u32 32, %s21
        %p4352 = scmp.lt.s32.totalorder %s20, 1
        %s4353 = scalar_select %p4352, %s20, 1
        %p4354 = scmp.lt.s32.totalorder %s4351, 31
        %s4355 = scalar_select %p4354, %s4351, 31
        %s4356 = smul.addr %s4353, 32
        %s4357 = sadd.s32 %s4355, %s4356
        %s4358 = smul.addr %s4357, 8
        %s4359 = scalar_lea.vmem %s3, %s4358
      $region44: #{tpu_custom_call.1} parent=39 // pred_fallthru
        _
    $region40: #{tpu_custom_call.1} parent=5 // pred_fallthru
      _
  $region6: #{tpu_custom_call.1} parent=0 // loop_footer
    %s13 = sadd.s32 1, %s9
  $region7: #{tpu_custom_call.1} parent=0 // loop_footer_branch
    %8 = sbr.rel target = $region3
  $region8: #{tpu_custom_call.1} parent=0 // loop_exit
    _

</llo_original>
